<compile_context>
chip_gen: v7x
topology: tpu7x:2x2x1
jax: 0.10.0
libtpu: 0.0.40
codegen_flags: <defaults>
</compile_context>

<pallas_src>
import functools

import numpy as np

import jax
import jax.numpy as jnp
from jax.experimental import pallas as pl
from jax.experimental.pallas import tpu as pltpu

TB = 8          # batch tile (images per grid step); must be a multiple of 8
C1, C2 = 6, 16  # conv channel counts


# ---------------------------------------------------------------------------
# The fused kernel: entire LeNet forward for one batch tile, all in VMEM.
# Activation layout: rows = h*TB + b (h slower), lanes = w*C + c (c fastest).
# ---------------------------------------------------------------------------
def _lenet_kernel(x_ref, b1_ref, shift1_ref, s1he_ref, s1ho_ref, s1we_ref, s1wo_ref,
                  b2_ref, bias2_ref, s2he_ref, s2ho_ref, s2we_ref, s2wo_ref,
                  wfc1_ref, bfc1_ref, wfc2_ref, shift2_ref, wfc3_ref, bfc3_ref,
                  out_ref, *, tb):
    f32 = jnp.float32
    bf16 = jnp.bfloat16

    x = x_ref[...]                                        # (32*tb, 32) rows=(h,b)

    # --- Conv2d(1,6,5,pad=2) with BN2d scale folded in: 5 banded matmuls ----
    y1 = jnp.zeros((28 * tb, 28 * C1), f32)
    for i in range(5):
        xi = x[i * tb:(i + 28) * tb, :].astype(bf16)      # rows h+i, all b
        y1 = y1 + jnp.dot(xi, b1_ref[i], preferred_element_type=f32)
    y1 = jax.nn.sigmoid(y1 + shift1_ref[...])             # BN shift (+bias) + Sigmoid

    # --- MaxPool2d(2,2): exact 0/1 selection matmuls + elementwise max ------
    y1h = jnp.maximum(jnp.dot(s1he_ref[...], y1, preferred_element_type=f32),
                      jnp.dot(s1ho_ref[...], y1, preferred_element_type=f32))
    p1 = jnp.maximum(jnp.dot(y1h, s1we_ref[...], preferred_element_type=f32),
                     jnp.dot(y1h, s1wo_ref[...], preferred_element_type=f32))
    # p1: (14*tb, 128) rows=(h,b), lanes=(w*6+c), lanes >= 84 are zero padding

    # --- Conv2d(6,16,5): 5 banded matmuls (K padded to 128) + bias ----------
    y2 = jnp.zeros((10 * tb, 10 * C2), f32)
    for i in range(5):
        pi = p1[i * tb:(i + 10) * tb, :].astype(bf16)
        y2 = y2 + jnp.dot(pi, b2_ref[i], preferred_element_type=f32)
    y2 = y2 + bias2_ref[...]

    # --- MaxPool2d(2,2) ------------------------------------------------------
    y2h = jnp.maximum(jnp.dot(s2he_ref[...], y2, preferred_element_type=f32),
                      jnp.dot(s2ho_ref[...], y2, preferred_element_type=f32))
    p2 = jnp.maximum(jnp.dot(y2h, s2we_ref[...], preferred_element_type=f32),
                     jnp.dot(y2h, s2wo_ref[...], preferred_element_type=f32))
    # p2: (5*tb, 80) rows=(h,b), lanes=(w*16+c)

    # --- Flatten (PyTorch NCHW order absorbed into the wfc1 row permutation),
    #     Dropout(0.1) = identity in eval mode, Linear(400,120) + ReLU --------
    # TODO(synk): train-mode BatchNorm batch stats / RNG Dropout not implemented.
    wfc1 = wfc1_ref[...]
    h1 = jnp.zeros((tb, 120), f32)
    for h in range(5):
        h1 = h1 + jnp.dot(p2[h * tb:(h + 1) * tb, :].astype(bf16),
                          wfc1[h * 5 * C2:(h + 1) * 5 * C2, :],
                          preferred_element_type=f32)
    h1 = jnp.maximum(h1 + bfc1_ref[...], 0.0)

    # --- Linear(120,84) + BatchNorm1d(84) (scale folded) + Sigmoid ----------
    h2 = jnp.dot(h1.astype(bf16), wfc2_ref[...], preferred_element_type=f32)
    h2 = jax.nn.sigmoid(h2 + shift2_ref[...])

    # --- Linear(84,10), output padded to 128 lanes for a dense HBM store ----
    h3 = jnp.dot(h2.astype(bf16), wfc3_ref[...], preferred_element_type=f32)
    out_ref[...] = (h3 + bfc3_ref[...]).astype(out_ref.dtype)


# ---------------------------------------------------------------------------
# Host-side weight / constant preparation (tiny one-time XLA + numpy work)
# ---------------------------------------------------------------------------
def _banded_conv_mats(w_oihw, in_w, out_w):
    """B[i][u*Cin + ci, w*Cout + co] = w[co, ci, i, u - w] for 0 <= u-w < KW."""
    cout, cin, kh, kw = w_oihw.shape
    place = np.zeros((kw, in_w, out_w), np.float32)        # place[j,u,w] = [u == w+j]
    for j in range(kw):
        place[j, np.arange(out_w) + j, np.arange(out_w)] = 1.0
    b = jnp.einsum("juw,ocij->iucwo", jnp.asarray(place), w_oihw)
    return b.reshape(kh, in_w * cin, out_w * cout)


def _pool_mats(h_out, w_out, chans, tb, lane_pad):
    """0/1 selection matrices for a 2x2 stride-2 max pool in (h*tb+b, w*C+c) layout."""
    she = np.zeros((h_out * tb, 2 * h_out * tb), np.float32)
    sho = np.zeros_like(she)
    r = np.arange(h_out * tb)
    hp, b = r // tb, r % tb
    she[r, (2 * hp) * tb + b] = 1.0
    sho[r, (2 * hp + 1) * tb + b] = 1.0
    swe = np.zeros((2 * w_out * chans, lane_pad), np.float32)
    swo = np.zeros_like(swe)
    c = np.arange(w_out * chans)
    wp, cc = c // chans, c % chans
    swe[(2 * wp) * chans + cc, c] = 1.0
    swo[(2 * wp + 1) * chans + cc, c] = 1.0
    return she, sho, swe, swo


def _prepare(params, x_nchw, tb):
    eps = 1e-5
    B = x_nchw.shape[0]
    assert x_nchw.shape[1:] == (1, 28, 28), "expects MNIST-shaped NCHW input"
    g = -(-B // tb)
    b_pad = g * tb

    # Input: NCHW -> conv1-padded, batch-tiled, rows = (tile, h, b), lanes = w.
    x = x_nchw[:, 0, :, :]
    x = jnp.pad(x, ((0, b_pad - B), (2, 2), (2, 2)))                   # (b_pad, 32, 32)
    x2d = x.reshape(g, tb, 32, 32).transpose(0, 2, 1, 3).reshape(g * 32 * tb, 32)

    # conv1 + BatchNorm2d folded (eval: running_mean=0, running_var=1).
    scale1 = params["bn1_gamma"] / jnp.sqrt(1.0 + eps)
    w1s = params["conv1_w"] * scale1[:, None, None, None]
    b1 = _banded_conv_mats(w1s, 32, 28).astype(jnp.bfloat16)           # (5, 32, 168)
    shift1 = jnp.tile(params["conv1_b"] * scale1 + params["bn1_beta"], 28)
    shift1 = shift1.reshape(1, 28 * C1)

    s1he, s1ho, s1we, s1wo = _pool_mats(14, 14, C1, tb, 128)

    b2 = _banded_conv_mats(params["conv2_w"], 14, 10)                  # (5, 84, 160)
    b2 = jnp.pad(b2, ((0, 0), (0, 128 - 14 * C1), (0, 0))).astype(jnp.bfloat16)
    bias2 = jnp.tile(params["conv2_b"], 10).reshape(1, 10 * C2)

    s2he, s2ho, s2we, s2wo = _pool_mats(5, 5, C2, tb, 5 * C2)

    # fc1 rows permuted from PyTorch flatten order (c*25+h*5+w) to (h*80+w*16+c).
    wfc1 = params["fc1_w"].reshape(C2, 5, 5, 120).transpose(1, 2, 0, 3)
    wfc1 = wfc1.reshape(400, 120).astype(jnp.bfloat16)
    bfc1 = params["fc1_b"].reshape(1, 120)

    scale2 = params["bn2_gamma"] / jnp.sqrt(1.0 + eps)
    wfc2 = (params["fc2_w"] * scale2[None, :]).astype(jnp.bfloat16)
    shift2 = (params["fc2_b"] * scale2 + params["bn2_beta"]).reshape(1, 84)

    wfc3 = jnp.pad(params["fc3_w"], ((0, 0), (0, 118))).astype(jnp.bfloat16)
    bfc3 = jnp.pad(params["fc3_b"], (0, 118)).reshape(1, 128)

    consts = (b1, shift1, s1he, s1ho, s1we, s1wo, b2, bias2,
              s2he, s2ho, s2we, s2wo, wfc1, bfc1, wfc2, shift2, wfc3, bfc3)
    return x2d, consts, g


# ---------------------------------------------------------------------------
# Forward pass: one pallas_call, grid over batch tiles.
# ---------------------------------------------------------------------------
def lenet_forward(params, x_nchw, tb=TB):
    assert tb % 8 == 0
    B = x_nchw.shape[0]
    x2d, consts, g = _prepare(params, x_nchw, tb)

    def _const_spec(arr):
        nd = arr.ndim
        return pl.BlockSpec(tuple(arr.shape), lambda i, _nd=nd: (0,) * _nd)

    out = pl.pallas_call(
        functools.partial(_lenet_kernel, tb=tb),
        out_shape=jax.ShapeDtypeStruct((g * tb, 128), jnp.float32),
        grid=(g,),
        in_specs=[pl.BlockSpec((32 * tb, 32), lambda i: (i, 0))]
                 + [_const_spec(a) for a in consts],
        out_specs=pl.BlockSpec((tb, 128), lambda i: (i, 0)),
        compiler_params=pltpu.CompilerParams(
            dimension_semantics=("parallel",),
            vmem_limit_bytes=32 * 1024 * 1024,
        ),
    )(x2d, *consts)
    return out[:B, :10]


# ---------------------------------------------------------------------------
# Pure-JAX reference (eval-mode semantics), for correctness verification.
# ---------------------------------------------------------------------------
def lenet_reference(params, x_nchw):
    eps = 1e-5
    y = jax.lax.conv_general_dilated(
        x_nchw, params["conv1_w"], (1, 1), ((2, 2), (2, 2)),
        dimension_numbers=("NCHW", "OIHW", "NCHW"))
    y = y + params["conv1_b"][None, :, None, None]
    scale1 = params["bn1_gamma"] / jnp.sqrt(1.0 + eps)
    y = y * scale1[None, :, None, None] + params["bn1_beta"][None, :, None, None]
    y = jax.nn.sigmoid(y)
    y = jax.lax.reduce_window(y, -jnp.inf, jax.lax.max,
                              (1, 1, 2, 2), (1, 1, 2, 2), "VALID")
    y = jax.lax.conv_general_dilated(
        y, params["conv2_w"], (1, 1), "VALID",
        dimension_numbers=("NCHW", "OIHW", "NCHW"))
    y = y + params["conv2_b"][None, :, None, None]
    y = jax.lax.reduce_window(y, -jnp.inf, jax.lax.max,
                              (1, 1, 2, 2), (1, 1, 2, 2), "VALID")
    y = y.reshape(x_nchw.shape[0], 16 * 5 * 5)              # Flatten; Dropout = id
    y = jnp.maximum(y @ params["fc1_w"] + params["fc1_b"], 0.0)
    y = y @ params["fc2_w"] + params["fc2_b"]
    scale2 = params["bn2_gamma"] / jnp.sqrt(1.0 + eps)
    y = jax.nn.sigmoid(y * scale2 + params["bn2_beta"])
    return y @ params["fc3_w"] + params["fc3_b"]


# ---------------------------------------------------------------------------
# Deterministic parameter initialization (synthetic, no checkpoint)
# ---------------------------------------------------------------------------
def init_params(key):
    ks = jax.random.split(key, 16)
    p = {}
    p["conv1_w"] = 0.1 * jax.random.normal(ks[0], (6, 1, 5, 5), jnp.float32)
    p["conv1_b"] = 0.1 * jax.random.normal(ks[1], (6,), jnp.float32)
    p["bn1_gamma"] = 1.0 + 0.1 * jax.random.normal(ks[2], (6,), jnp.float32)
    p["bn1_beta"] = 0.1 * jax.random.normal(ks[3], (6,), jnp.float32)
    p["conv2_w"] = 0.1 * jax.random.normal(ks[4], (16, 6, 5, 5), jnp.float32)
    p["conv2_b"] = 0.1 * jax.random.normal(ks[5], (16,), jnp.float32)
    p["fc1_w"] = 0.05 * jax.random.normal(ks[6], (400, 120), jnp.float32)
    p["fc1_b"] = 0.05 * jax.random.normal(ks[7], (120,), jnp.float32)
    p["fc2_w"] = 0.05 * jax.random.normal(ks[8], (120, 84), jnp.float32)
    p["fc2_b"] = 0.05 * jax.random.normal(ks[9], (84,), jnp.float32)
    p["bn2_gamma"] = 1.0 + 0.1 * jax.random.normal(ks[10], (84,), jnp.float32)
    p["bn2_beta"] = 0.1 * jax.random.normal(ks[11], (84,), jnp.float32)
    p["fc3_w"] = 0.05 * jax.random.normal(ks[12], (84, 10), jnp.float32)
    p["fc3_b"] = 0.05 * jax.random.normal(ks[13], (10,), jnp.float32)
    return p


if __name__ == "__main__":
    key = jax.random.PRNGKey(0)
    k_params, k_input = jax.random.split(key)
    params = init_params(k_params)
    # MNIST-shaped input (spatial size 28 is required by the 16*5*5 flatten).
    x = jax.random.normal(k_input, (2, 1, 28, 28), jnp.float32)

    logits = jax.jit(lenet_forward)(params, x)
    jax.block_until_ready(logits)
    assert logits.shape == (2, 10) and logits.dtype == jnp.float32

    ref = jax.jit(lenet_reference)(params, x)
    err = float(jnp.max(jnp.abs(logits - ref)))
    assert err < 0.1, f"kernel/reference mismatch: max abs err = {err}"

    print("KERNEL_OK")
</pallas_src>

<mosaic_0001>
module attributes {stable_mosaic.version = 11 : i64} {
  func.func @_lenet_kernel(%arg0: i32, %arg1: memref<256x32xf32, #tpu.memory_space<vmem>>, %arg2: memref<5x32x168xbf16, #tpu.memory_space<vmem>>, %arg3: memref<1x168xf32, #tpu.memory_space<vmem>>, %arg4: memref<112x224xf32, #tpu.memory_space<vmem>>, %arg5: memref<112x224xf32, #tpu.memory_space<vmem>>, %arg6: memref<168x128xf32, #tpu.memory_space<vmem>>, %arg7: memref<168x128xf32, #tpu.memory_space<vmem>>, %arg8: memref<5x128x160xbf16, #tpu.memory_space<vmem>>, %arg9: memref<1x160xf32, #tpu.memory_space<vmem>>, %arg10: memref<40x80xf32, #tpu.memory_space<vmem>>, %arg11: memref<40x80xf32, #tpu.memory_space<vmem>>, %arg12: memref<160x80xf32, #tpu.memory_space<vmem>>, %arg13: memref<160x80xf32, #tpu.memory_space<vmem>>, %arg14: memref<400x120xbf16, #tpu.memory_space<vmem>>, %arg15: memref<1x120xf32, #tpu.memory_space<vmem>>, %arg16: memref<120x84xbf16, #tpu.memory_space<vmem>>, %arg17: memref<1x84xf32, #tpu.memory_space<vmem>>, %arg18: memref<84x128xbf16, #tpu.memory_space<vmem>>, %arg19: memref<1x128xf32, #tpu.memory_space<vmem>>, %arg20: memref<8x128xf32, #tpu.memory_space<vmem>>) attributes {dimension_semantics = [#tpu.dimension_semantics<parallel>], iteration_bounds = array<i64: 1>, scalar_prefetch = 0 : i64, scratch_operands = 0 : i64, tpu.core_type = #tpu.core_type<tc>, window_params = [{transform_indices = @transform_0, window_bounds = array<i64: 256, 32>}, {pipeline_mode = #tpu.pipeline_mode<synchronous>, transform_indices = @transform_1, window_bounds = array<i64: 5, 32, 168>}, {pipeline_mode = #tpu.pipeline_mode<synchronous>, transform_indices = @transform_2, window_bounds = array<i64: 1, 168>}, {pipeline_mode = #tpu.pipeline_mode<synchronous>, transform_indices = @transform_3, window_bounds = array<i64: 112, 224>}, {pipeline_mode = #tpu.pipeline_mode<synchronous>, transform_indices = @transform_4, window_bounds = array<i64: 112, 224>}, {pipeline_mode = #tpu.pipeline_mode<synchronous>, transform_indices = @transform_5, window_bounds = array<i64: 168, 128>}, {pipeline_mode = #tpu.pipeline_mode<synchronous>, transform_indices = @transform_6, window_bounds = array<i64: 168, 128>}, {pipeline_mode = #tpu.pipeline_mode<synchronous>, transform_indices = @transform_7, window_bounds = array<i64: 5, 128, 160>}, {pipeline_mode = #tpu.pipeline_mode<synchronous>, transform_indices = @transform_8, window_bounds = array<i64: 1, 160>}, {pipeline_mode = #tpu.pipeline_mode<synchronous>, transform_indices = @transform_9, window_bounds = array<i64: 40, 80>}, {pipeline_mode = #tpu.pipeline_mode<synchronous>, transform_indices = @transform_10, window_bounds = array<i64: 40, 80>}, {pipeline_mode = #tpu.pipeline_mode<synchronous>, transform_indices = @transform_11, window_bounds = array<i64: 160, 80>}, {pipeline_mode = #tpu.pipeline_mode<synchronous>, transform_indices = @transform_12, window_bounds = array<i64: 160, 80>}, {pipeline_mode = #tpu.pipeline_mode<synchronous>, transform_indices = @transform_13, window_bounds = array<i64: 400, 120>}, {pipeline_mode = #tpu.pipeline_mode<synchronous>, transform_indices = @transform_14, window_bounds = array<i64: 1, 120>}, {pipeline_mode = #tpu.pipeline_mode<synchronous>, transform_indices = @transform_15, window_bounds = array<i64: 120, 84>}, {pipeline_mode = #tpu.pipeline_mode<synchronous>, transform_indices = @transform_16, window_bounds = array<i64: 1, 84>}, {pipeline_mode = #tpu.pipeline_mode<synchronous>, transform_indices = @transform_17, window_bounds = array<i64: 84, 128>}, {pipeline_mode = #tpu.pipeline_mode<synchronous>, transform_indices = @transform_18, window_bounds = array<i64: 1, 128>}, {transform_indices = @transform_19, window_bounds = array<i64: 8, 128>}]} {
    %c0 = arith.constant 0 : index
    %c0_0 = arith.constant 0 : index
    %0 = vector.load %arg1[%c0, %c0_0] : memref<256x32xf32, #tpu.memory_space<vmem>>, vector<256x32xf32>
    %cst = arith.constant 0.000000e+00 : f32
    %1 = vector.broadcast %cst : f32 to vector<224x168xf32>
    %2 = vector.extract_strided_slice %0 {offsets = [0, 0], sizes = [224, 32], strides = [1, 1]} : vector<256x32xf32> to vector<224x32xf32>
    %3 = arith.truncf %2 : vector<224x32xf32> to vector<224x32xbf16>
    %c0_1 = arith.constant 0 : index
    %c0_2 = arith.constant 0 : index
    %c0_3 = arith.constant 0 : index
    %4 = vector.load %arg2[%c0_1, %c0_2, %c0_3] : memref<5x32x168xbf16, #tpu.memory_space<vmem>>, vector<1x32x168xbf16>
    %5 = vector.shape_cast %4 : vector<1x32x168xbf16> to vector<32x168xbf16>
    %cst_4 = arith.constant dense<0.000000e+00> : vector<224x168xf32>
    %6 = tpu.matmul %3, %5, %cst_4 {dimension_numbers = #tpu.dot_dimension_numbers<[1], [0], [0], [1], [0, 0, 1, 1], [], []>} : vector<224x32xbf16>, vector<32x168xbf16>, vector<224x168xf32> -> vector<224x168xf32>
    %7 = arith.addf %1, %6 : vector<224x168xf32>
    %8 = vector.extract_strided_slice %0 {offsets = [8, 0], sizes = [224, 32], strides = [1, 1]} : vector<256x32xf32> to vector<224x32xf32>
    %9 = arith.truncf %8 : vector<224x32xf32> to vector<224x32xbf16>
    %c1 = arith.constant 1 : index
    %c0_5 = arith.constant 0 : index
    %c0_6 = arith.constant 0 : index
    %10 = vector.load %arg2[%c1, %c0_5, %c0_6] : memref<5x32x168xbf16, #tpu.memory_space<vmem>>, vector<1x32x168xbf16>
    %11 = vector.shape_cast %10 : vector<1x32x168xbf16> to vector<32x168xbf16>
    %cst_7 = arith.constant dense<0.000000e+00> : vector<224x168xf32>
    %12 = tpu.matmul %9, %11, %cst_7 {dimension_numbers = #tpu.dot_dimension_numbers<[1], [0], [0], [1], [0, 0, 1, 1], [], []>} : vector<224x32xbf16>, vector<32x168xbf16>, vector<224x168xf32> -> vector<224x168xf32>
    %13 = arith.addf %7, %12 : vector<224x168xf32>
    %14 = vector.extract_strided_slice %0 {offsets = [16, 0], sizes = [224, 32], strides = [1, 1]} : vector<256x32xf32> to vector<224x32xf32>
    %15 = arith.truncf %14 : vector<224x32xf32> to vector<224x32xbf16>
    %c2 = arith.constant 2 : index
    %c0_8 = arith.constant 0 : index
    %c0_9 = arith.constant 0 : index
    %16 = vector.load %arg2[%c2, %c0_8, %c0_9] : memref<5x32x168xbf16, #tpu.memory_space<vmem>>, vector<1x32x168xbf16>
    %17 = vector.shape_cast %16 : vector<1x32x168xbf16> to vector<32x168xbf16>
    %cst_10 = arith.constant dense<0.000000e+00> : vector<224x168xf32>
    %18 = tpu.matmul %15, %17, %cst_10 {dimension_numbers = #tpu.dot_dimension_numbers<[1], [0], [0], [1], [0, 0, 1, 1], [], []>} : vector<224x32xbf16>, vector<32x168xbf16>, vector<224x168xf32> -> vector<224x168xf32>
    %19 = arith.addf %13, %18 : vector<224x168xf32>
    %20 = vector.extract_strided_slice %0 {offsets = [24, 0], sizes = [224, 32], strides = [1, 1]} : vector<256x32xf32> to vector<224x32xf32>
    %21 = arith.truncf %20 : vector<224x32xf32> to vector<224x32xbf16>
    %c3 = arith.constant 3 : index
    %c0_11 = arith.constant 0 : index
    %c0_12 = arith.constant 0 : index
    %22 = vector.load %arg2[%c3, %c0_11, %c0_12] : memref<5x32x168xbf16, #tpu.memory_space<vmem>>, vector<1x32x168xbf16>
    %23 = vector.shape_cast %22 : vector<1x32x168xbf16> to vector<32x168xbf16>
    %cst_13 = arith.constant dense<0.000000e+00> : vector<224x168xf32>
    %24 = tpu.matmul %21, %23, %cst_13 {dimension_numbers = #tpu.dot_dimension_numbers<[1], [0], [0], [1], [0, 0, 1, 1], [], []>} : vector<224x32xbf16>, vector<32x168xbf16>, vector<224x168xf32> -> vector<224x168xf32>
    %25 = arith.addf %19, %24 : vector<224x168xf32>
    %26 = vector.extract_strided_slice %0 {offsets = [32, 0], sizes = [224, 32], strides = [1, 1]} : vector<256x32xf32> to vector<224x32xf32>
    %27 = arith.truncf %26 : vector<224x32xf32> to vector<224x32xbf16>
    %c4 = arith.constant 4 : index
    %c0_14 = arith.constant 0 : index
    %c0_15 = arith.constant 0 : index
    %28 = vector.load %arg2[%c4, %c0_14, %c0_15] : memref<5x32x168xbf16, #tpu.memory_space<vmem>>, vector<1x32x168xbf16>
    %29 = vector.shape_cast %28 : vector<1x32x168xbf16> to vector<32x168xbf16>
    %cst_16 = arith.constant dense<0.000000e+00> : vector<224x168xf32>
    %30 = tpu.matmul %27, %29, %cst_16 {dimension_numbers = #tpu.dot_dimension_numbers<[1], [0], [0], [1], [0, 0, 1, 1], [], []>} : vector<224x32xbf16>, vector<32x168xbf16>, vector<224x168xf32> -> vector<224x168xf32>
    %31 = arith.addf %25, %30 : vector<224x168xf32>
    %c0_17 = arith.constant 0 : index
    %c0_18 = arith.constant 0 : index
    %32 = vector.load %arg3[%c0_17, %c0_18] : memref<1x168xf32, #tpu.memory_space<vmem>>, vector<1x168xf32>
    %33 = vector.broadcast %32 : vector<1x168xf32> to vector<224x168xf32>
    %34 = arith.addf %31, %33 : vector<224x168xf32>
    %35 = arith.negf %34 : vector<224x168xf32>
    %36 = math.exp %35 : vector<224x168xf32>
    %cst_19 = arith.constant 1.000000e+00 : f32
    %37 = vector.broadcast %cst_19 : f32 to vector<224x168xf32>
    %38 = arith.addf %37, %36 : vector<224x168xf32>
    %39 = arith.divf %37, %38 : vector<224x168xf32>
    %c0_20 = arith.constant 0 : index
    %c0_21 = arith.constant 0 : index
    %40 = vector.load %arg4[%c0_20, %c0_21] : memref<112x224xf32, #tpu.memory_space<vmem>>, vector<112x224xf32>
    %cst_22 = arith.constant dense<0.000000e+00> : vector<112x168xf32>
    %41 = tpu.matmul %40, %39, %cst_22 {dimension_numbers = #tpu.dot_dimension_numbers<[1], [0], [0], [1], [0, 0, 1, 1], [], []>} : vector<112x224xf32>, vector<224x168xf32>, vector<112x168xf32> -> vector<112x168xf32>
    %c0_23 = arith.constant 0 : index
    %c0_24 = arith.constant 0 : index
    %42 = vector.load %arg5[%c0_23, %c0_24] : memref<112x224xf32, #tpu.memory_space<vmem>>, vector<112x224xf32>
    %cst_25 = arith.constant dense<0.000000e+00> : vector<112x168xf32>
    %43 = tpu.matmul %42, %39, %cst_25 {dimension_numbers = #tpu.dot_dimension_numbers<[1], [0], [0], [1], [0, 0, 1, 1], [], []>} : vector<112x224xf32>, vector<224x168xf32>, vector<112x168xf32> -> vector<112x168xf32>
    %44 = arith.maximumf %41, %43 : vector<112x168xf32>
    %c0_26 = arith.constant 0 : index
    %c0_27 = arith.constant 0 : index
    %45 = vector.load %arg6[%c0_26, %c0_27] : memref<168x128xf32, #tpu.memory_space<vmem>>, vector<168x128xf32>
    %cst_28 = arith.constant dense<0.000000e+00> : vector<112x128xf32>
    %46 = tpu.matmul %44, %45, %cst_28 {dimension_numbers = #tpu.dot_dimension_numbers<[1], [0], [0], [1], [0, 0, 1, 1], [], []>} : vector<112x168xf32>, vector<168x128xf32>, vector<112x128xf32> -> vector<112x128xf32>
    %c0_29 = arith.constant 0 : index
    %c0_30 = arith.constant 0 : index
    %47 = vector.load %arg7[%c0_29, %c0_30] : memref<168x128xf32, #tpu.memory_space<vmem>>, vector<168x128xf32>
    %cst_31 = arith.constant dense<0.000000e+00> : vector<112x128xf32>
    %48 = tpu.matmul %44, %47, %cst_31 {dimension_numbers = #tpu.dot_dimension_numbers<[1], [0], [0], [1], [0, 0, 1, 1], [], []>} : vector<112x168xf32>, vector<168x128xf32>, vector<112x128xf32> -> vector<112x128xf32>
    %49 = arith.maximumf %46, %48 : vector<112x128xf32>
    %cst_32 = arith.constant 0.000000e+00 : f32
    %50 = vector.broadcast %cst_32 : f32 to vector<80x160xf32>
    %51 = vector.extract_strided_slice %49 {offsets = [0, 0], sizes = [80, 128], strides = [1, 1]} : vector<112x128xf32> to vector<80x128xf32>
    %52 = arith.truncf %51 : vector<80x128xf32> to vector<80x128xbf16>
    %c0_33 = arith.constant 0 : index
    %c0_34 = arith.constant 0 : index
    %c0_35 = arith.constant 0 : index
    %53 = vector.load %arg8[%c0_33, %c0_34, %c0_35] : memref<5x128x160xbf16, #tpu.memory_space<vmem>>, vector<1x128x160xbf16>
    %54 = vector.shape_cast %53 : vector<1x128x160xbf16> to vector<128x160xbf16>
    %cst_36 = arith.constant dense<0.000000e+00> : vector<80x160xf32>
    %55 = tpu.matmul %52, %54, %cst_36 {dimension_numbers = #tpu.dot_dimension_numbers<[1], [0], [0], [1], [0, 0, 1, 1], [], []>} : vector<80x128xbf16>, vector<128x160xbf16>, vector<80x160xf32> -> vector<80x160xf32>
    %56 = arith.addf %50, %55 : vector<80x160xf32>
    %57 = vector.extract_strided_slice %49 {offsets = [8, 0], sizes = [80, 128], strides = [1, 1]} : vector<112x128xf32> to vector<80x128xf32>
    %58 = arith.truncf %57 : vector<80x128xf32> to vector<80x128xbf16>
    %c1_37 = arith.constant 1 : index
    %c0_38 = arith.constant 0 : index
    %c0_39 = arith.constant 0 : index
    %59 = vector.load %arg8[%c1_37, %c0_38, %c0_39] : memref<5x128x160xbf16, #tpu.memory_space<vmem>>, vector<1x128x160xbf16>
    %60 = vector.shape_cast %59 : vector<1x128x160xbf16> to vector<128x160xbf16>
    %cst_40 = arith.constant dense<0.000000e+00> : vector<80x160xf32>
    %61 = tpu.matmul %58, %60, %cst_40 {dimension_numbers = #tpu.dot_dimension_numbers<[1], [0], [0], [1], [0, 0, 1, 1], [], []>} : vector<80x128xbf16>, vector<128x160xbf16>, vector<80x160xf32> -> vector<80x160xf32>
    %62 = arith.addf %56, %61 : vector<80x160xf32>
    %63 = vector.extract_strided_slice %49 {offsets = [16, 0], sizes = [80, 128], strides = [1, 1]} : vector<112x128xf32> to vector<80x128xf32>
    %64 = arith.truncf %63 : vector<80x128xf32> to vector<80x128xbf16>
    %c2_41 = arith.constant 2 : index
    %c0_42 = arith.constant 0 : index
    %c0_43 = arith.constant 0 : index
    %65 = vector.load %arg8[%c2_41, %c0_42, %c0_43] : memref<5x128x160xbf16, #tpu.memory_space<vmem>>, vector<1x128x160xbf16>
    %66 = vector.shape_cast %65 : vector<1x128x160xbf16> to vector<128x160xbf16>
    %cst_44 = arith.constant dense<0.000000e+00> : vector<80x160xf32>
    %67 = tpu.matmul %64, %66, %cst_44 {dimension_numbers = #tpu.dot_dimension_numbers<[1], [0], [0], [1], [0, 0, 1, 1], [], []>} : vector<80x128xbf16>, vector<128x160xbf16>, vector<80x160xf32> -> vector<80x160xf32>
    %68 = arith.addf %62, %67 : vector<80x160xf32>
    %69 = vector.extract_strided_slice %49 {offsets = [24, 0], sizes = [80, 128], strides = [1, 1]} : vector<112x128xf32> to vector<80x128xf32>
    %70 = arith.truncf %69 : vector<80x128xf32> to vector<80x128xbf16>
    %c3_45 = arith.constant 3 : index
    %c0_46 = arith.constant 0 : index
    %c0_47 = arith.constant 0 : index
    %71 = vector.load %arg8[%c3_45, %c0_46, %c0_47] : memref<5x128x160xbf16, #tpu.memory_space<vmem>>, vector<1x128x160xbf16>
    %72 = vector.shape_cast %71 : vector<1x128x160xbf16> to vector<128x160xbf16>
    %cst_48 = arith.constant dense<0.000000e+00> : vector<80x160xf32>
    %73 = tpu.matmul %70, %72, %cst_48 {dimension_numbers = #tpu.dot_dimension_numbers<[1], [0], [0], [1], [0, 0, 1, 1], [], []>} : vector<80x128xbf16>, vector<128x160xbf16>, vector<80x160xf32> -> vector<80x160xf32>
    %74 = arith.addf %68, %73 : vector<80x160xf32>
    %75 = vector.extract_strided_slice %49 {offsets = [32, 0], sizes = [80, 128], strides = [1, 1]} : vector<112x128xf32> to vector<80x128xf32>
    %76 = arith.truncf %75 : vector<80x128xf32> to vector<80x128xbf16>
    %c4_49 = arith.constant 4 : index
    %c0_50 = arith.constant 0 : index
    %c0_51 = arith.constant 0 : index
    %77 = vector.load %arg8[%c4_49, %c0_50, %c0_51] : memref<5x128x160xbf16, #tpu.memory_space<vmem>>, vector<1x128x160xbf16>
    %78 = vector.shape_cast %77 : vector<1x128x160xbf16> to vector<128x160xbf16>
    %cst_52 = arith.constant dense<0.000000e+00> : vector<80x160xf32>
    %79 = tpu.matmul %76, %78, %cst_52 {dimension_numbers = #tpu.dot_dimension_numbers<[1], [0], [0], [1], [0, 0, 1, 1], [], []>} : vector<80x128xbf16>, vector<128x160xbf16>, vector<80x160xf32> -> vector<80x160xf32>
    %80 = arith.addf %74, %79 : vector<80x160xf32>
    %c0_53 = arith.constant 0 : index
    %c0_54 = arith.constant 0 : index
    %81 = vector.load %arg9[%c0_53, %c0_54] : memref<1x160xf32, #tpu.memory_space<vmem>>, vector<1x160xf32>
    %82 = vector.broadcast %81 : vector<1x160xf32> to vector<80x160xf32>
    %83 = arith.addf %80, %82 : vector<80x160xf32>
    %c0_55 = arith.constant 0 : index
    %c0_56 = arith.constant 0 : index
    %84 = vector.load %arg10[%c0_55, %c0_56] : memref<40x80xf32, #tpu.memory_space<vmem>>, vector<40x80xf32>
    %cst_57 = arith.constant dense<0.000000e+00> : vector<40x160xf32>
    %85 = tpu.matmul %84, %83, %cst_57 {dimension_numbers = #tpu.dot_dimension_numbers<[1], [0], [0], [1], [0, 0, 1, 1], [], []>} : vector<40x80xf32>, vector<80x160xf32>, vector<40x160xf32> -> vector<40x160xf32>
    %c0_58 = arith.constant 0 : index
    %c0_59 = arith.constant 0 : index
    %86 = vector.load %arg11[%c0_58, %c0_59] : memref<40x80xf32, #tpu.memory_space<vmem>>, vector<40x80xf32>
    %cst_60 = arith.constant dense<0.000000e+00> : vector<40x160xf32>
    %87 = tpu.matmul %86, %83, %cst_60 {dimension_numbers = #tpu.dot_dimension_numbers<[1], [0], [0], [1], [0, 0, 1, 1], [], []>} : vector<40x80xf32>, vector<80x160xf32>, vector<40x160xf32> -> vector<40x160xf32>
    %88 = arith.maximumf %85, %87 : vector<40x160xf32>
    %c0_61 = arith.constant 0 : index
    %c0_62 = arith.constant 0 : index
    %89 = vector.load %arg12[%c0_61, %c0_62] : memref<160x80xf32, #tpu.memory_space<vmem>>, vector<160x80xf32>
    %cst_63 = arith.constant dense<0.000000e+00> : vector<40x80xf32>
    %90 = tpu.matmul %88, %89, %cst_63 {dimension_numbers = #tpu.dot_dimension_numbers<[1], [0], [0], [1], [0, 0, 1, 1], [], []>} : vector<40x160xf32>, vector<160x80xf32>, vector<40x80xf32> -> vector<40x80xf32>
    %c0_64 = arith.constant 0 : index
    %c0_65 = arith.constant 0 : index
    %91 = vector.load %arg13[%c0_64, %c0_65] : memref<160x80xf32, #tpu.memory_space<vmem>>, vector<160x80xf32>
    %cst_66 = arith.constant dense<0.000000e+00> : vector<40x80xf32>
    %92 = tpu.matmul %88, %91, %cst_66 {dimension_numbers = #tpu.dot_dimension_numbers<[1], [0], [0], [1], [0, 0, 1, 1], [], []>} : vector<40x160xf32>, vector<160x80xf32>, vector<40x80xf32> -> vector<40x80xf32>
    %93 = arith.maximumf %90, %92 : vector<40x80xf32>
    %c0_67 = arith.constant 0 : index
    %c0_68 = arith.constant 0 : index
    %94 = vector.load %arg14[%c0_67, %c0_68] : memref<400x120xbf16, #tpu.memory_space<vmem>>, vector<400x120xbf16>
    %cst_69 = arith.constant 0.000000e+00 : f32
    %95 = vector.broadcast %cst_69 : f32 to vector<8x120xf32>
    %96 = vector.extract_strided_slice %93 {offsets = [0, 0], sizes = [8, 80], strides = [1, 1]} : vector<40x80xf32> to vector<8x80xf32>
    %97 = arith.truncf %96 : vector<8x80xf32> to vector<8x80xbf16>
    %98 = vector.extract_strided_slice %94 {offsets = [0, 0], sizes = [80, 120], strides = [1, 1]} : vector<400x120xbf16> to vector<80x120xbf16>
    %cst_70 = arith.constant dense<0.000000e+00> : vector<8x120xf32>
    %99 = tpu.matmul %97, %98, %cst_70 {dimension_numbers = #tpu.dot_dimension_numbers<[1], [0], [0], [1], [0, 0, 1, 1], [], []>} : vector<8x80xbf16>, vector<80x120xbf16>, vector<8x120xf32> -> vector<8x120xf32>
    %100 = arith.addf %95, %99 : vector<8x120xf32>
    %101 = vector.extract_strided_slice %93 {offsets = [8, 0], sizes = [8, 80], strides = [1, 1]} : vector<40x80xf32> to vector<8x80xf32>
    %102 = arith.truncf %101 : vector<8x80xf32> to vector<8x80xbf16>
    %103 = vector.extract_strided_slice %94 {offsets = [80, 0], sizes = [80, 120], strides = [1, 1]} : vector<400x120xbf16> to vector<80x120xbf16>
    %cst_71 = arith.constant dense<0.000000e+00> : vector<8x120xf32>
    %104 = tpu.matmul %102, %103, %cst_71 {dimension_numbers = #tpu.dot_dimension_numbers<[1], [0], [0], [1], [0, 0, 1, 1], [], []>} : vector<8x80xbf16>, vector<80x120xbf16>, vector<8x120xf32> -> vector<8x120xf32>
    %105 = arith.addf %100, %104 : vector<8x120xf32>
    %106 = vector.extract_strided_slice %93 {offsets = [16, 0], sizes = [8, 80], strides = [1, 1]} : vector<40x80xf32> to vector<8x80xf32>
    %107 = arith.truncf %106 : vector<8x80xf32> to vector<8x80xbf16>
    %108 = vector.extract_strided_slice %94 {offsets = [160, 0], sizes = [80, 120], strides = [1, 1]} : vector<400x120xbf16> to vector<80x120xbf16>
    %cst_72 = arith.constant dense<0.000000e+00> : vector<8x120xf32>
    %109 = tpu.matmul %107, %108, %cst_72 {dimension_numbers = #tpu.dot_dimension_numbers<[1], [0], [0], [1], [0, 0, 1, 1], [], []>} : vector<8x80xbf16>, vector<80x120xbf16>, vector<8x120xf32> -> vector<8x120xf32>
    %110 = arith.addf %105, %109 : vector<8x120xf32>
    %111 = vector.extract_strided_slice %93 {offsets = [24, 0], sizes = [8, 80], strides = [1, 1]} : vector<40x80xf32> to vector<8x80xf32>
    %112 = arith.truncf %111 : vector<8x80xf32> to vector<8x80xbf16>
    %113 = vector.extract_strided_slice %94 {offsets = [240, 0], sizes = [80, 120], strides = [1, 1]} : vector<400x120xbf16> to vector<80x120xbf16>
    %cst_73 = arith.constant dense<0.000000e+00> : vector<8x120xf32>
    %114 = tpu.matmul %112, %113, %cst_73 {dimension_numbers = #tpu.dot_dimension_numbers<[1], [0], [0], [1], [0, 0, 1, 1], [], []>} : vector<8x80xbf16>, vector<80x120xbf16>, vector<8x120xf32> -> vector<8x120xf32>
    %115 = arith.addf %110, %114 : vector<8x120xf32>
    %116 = vector.extract_strided_slice %93 {offsets = [32, 0], sizes = [8, 80], strides = [1, 1]} : vector<40x80xf32> to vector<8x80xf32>
    %117 = arith.truncf %116 : vector<8x80xf32> to vector<8x80xbf16>
    %118 = vector.extract_strided_slice %94 {offsets = [320, 0], sizes = [80, 120], strides = [1, 1]} : vector<400x120xbf16> to vector<80x120xbf16>
    %cst_74 = arith.constant dense<0.000000e+00> : vector<8x120xf32>
    %119 = tpu.matmul %117, %118, %cst_74 {dimension_numbers = #tpu.dot_dimension_numbers<[1], [0], [0], [1], [0, 0, 1, 1], [], []>} : vector<8x80xbf16>, vector<80x120xbf16>, vector<8x120xf32> -> vector<8x120xf32>
    %120 = arith.addf %115, %119 : vector<8x120xf32>
    %c0_75 = arith.constant 0 : index
    %c0_76 = arith.constant 0 : index
    %121 = vector.load %arg15[%c0_75, %c0_76] : memref<1x120xf32, #tpu.memory_space<vmem>>, vector<1x120xf32>
    %122 = vector.broadcast %121 : vector<1x120xf32> to vector<8x120xf32>
    %123 = arith.addf %120, %122 : vector<8x120xf32>
    %cst_77 = arith.constant 0.000000e+00 : f32
    %124 = vector.broadcast %cst_77 : f32 to vector<8x120xf32>
    %125 = arith.maximumf %123, %124 : vector<8x120xf32>
    %126 = arith.truncf %125 : vector<8x120xf32> to vector<8x120xbf16>
    %c0_78 = arith.constant 0 : index
    %c0_79 = arith.constant 0 : index
    %127 = vector.load %arg16[%c0_78, %c0_79] : memref<120x84xbf16, #tpu.memory_space<vmem>>, vector<120x84xbf16>
    %cst_80 = arith.constant dense<0.000000e+00> : vector<8x84xf32>
    %128 = tpu.matmul %126, %127, %cst_80 {dimension_numbers = #tpu.dot_dimension_numbers<[1], [0], [0], [1], [0, 0, 1, 1], [], []>} : vector<8x120xbf16>, vector<120x84xbf16>, vector<8x84xf32> -> vector<8x84xf32>
    %c0_81 = arith.constant 0 : index
    %c0_82 = arith.constant 0 : index
    %129 = vector.load %arg17[%c0_81, %c0_82] : memref<1x84xf32, #tpu.memory_space<vmem>>, vector<1x84xf32>
    %130 = vector.broadcast %129 : vector<1x84xf32> to vector<8x84xf32>
    %131 = arith.addf %128, %130 : vector<8x84xf32>
    %132 = arith.negf %131 : vector<8x84xf32>
    %133 = math.exp %132 : vector<8x84xf32>
    %cst_83 = arith.constant 1.000000e+00 : f32
    %134 = vector.broadcast %cst_83 : f32 to vector<8x84xf32>
    %135 = arith.addf %134, %133 : vector<8x84xf32>
    %136 = arith.divf %134, %135 : vector<8x84xf32>
    %137 = arith.truncf %136 : vector<8x84xf32> to vector<8x84xbf16>
    %c0_84 = arith.constant 0 : index
    %c0_85 = arith.constant 0 : index
    %138 = vector.load %arg18[%c0_84, %c0_85] : memref<84x128xbf16, #tpu.memory_space<vmem>>, vector<84x128xbf16>
    %cst_86 = arith.constant dense<0.000000e+00> : vector<8x128xf32>
    %139 = tpu.matmul %137, %138, %cst_86 {dimension_numbers = #tpu.dot_dimension_numbers<[1], [0], [0], [1], [0, 0, 1, 1], [], []>} : vector<8x84xbf16>, vector<84x128xbf16>, vector<8x128xf32> -> vector<8x128xf32>
    %c0_87 = arith.constant 0 : index
    %c0_88 = arith.constant 0 : index
    %140 = vector.load %arg19[%c0_87, %c0_88] : memref<1x128xf32, #tpu.memory_space<vmem>>, vector<1x128xf32>
    %141 = vector.broadcast %140 : vector<1x128xf32> to vector<8x128xf32>
    %142 = arith.addf %139, %141 : vector<8x128xf32>
    %c0_89 = arith.constant 0 : index
    %c0_90 = arith.constant 0 : index
    %143 = vector.load %arg20[%c0_89, %c0_90] : memref<8x128xf32, #tpu.memory_space<vmem>>, vector<8x128xf32>
    tpu.vector_store %arg20[%c0_89, %c0_90], %142 {strides = array<i32>} : memref<8x128xf32, #tpu.memory_space<vmem>>, vector<8x128xf32>,
    return
  }
  func.func @transform_0(%arg0: i32) -> (i32, i32) {
    %c0_i32 = arith.constant 0 : i32
    %c0_i32_0 = arith.constant 0 : i32
    return %arg0, %c0_i32 : i32, i32
  }
  func.func @transform_1(%arg0: i32) -> (i32, i32, i32) {
    %c0_i32 = arith.constant 0 : i32
    %c0_i32_0 = arith.constant 0 : i32
    %c0_i32_1 = arith.constant 0 : i32
    %c0_i32_2 = arith.constant 0 : i32
    return %c0_i32, %c0_i32_0, %c0_i32_1 : i32, i32, i32
  }
  func.func @transform_2(%arg0: i32) -> (i32, i32) {
    %c0_i32 = arith.constant 0 : i32
    %c0_i32_0 = arith.constant 0 : i32
    %c0_i32_1 = arith.constant 0 : i32
    return %c0_i32, %c0_i32_0 : i32, i32
  }
  func.func @transform_3(%arg0: i32) -> (i32, i32) {
    %c0_i32 = arith.constant 0 : i32
    %c0_i32_0 = arith.constant 0 : i32
    %c0_i32_1 = arith.constant 0 : i32
    return %c0_i32, %c0_i32_0 : i32, i32
  }
  func.func @transform_4(%arg0: i32) -> (i32, i32) {
    %c0_i32 = arith.constant 0 : i32
    %c0_i32_0 = arith.constant 0 : i32
    %c0_i32_1 = arith.constant 0 : i32
    return %c0_i32, %c0_i32_0 : i32, i32
  }
  func.func @transform_5(%arg0: i32) -> (i32, i32) {
    %c0_i32 = arith.constant 0 : i32
    %c0_i32_0 = arith.constant 0 : i32
    %c0_i32_1 = arith.constant 0 : i32
    return %c0_i32, %c0_i32_0 : i32, i32
  }
  func.func @transform_6(%arg0: i32) -> (i32, i32) {
    %c0_i32 = arith.constant 0 : i32
    %c0_i32_0 = arith.constant 0 : i32
    %c0_i32_1 = arith.constant 0 : i32
    return %c0_i32, %c0_i32_0 : i32, i32
  }
  func.func @transform_7(%arg0: i32) -> (i32, i32, i32) {
    %c0_i32 = arith.constant 0 : i32
    %c0_i32_0 = arith.constant 0 : i32
    %c0_i32_1 = arith.constant 0 : i32
    %c0_i32_2 = arith.constant 0 : i32
    return %c0_i32, %c0_i32_0, %c0_i32_1 : i32, i32, i32
  }
  func.func @transform_8(%arg0: i32) -> (i32, i32) {
    %c0_i32 = arith.constant 0 : i32
    %c0_i32_0 = arith.constant 0 : i32
    %c0_i32_1 = arith.constant 0 : i32
    return %c0_i32, %c0_i32_0 : i32, i32
  }
  func.func @transform_9(%arg0: i32) -> (i32, i32) {
    %c0_i32 = arith.constant 0 : i32
    %c0_i32_0 = arith.constant 0 : i32
    %c0_i32_1 = arith.constant 0 : i32
    return %c0_i32, %c0_i32_0 : i32, i32
  }
  func.func @transform_10(%arg0: i32) -> (i32, i32) {
    %c0_i32 = arith.constant 0 : i32
    %c0_i32_0 = arith.constant 0 : i32
    %c0_i32_1 = arith.constant 0 : i32
    return %c0_i32, %c0_i32_0 : i32, i32
  }
  func.func @transform_11(%arg0: i32) -> (i32, i32) {
    %c0_i32 = arith.constant 0 : i32
    %c0_i32_0 = arith.constant 0 : i32
    %c0_i32_1 = arith.constant 0 : i32
    return %c0_i32, %c0_i32_0 : i32, i32
  }
  func.func @transform_12(%arg0: i32) -> (i32, i32) {
    %c0_i32 = arith.constant 0 : i32
    %c0_i32_0 = arith.constant 0 : i32
    %c0_i32_1 = arith.constant 0 : i32
    return %c0_i32, %c0_i32_0 : i32, i32
  }
  func.func @transform_13(%arg0: i32) -> (i32, i32) {
    %c0_i32 = arith.constant 0 : i32
    %c0_i32_0 = arith.constant 0 : i32
    %c0_i32_1 = arith.constant 0 : i32
    return %c0_i32, %c0_i32_0 : i32, i32
  }
  func.func @transform_14(%arg0: i32) -> (i32, i32) {
    %c0_i32 = arith.constant 0 : i32
    %c0_i32_0 = arith.constant 0 : i32
    %c0_i32_1 = arith.constant 0 : i32
    return %c0_i32, %c0_i32_0 : i32, i32
  }
  func.func @transform_15(%arg0: i32) -> (i32, i32) {
    %c0_i32 = arith.constant 0 : i32
    %c0_i32_0 = arith.constant 0 : i32
    %c0_i32_1 = arith.constant 0 : i32
    return %c0_i32, %c0_i32_0 : i32, i32
  }
  func.func @transform_16(%arg0: i32) -> (i32, i32) {
    %c0_i32 = arith.constant 0 : i32
    %c0_i32_0 = arith.constant 0 : i32
    %c0_i32_1 = arith.constant 0 : i32
    return %c0_i32, %c0_i32_0 : i32, i32
  }
  func.func @transform_17(%arg0: i32) -> (i32, i32) {
    %c0_i32 = arith.constant 0 : i32
    %c0_i32_0 = arith.constant 0 : i32
    %c0_i32_1 = arith.constant 0 : i32
    return %c0_i32, %c0_i32_0 : i32, i32
  }
  func.func @transform_18(%arg0: i32) -> (i32, i32) {
    %c0_i32 = arith.constant 0 : i32
    %c0_i32_0 = arith.constant 0 : i32
    %c0_i32_1 = arith.constant 0 : i32
    return %c0_i32, %c0_i32_0 : i32, i32
  }
  func.func @transform_19(%arg0: i32) -> (i32, i32) {
    %c0_i32 = arith.constant 0 : i32
    %c0_i32_0 = arith.constant 0 : i32
    return %arg0, %c0_i32 : i32, i32
  }
}

</mosaic_0001>

<llo_original>
// kernel: tile.13
$region0: #{tile.13}
  #allocation0 [shape = 's32[1]{0}', space=sflag, size = 0x4, scoped, tag = 'scoped memory for tile.13']
  %s0 = inlined_call_operand.vmem [shape: f32[6], index: 0, kind: input, shape index: {}]
  %s1 = inlined_call_operand.vmem [shape: f32[28,6], index: 1, kind: output, shape index: {}]
  // Predicated region
  $region2: #{tile.13} parent=0 // pred_check
    _
  $region3: #{tile.13} parent=0 // pred_check_branch
    %3 = sbr.rel (0) target = $region5
  $region4: #{tile.13} parent=0 // pred_region
    _
  $region5: #{tile.13} parent=0 // pred_fallthru
    _
  %v4 = vld [vmem:[%s0] ss:$0 sm:$0xff]
  %5 = vst [vmem:[%s1] sm:$0xff] %v4
  %s6 = scalar_lea.vmem %s1, 8
  %7 = vst [vmem:[%s6] sm:$0xff] %v4
  %s8 = scalar_lea.vmem %s1, 16
  %9 = vst [vmem:[%s8] sm:$0xff] %v4
  %s10 = scalar_lea.vmem %s1, 24
  %11 = vst [vmem:[%s10] sm:$0xff] %v4

// kernel: tile.14
$region0: #{tile.14}
  %s0 = inlined_call_operand.vmem [shape: f32[28,6], index: 0, kind: input, shape index: {}]
  %s1 = inlined_call_operand.vmem [shape: f32[1,168], index: 1, kind: output, shape index: {}]
  $region1: #{tile.14} parent=0
    #allocation0 [shape = 'u8[8192]{0}', space=vmem, size = 0x2000, scoped, tag = 'scoped mem for output reshape']
    %v2 = vld [vmem:[%s0] sm:$0x1]
    %vm3 = vcmask 48128
    %4 = vst.msk [vmem:[#allocation0] sm:$0x1] %vm3, %v2
    %s5 = scalar_lea.vmem %s0, 21
    %v6 = vld [vmem:[%s5] sm:$0x1]
    %s7 = scalar_lea.vmem %s0, 21
    %v8 = vld [vmem:[%s7] sm:$0x1]
    %vm9 = vcmask 15360
    %v10 = vsel %vm9, %v8, %v6
    %11 = vrot.lane.b32.xlu0 %v10, 126
    %v12 = vpop.permute.xlu0 %11
    %vm13 = vcmask 31744
    %s14 = scalar_lea.vmem [#allocation0], 8
    %15 = vst.msk [vmem:[%s14] sm:$0x1] %vm13, %v12
    %vm16 = vcmask 1048560
    %17 = vst.msk [vmem:[#allocation0] sm:$0x1] %vm16, %v12
    %s18 = scalar_lea.vmem %s0, 20
    %v19 = vld [vmem:[%s18] sm:$0x1]
    %20 = vrot.lane.b32.xlu0 %v19, 120
    %v21 = vpop.permute.xlu0 %20
    %vm22 = vcmask 1032128
    %23 = vst.msk [vmem:[#allocation0] sm:$0x1] %vm22, %v21
    %s24 = scalar_lea.vmem %s0, 19
    %v25 = vld [vmem:[%s24] sm:$0x1]
    %26 = vrot.lane.b32.xlu0 %v25, 114
    %v27 = vpop.permute.xlu0 %26
    %vm28 = vcmask 982928
    %29 = vst.msk [vmem:[#allocation0] sm:$0x1] %vm28, %v27
    %s30 = scalar_lea.vmem %s0, 18
    %v31 = vld [vmem:[%s30] sm:$0x1]
    %32 = vrot.lane.b32.xlu0 %v31, 108
    %v33 = vpop.permute.xlu0 %32
    %vm34 = vcmask 933728
    %35 = vst.msk [vmem:[#allocation0] sm:$0x1] %vm34, %v33
    %s36 = scalar_lea.vmem %s0, 17
    %v37 = vld [vmem:[%s36] sm:$0x1]
    %38 = vrot.lane.b32.xlu0 %v37, 102
    %v39 = vpop.permute.xlu0 %38
    %vm40 = vcmask 884528
    %41 = vst.msk [vmem:[#allocation0] sm:$0x1] %vm40, %v39
    %s42 = scalar_lea.vmem %s0, 16
    %v43 = vld [vmem:[%s42] sm:$0x1]
    %44 = vrot.lane.b32.xlu0 %v43, 96
    %v45 = vpop.permute.xlu0 %44
    %vm46 = vcmask 835328
    %47 = vst.msk [vmem:[#allocation0] sm:$0x1] %vm46, %v45
    %s48 = scalar_lea.vmem %s0, 15
    %v49 = vld [vmem:[%s48] sm:$0x1]
    %50 = vrot.lane.b32.xlu0 %v49, 90
    %v51 = vpop.permute.xlu0 %50
    %vm52 = vcmask 786128
    %53 = vst.msk [vmem:[#allocation0] sm:$0x1] %vm52, %v51
    %s54 = scalar_lea.vmem %s0, 14
    %v55 = vld [vmem:[%s54] sm:$0x1]
    %56 = vrot.lane.b32.xlu0 %v55, 84
    %v57 = vpop.permute.xlu0 %56
    %vm58 = vcmask 736928
    %59 = vst.msk [vmem:[#allocation0] sm:$0x1] %vm58, %v57
    %s60 = scalar_lea.vmem %s0, 13
    %v61 = vld [vmem:[%s60] sm:$0x1]
    %62 = vrot.lane.b32.xlu0 %v61, 78
    %v63 = vpop.permute.xlu0 %62
    %vm64 = vcmask 687728
    %65 = vst.msk [vmem:[#allocation0] sm:$0x1] %vm64, %v63
    %s66 = scalar_lea.vmem %s0, 12
    %v67 = vld [vmem:[%s66] sm:$0x1]
    %68 = vrot.lane.b32.xlu0 %v67, 72
    %v69 = vpop.permute.xlu0 %68
    %vm70 = vcmask 638528
    %71 = vst.msk [vmem:[#allocation0] sm:$0x1] %vm70, %v69
    %s72 = scalar_lea.vmem %s0, 11
    %v73 = vld [vmem:[%s72] sm:$0x1]
    %74 = vrot.lane.b32.xlu0 %v73, 66
    %v75 = vpop.permute.xlu0 %74
    %vm76 = vcmask 589328
    %77 = vst.msk [vmem:[#allocation0] sm:$0x1] %vm76, %v75
    %s78 = scalar_lea.vmem %s0, 10
    %v79 = vld [vmem:[%s78] sm:$0x1]
    %80 = vrot.lane.b32.xlu0 %v79, 60
    %v81 = vpop.permute.xlu0 %80
    %vm82 = vcmask 540128
    %83 = vst.msk [vmem:[#allocation0] sm:$0x1] %vm82, %v81
    %s84 = scalar_lea.vmem %s0, 9
    %v85 = vld [vmem:[%s84] sm:$0x1]
    %86 = vrot.lane.b32.xlu0 %v85, 54
    %v87 = vpop.permute.xlu0 %86
    %vm88 = vcmask 490928
    %89 = vst.msk [vmem:[#allocation0] sm:$0x1] %vm88, %v87
    %s90 = scalar_lea.vmem %s0, 8
    %v91 = vld [vmem:[%s90] sm:$0x1]
    %92 = vrot.lane.b32.xlu0 %v91, 48
    %v93 = vpop.permute.xlu0 %92
    %vm94 = vcmask 441728
    %95 = vst.msk [vmem:[#allocation0] sm:$0x1] %vm94, %v93
    %s96 = scalar_lea.vmem %s0, 7
    %v97 = vld [vmem:[%s96] sm:$0x1]
    %98 = vrot.lane.b32.xlu0 %v97, 42
    %v99 = vpop.permute.xlu0 %98
    %vm100 = vcmask 392528
    %101 = vst.msk [vmem:[#allocation0] sm:$0x1] %vm100, %v99
    %s102 = scalar_lea.vmem %s0, 6
    %v103 = vld [vmem:[%s102] sm:$0x1]
    %104 = vrot.lane.b32.xlu0 %v103, 36
    %v105 = vpop.permute.xlu0 %104
    %vm106 = vcmask 343328
    %107 = vst.msk [vmem:[#allocation0] sm:$0x1] %vm106, %v105
    %s108 = scalar_lea.vmem %s0, 27
    %v109 = vld [vmem:[%s108] sm:$0x1]
    %110 = vrot.lane.b32.xlu0 %v109, 34
    %v111 = vpop.permute.xlu0 %110
    %vm112 = vcmask 326928
    %s113 = scalar_lea.vmem [#allocation0], 8
    %114 = vst.msk [vmem:[%s113] sm:$0x1] %vm112, %v111
    %s115 = scalar_lea.vmem %s0, 5
    %v116 = vld [vmem:[%s115] sm:$0x1]
    %117 = vrot.lane.b32.xlu0 %v116, 30
    %v118 = vpop.permute.xlu0 %117
    %vm119 = vcmask 294128
    %120 = vst.msk [vmem:[#allocation0] sm:$0x1] %vm119, %v118
    %s121 = scalar_lea.vmem %s0, 26
    %v122 = vld [vmem:[%s121] sm:$0x1]
    %123 = vrot.lane.b32.xlu0 %v122, 28
    %v124 = vpop.permute.xlu0 %123
    %vm125 = vcmask 277728
    %s126 = scalar_lea.vmem [#allocation0], 8
    %127 = vst.msk [vmem:[%s126] sm:$0x1] %vm125, %v124
    %s128 = scalar_lea.vmem %s0, 4
    %v129 = vld [vmem:[%s128] sm:$0x1]
    %130 = vrot.lane.b32.xlu0 %v129, 24
    %v131 = vpop.permute.xlu0 %130
    %vm132 = vcmask 244928
    %133 = vst.msk [vmem:[#allocation0] sm:$0x1] %vm132, %v131
    %s134 = scalar_lea.vmem %s0, 25
    %v135 = vld [vmem:[%s134] sm:$0x1]
    %136 = vrot.lane.b32.xlu0 %v135, 22
    %v137 = vpop.permute.xlu0 %136
    %vm138 = vcmask 228528
    %s139 = scalar_lea.vmem [#allocation0], 8
    %140 = vst.msk [vmem:[%s139] sm:$0x1] %vm138, %v137
    %s141 = scalar_lea.vmem %s0, 3
    %v142 = vld [vmem:[%s141] sm:$0x1]
    %143 = vrot.lane.b32.xlu0 %v142, 18
    %v144 = vpop.permute.xlu0 %143
    %vm145 = vcmask 195728
    %146 = vst.msk [vmem:[#allocation0] sm:$0x1] %vm145, %v144
    %s147 = scalar_lea.vmem %s0, 24
    %v148 = vld [vmem:[%s147] sm:$0x1]
    %149 = vrot.lane.b32.xlu0 %v148, 16
    %v150 = vpop.permute.xlu0 %149
    %vm151 = vcmask 179328
    %s152 = scalar_lea.vmem [#allocation0], 8
    %153 = vst.msk [vmem:[%s152] sm:$0x1] %vm151, %v150
    %s154 = scalar_lea.vmem %s0, 2
    %v155 = vld [vmem:[%s154] sm:$0x1]
    %156 = vrot.lane.b32.xlu0 %v155, 12
    %v157 = vpop.permute.xlu0 %156
    %vm158 = vcmask 146528
    %159 = vst.msk [vmem:[#allocation0] sm:$0x1] %vm158, %v157
    %s160 = scalar_lea.vmem %s0, 23
    %v161 = vld [vmem:[%s160] sm:$0x1]
    %162 = vrot.lane.b32.xlu0 %v161, 10
    %v163 = vpop.permute.xlu0 %162
    %vm164 = vcmask 130128
    %s165 = scalar_lea.vmem [#allocation0], 8
    %166 = vst.msk [vmem:[%s165] sm:$0x1] %vm164, %v163
    %s167 = scalar_lea.vmem %s0, 1
    %v168 = vld [vmem:[%s167] sm:$0x1]
    %169 = vrot.lane.b32.xlu0 %v168, 6
    %v170 = vpop.permute.xlu0 %169
    %vm171 = vcmask 97328
    %172 = vst.msk [vmem:[#allocation0] sm:$0x1] %vm171, %v170
    %s173 = scalar_lea.vmem %s0, 22
    %v174 = vld [vmem:[%s173] sm:$0x1]
    %175 = vrot.lane.b32.xlu0 %v174, 4
    %v176 = vpop.permute.xlu0 %175
    %vm177 = vcmask 80928
    %s178 = scalar_lea.vmem [#allocation0], 8
    %179 = vst.msk [vmem:[%s178] sm:$0x1] %vm177, %v176
    %s181 = sshllo.u32 0, 1
    %v183 = vld [vmem:[#allocation0] sm:%s181]
    %s184 = sshllo.u32 0, 1
    %185 = vst [vmem:[%s1] sm:%s184] %v183
    %s186 = scalar_lea.vmem [#allocation0], 8
    %v187 = vld [vmem:[%s186] sm:%s181]
    %s188 = sshllo.u32 0, 1
    %s189 = scalar_lea.vmem %s1, 1
    %190 = vst [vmem:[%s189] sm:%s188] %v187

// kernel: tile.18
$region0: #{tile.18}
  #allocation0 [shape = 's32[1]{0}', space=sflag, size = 0x4, scoped, tag = 'scoped memory for tile.18']
  %s0 = inlined_call_operand.vmem [shape: f32[16], index: 0, kind: input, shape index: {}]
  %s1 = inlined_call_operand.vmem [shape: f32[10,16], index: 1, kind: output, shape index: {}]
  // Predicated region
  $region2: #{tile.18} parent=0 // pred_check
    _
  $region3: #{tile.18} parent=0 // pred_check_branch
    %3 = sbr.rel (0) target = $region5
  $region4: #{tile.18} parent=0 // pred_region
    _
  $region5: #{tile.18} parent=0 // pred_fallthru
    _
  %v4 = vld [vmem:[%s0] ss:$0 sm:$0xff]
  %5 = vst [vmem:[%s1] sm:$0xff] %v4
  %s6 = scalar_lea.vmem %s1, 8
  %7 = vst [vmem:[%s6] sm:$0xff] %v4

// kernel: tile.19
$region0: #{tile.19}
  %s0 = inlined_call_operand.vmem [shape: f32[10,16], index: 0, kind: input, shape index: {}]
  %s1 = inlined_call_operand.vmem [shape: f32[1,160], index: 1, kind: output, shape index: {}]
  $region1: #{tile.19} parent=0
    #allocation0 [shape = 'u8[8192]{0}', space=vmem, size = 0x2000, scoped, tag = 'scoped mem for output reshape']
    %s2 = smov 3
    %v3 = vld [vmem:[%s0] ss:$8 sm:%s2]
    %vm4 = vcmask 130048
    %5 = vst.msk [vmem:[#allocation0] ss:$8 sm:$0x3] %vm4, %v3
    %s6 = scalar_lea.vmem %s0, 7
    %v7 = vld [vmem:[%s6] sm:$0x1]
    %8 = vrot.lane.b32.xlu0 %v7, 112
    %v9 = vpop.permute.xlu0 %8
    %vm10 = vcmask 1048448
    %11 = vst.msk [vmem:[#allocation0] sm:$0x1] %vm10, %v9
    %s12 = scalar_lea.vmem %s0, 6
    %v13 = vld [vmem:[%s12] sm:$0x1]
    %14 = vrot.lane.b32.xlu0 %v13, 96
    %v15 = vpop.permute.xlu0 %14
    %vm16 = vcmask 917248
    %17 = vst.msk [vmem:[#allocation0] sm:$0x1] %vm16, %v15
    %s18 = scalar_lea.vmem %s0, 5
    %v19 = vld [vmem:[%s18] sm:$0x1]
    %20 = vrot.lane.b32.xlu0 %v19, 80
    %v21 = vpop.permute.xlu0 %20
    %vm22 = vcmask 786048
    %23 = vst.msk [vmem:[#allocation0] sm:$0x1] %vm22, %v21
    %s24 = scalar_lea.vmem %s0, 4
    %v25 = vld [vmem:[%s24] sm:$0x1]
    %26 = vrot.lane.b32.xlu0 %v25, 64
    %v27 = vpop.permute.xlu0 %26
    %vm28 = vcmask 654848
    %29 = vst.msk [vmem:[#allocation0] sm:$0x1] %vm28, %v27
    %s30 = scalar_lea.vmem %s0, 3
    %v31 = vld [vmem:[%s30] sm:$0x1]
    %32 = vrot.lane.b32.xlu0 %v31, 48
    %v33 = vpop.permute.xlu0 %32
    %vm34 = vcmask 523648
    %35 = vst.msk [vmem:[#allocation0] sm:$0x1] %vm34, %v33
    %s36 = scalar_lea.vmem %s0, 2
    %v37 = vld [vmem:[%s36] sm:$0x1]
    %38 = vrot.lane.b32.xlu0 %v37, 32
    %v39 = vpop.permute.xlu0 %38
    %vm40 = vcmask 392448
    %41 = vst.msk [vmem:[#allocation0] sm:$0x1] %vm40, %v39
    %s42 = scalar_lea.vmem %s0, 1
    %s43 = smov 3
    %v44 = vld [vmem:[%s42] ss:$8 sm:%s43]
    %45 = vrot.lane.b32.xlu0 %v44, 16
    %v46 = vpop.permute.xlu0 %45
    %vm47 = vcmask 261248
    %48 = vst.msk [vmem:[#allocation0] ss:$8 sm:$0x3] %vm47, %v46
    %s50 = sshllo.u32 0, 1
    %v52 = vld [vmem:[#allocation0] sm:%s50]
    %s53 = sshllo.u32 0, 1
    %54 = vst [vmem:[%s1] sm:%s53] %v52
    %s55 = scalar_lea.vmem [#allocation0], 8
    %v56 = vld [vmem:[%s55] sm:%s50]
    %s57 = sshllo.u32 0, 1
    %s58 = scalar_lea.vmem %s1, 1
    %59 = vst [vmem:[%s58] sm:%s57] %v56

// kernel: lenet_forward.1
$region0: #{lenet_forward.1}
  #allocation0 [shape = 'u32[]', space=smem, size = 0x4, offset = 0x4, fixed_abs, tag = 'smem constant byte address 0x4 - core index']
  #allocation1 [shape = 'u32[144,128]{1,0:T(1,128)}', space=vmem, size = 0x12000, scoped, tag = 'internal scratch']
  %s0 = inlined_call_operand.vmem [shape: f32[256,32], index: 0, kind: input, shape index: {}]
  %s1 = inlined_call_operand.vmem [shape: bf16[5,32,168], index: 1, kind: input, shape index: {}]
  %s2 = inlined_call_operand.vmem [shape: f32[1,168], index: 2, kind: input, shape index: {}]
  %s3 = inlined_call_operand.vmem [shape: f32[112,224], index: 3, kind: input, shape index: {}]
  %s4 = inlined_call_operand.vmem [shape: f32[112,224], index: 4, kind: input, shape index: {}]
  %s5 = inlined_call_operand.vmem [shape: f32[168,128], index: 5, kind: input, shape index: {}]
  %s6 = inlined_call_operand.vmem [shape: f32[168,128], index: 6, kind: input, shape index: {}]
  %s7 = inlined_call_operand.vmem [shape: bf16[5,128,160], index: 7, kind: input, shape index: {}]
  %s8 = inlined_call_operand.vmem [shape: f32[1,160], index: 8, kind: input, shape index: {}]
  %s9 = inlined_call_operand.vmem [shape: f32[40,80], index: 9, kind: input, shape index: {}]
  %s10 = inlined_call_operand.vmem [shape: f32[40,80], index: 10, kind: input, shape index: {}]
  %s11 = inlined_call_operand.vmem [shape: f32[160,80], index: 11, kind: input, shape index: {}]
  %s12 = inlined_call_operand.vmem [shape: f32[160,80], index: 12, kind: input, shape index: {}]
  %s13 = inlined_call_operand.vmem [shape: bf16[400,120], index: 13, kind: input, shape index: {}]
  %s14 = inlined_call_operand.vmem [shape: f32[1,120], index: 14, kind: input, shape index: {}]
  %s15 = inlined_call_operand.vmem [shape: bf16[120,84], index: 15, kind: input, shape index: {}]
  %s16 = inlined_call_operand.vmem [shape: f32[1,84], index: 16, kind: input, shape index: {}]
  %s17 = inlined_call_operand.vmem [shape: bf16[84,128], index: 17, kind: input, shape index: {}]
  %s18 = inlined_call_operand.vmem [shape: f32[1,128], index: 18, kind: input, shape index: {}]
  %s19 = inlined_call_operand.vmem [shape: f32[8,128], index: 19, kind: output, shape index: {}]
  %s20 = sld [smem:[#allocation0]]
  $region86: #{lenet_forward.1} parent=0
    _
  %s22 = ssub.s32 1, %s20
  %s23 = scalar_select 0, %s22, %s20
  // Predicated region
  $region2: #{lenet_forward.1} parent=0 // pred_check
    _
  $region3: #{lenet_forward.1} parent=0 // pred_check_branch
    %25 = sbr.rel (0) target = $region5
  $region4: #{lenet_forward.1} parent=0 // pred_region
    _
  $region5: #{lenet_forward.1} parent=0 // pred_fallthru
    _
  // Predicated region
  $region6: #{lenet_forward.1} parent=0 // pred_check
    _
  $region7: #{lenet_forward.1} parent=0 // pred_check_branch
    %27 = sbr.rel (0) target = $region9
  $region8: #{lenet_forward.1} parent=0 // pred_region
    _
  $region9: #{lenet_forward.1} parent=0 // pred_fallthru
    _
  // Predicated region
  $region10: #{lenet_forward.1} parent=0 // pred_check
    _
  $region11: #{lenet_forward.1} parent=0 // pred_check_branch
    %29 = sbr.rel (0) target = $region13
  $region12: #{lenet_forward.1} parent=0 // pred_region
    _
  $region13: #{lenet_forward.1} parent=0 // pred_fallthru
    _
  // Predicated region
  $region14: #{lenet_forward.1} parent=0 // pred_check
    _
  $region15: #{lenet_forward.1} parent=0 // pred_check_branch
    %31 = sbr.rel (0) target = $region17
  $region16: #{lenet_forward.1} parent=0 // pred_region
    _
  $region17: #{lenet_forward.1} parent=0 // pred_fallthru
    _
  // Predicated region
  $region18: #{lenet_forward.1} parent=0 // pred_check
    _
  $region19: #{lenet_forward.1} parent=0 // pred_check_branch
    %33 = sbr.rel (0) target = $region21
  $region20: #{lenet_forward.1} parent=0 // pred_region
    _
  $region21: #{lenet_forward.1} parent=0 // pred_fallthru
    _
  // Predicated region
  $region22: #{lenet_forward.1} parent=0 // pred_check
    _
  $region23: #{lenet_forward.1} parent=0 // pred_check_branch
    %35 = sbr.rel (0) target = $region25
  $region24: #{lenet_forward.1} parent=0 // pred_region
    _
  $region25: #{lenet_forward.1} parent=0 // pred_fallthru
    _
  // Predicated region
  $region26: #{lenet_forward.1} parent=0 // pred_check
    _
  $region27: #{lenet_forward.1} parent=0 // pred_check_branch
    %37 = sbr.rel (0) target = $region29
  $region28: #{lenet_forward.1} parent=0 // pred_region
    _
  $region29: #{lenet_forward.1} parent=0 // pred_fallthru
    _
  // Predicated region
  $region30: #{lenet_forward.1} parent=0 // pred_check
    _
  $region31: #{lenet_forward.1} parent=0 // pred_check_branch
    %39 = sbr.rel (0) target = $region33
  $region32: #{lenet_forward.1} parent=0 // pred_region
    _
  $region33: #{lenet_forward.1} parent=0 // pred_fallthru
    _
  // Predicated region
  $region34: #{lenet_forward.1} parent=0 // pred_check
    _
  $region35: #{lenet_forward.1} parent=0 // pred_check_branch
    %41 = sbr.rel (0) target = $region37
  $region36: #{lenet_forward.1} parent=0 // pred_region
    _
  $region37: #{lenet_forward.1} parent=0 // pred_fallthru
    _
  // Predicated region
  $region38: #{lenet_forward.1} parent=0 // pred_check
    _
  $region39: #{lenet_forward.1} parent=0 // pred_check_branch
    %43 = sbr.rel (0) target = $region41
  $region40: #{lenet_forward.1} parent=0 // pred_region
    _
  $region41: #{lenet_forward.1} parent=0 // pred_fallthru
    _
  // Predicated region
  $region42: #{lenet_forward.1} parent=0 // pred_check
    _
  $region43: #{lenet_forward.1} parent=0 // pred_check_branch
    %45 = sbr.rel (0) target = $region45
  $region44: #{lenet_forward.1} parent=0 // pred_region
    _
  $region45: #{lenet_forward.1} parent=0 // pred_fallthru
    _
  // Predicated region
  $region46: #{lenet_forward.1} parent=0 // pred_check
    _
  $region47: #{lenet_forward.1} parent=0 // pred_check_branch
    %47 = sbr.rel (0) target = $region49
  $region48: #{lenet_forward.1} parent=0 // pred_region
    _
  $region49: #{lenet_forward.1} parent=0 // pred_fallthru
    _
  // Predicated region
  $region50: #{lenet_forward.1} parent=0 // pred_check
    _
  $region51: #{lenet_forward.1} parent=0 // pred_check_branch
    %49 = sbr.rel (0) target = $region53
  $region52: #{lenet_forward.1} parent=0 // pred_region
    _
  $region53: #{lenet_forward.1} parent=0 // pred_fallthru
    _
  // Predicated region
  $region54: #{lenet_forward.1} parent=0 // pred_check
    _
  $region55: #{lenet_forward.1} parent=0 // pred_check_branch
    %51 = sbr.rel (0) target = $region57
  $region56: #{lenet_forward.1} parent=0 // pred_region
    _
  $region57: #{lenet_forward.1} parent=0 // pred_fallthru
    _
  // Predicated region
  $region58: #{lenet_forward.1} parent=0 // pred_check
    _
  $region59: #{lenet_forward.1} parent=0 // pred_check_branch
    %53 = sbr.rel (0) target = $region61
  $region60: #{lenet_forward.1} parent=0 // pred_region
    _
  $region61: #{lenet_forward.1} parent=0 // pred_fallthru
    _
  // Predicated region
  $region62: #{lenet_forward.1} parent=0 // pred_check
    _
  $region63: #{lenet_forward.1} parent=0 // pred_check_branch
    %55 = sbr.rel (0) target = $region65
  $region64: #{lenet_forward.1} parent=0 // pred_region
    _
  $region65: #{lenet_forward.1} parent=0 // pred_fallthru
    _
  // Predicated region
  $region66: #{lenet_forward.1} parent=0 // pred_check
    _
  $region67: #{lenet_forward.1} parent=0 // pred_check_branch
    %57 = sbr.rel (0) target = $region69
  $region68: #{lenet_forward.1} parent=0 // pred_region
    _
  $region69: #{lenet_forward.1} parent=0 // pred_fallthru
    _
  // Predicated region
  $region70: #{lenet_forward.1} parent=0 // pred_check
    _
  $region71: #{lenet_forward.1} parent=0 // pred_check_branch
    %59 = sbr.rel (0) target = $region73
  $region72: #{lenet_forward.1} parent=0 // pred_region
    _
  $region73: #{lenet_forward.1} parent=0 // pred_fallthru
    _
  // Predicated region
  $region74: #{lenet_forward.1} parent=0 // pred_check
    _
  $region75: #{lenet_forward.1} parent=0 // pred_check_branch
    %61 = sbr.rel (0) target = $region77
  $region76: #{lenet_forward.1} parent=0 // pred_region
    _
  $region77: #{lenet_forward.1} parent=0 // pred_fallthru
    _
  %v63 = vld [vmem:[%s0] sm:$0xff]
  %v64 = vld [vmem:[%s0 + $0x8] sm:$0xff]
  %v65 = vld [vmem:[%s0 + $0x10] sm:$0xff]
  %v66 = vld [vmem:[%s0 + $0x18] sm:$0xff]
  %v67 = vld [vmem:[%s0 + $0x20] sm:$0xff]
  %v68 = vld [vmem:[%s0 + $0x28] sm:$0xff]
  %v69 = vld [vmem:[%s0 + $0x30] sm:$0xff]
  %v70 = vld [vmem:[%s0 + $0x38] sm:$0xff]
  %v71 = vld [vmem:[%s0 + $0x40] sm:$0xff]
  %v72 = vld [vmem:[%s0 + $0x48] sm:$0xff]
  %v73 = vld [vmem:[%s0 + $0x50] sm:$0xff]
  %v74 = vld [vmem:[%s0 + $0x58] sm:$0xff]
  %v75 = vld [vmem:[%s0 + $0x60] sm:$0xff]
  %v76 = vld [vmem:[%s0 + $0x68] sm:$0xff]
  %v77 = vld [vmem:[%s0 + $0x70] sm:$0xff]
  %v78 = vld [vmem:[%s0 + $0x78] sm:$0xff]
  %v79 = vld [vmem:[%s0 + $0x80] sm:$0xff]
  %v80 = vld [vmem:[%s0 + $0x88] sm:$0xff]
  %v81 = vld [vmem:[%s0 + $0x90] sm:$0xff]
  %v82 = vld [vmem:[%s0 + $0x98] sm:$0xff]
  %v83 = vld [vmem:[%s0 + $0xa0] sm:$0xff]
  %v84 = vld [vmem:[%s0 + $0xa8] sm:$0xff]
  %v85 = vld [vmem:[%s0 + $0xb0] sm:$0xff]
  %v86 = vld [vmem:[%s0 + $0xb8] sm:$0xff]
  %v87 = vld [vmem:[%s0 + $0xc0] sm:$0xff]
  %v88 = vld [vmem:[%s0 + $0xc8] sm:$0xff]
  %v89 = vld [vmem:[%s0 + $0xd0] sm:$0xff]
  %v90 = vld [vmem:[%s0 + $0xd8] sm:$0xff]
  %v91 = vld [vmem:[%s0 + $0xe0] sm:$0xff]
  %v92 = vld [vmem:[%s0 + $0xe8] sm:$0xff]
  %v93 = vld [vmem:[%s0 + $0xf0] sm:$0xff]
  %v94 = vld [vmem:[%s0 + $0xf8] sm:$0xff]
  %v95 = vpack.c.bf16 %v64, %v63
  %v96 = vpack.c.bf16 %v66, %v65
  %v97 = vpack.c.bf16 %v68, %v67
  %v98 = vpack.c.bf16 %v70, %v69
  %v99 = vpack.c.bf16 %v72, %v71
  %v100 = vpack.c.bf16 %v74, %v73
  %v101 = vpack.c.bf16 %v76, %v75
  %v102 = vpack.c.bf16 %v78, %v77
  %v103 = vpack.c.bf16 %v80, %v79
  %v104 = vpack.c.bf16 %v82, %v81
  %v105 = vpack.c.bf16 %v84, %v83
  %v106 = vpack.c.bf16 %v86, %v85
  %v107 = vpack.c.bf16 %v88, %v87
  %v108 = vpack.c.bf16 %v90, %v89
  %v109 = vld [vmem:[%s1] sm:$0xff]
  %v110 = vld [vmem:[%s1 + $0x8] sm:$0xff]
  %v111 = vld [vmem:[%s1 + $0x10] sm:$0xff]
  %v112 = vld [vmem:[%s1 + $0x18] sm:$0xff]
  %v113 = vpack.c.bf16 %v65, %v64
  %v114 = vpack.c.bf16 %v67, %v66
  %v115 = vpack.c.bf16 %v69, %v68
  %v116 = vpack.c.bf16 %v71, %v70
  %v117 = vpack.c.bf16 %v73, %v72
  %v118 = vpack.c.bf16 %v75, %v74
  %v119 = vpack.c.bf16 %v77, %v76
  %v120 = vpack.c.bf16 %v79, %v78
  %v121 = vpack.c.bf16 %v81, %v80
  %v122 = vpack.c.bf16 %v83, %v82
  %v123 = vpack.c.bf16 %v85, %v84
  %v124 = vpack.c.bf16 %v87, %v86
  %v125 = vpack.c.bf16 %v89, %v88
  %v126 = vpack.c.bf16 %v91, %v90
  %s127 = scalar_lea.vmem %s1, 32
  %v128 = vld [vmem:[%s127] sm:$0xff]
  %v129 = vld [vmem:[%s127 + $0x8] sm:$0xff]
  %v130 = vld [vmem:[%s127 + $0x10] sm:$0xff]
  %v131 = vld [vmem:[%s127 + $0x18] sm:$0xff]
  %v136 = vunpack.c.l.b16 %v128
  %v137 = vunpack.c.h.b16 %v128
  %v138 = vunpack.c.l.b16 %v129
  %v139 = vunpack.c.h.b16 %v129
  %v140 = vunpack.c.l.b16 %v130
  %v141 = vunpack.c.h.b16 %v130
  %v142 = vunpack.c.l.b16 %v131
  %v143 = vunpack.c.h.b16 %v131
  %v144 = vpack.c.b16 %v138, %v136
  %v145 = vpack.c.b16 %v139, %v137
  %v146 = vpack.c.b16 %v142, %v140
  %v147 = vpack.c.b16 %v143, %v141
  %vm152 = vcmask 261120
  %v154 = vsel %vm152, %v113, 0
  %v157 = vsel %vm152, %v114, 0
  %v160 = vsel %vm152, %v115, 0
  %v163 = vsel %vm152, %v116, 0
  %v166 = vsel %vm152, %v117, 0
  %v169 = vsel %vm152, %v118, 0
  %v172 = vsel %vm152, %v119, 0
  %v175 = vsel %vm152, %v120, 0
  %v178 = vsel %vm152, %v121, 0
  %v181 = vsel %vm152, %v122, 0
  %v184 = vsel %vm152, %v123, 0
  %v187 = vsel %vm152, %v124, 0
  %v190 = vsel %vm152, %v125, 0
  %v193 = vsel %vm152, %v126, 0
  %195 = vmatprep.subr.bf16.mxu0 %v145
  %196 = vmatpush1.bf16.msra.mxu0 %v144
  %197 = vmatprep.subr.bf16.mxu0 %v147
  %198 = vmatpush1.bf16.msra.mxu0 %v146
  %199 = vmatprep.subr.bf16.mxu0 0
  %200 = vmatpush1.bf16.msra.mxu0 0
  %201 = vmatprep.subr.bf16.mxu0 0
  %202 = vmatpush1.bf16.msra.mxu0 0
  %203 = vmatprep.subr.bf16.mxu0 0
  %204 = vmatpush1.bf16.msra.mxu0 0
  %205 = vmatprep.subr.bf16.mxu0 0
  %206 = vmatpush1.bf16.msra.mxu0 0
  %207 = vmatprep.subr.bf16.mxu0 0
  %208 = vmatpush1.bf16.msra.mxu0 0
  %209 = vmatprep.subr.bf16.mxu0 0
  %210 = vmatpush1.bf16.msra.mxu0 0
  %211 = vmatprep.subr.bf16.mxu0 0
  %212 = vmatpush1.bf16.msra.mxu0 0
  %213 = vmatprep.subr.bf16.mxu0 0
  %214 = vmatpush1.bf16.msra.mxu0 0
  %215 = vmatprep.subr.bf16.mxu0 0
  %216 = vmatpush1.bf16.msra.mxu0 0
  %217 = vmatprep.subr.bf16.mxu0 0
  %218 = vmatpush1.bf16.msra.mxu0 0
  %219 = vmatprep.subr.bf16.mxu0 0
  %220 = vmatpush1.bf16.msra.mxu0 0
  %221 = vmatprep.subr.bf16.mxu0 0
  %222 = vmatpush1.bf16.msra.mxu0 0
  %223 = vmatprep.subr.bf16.mxu0 0
  %224 = vmatpush1.bf16.msra.mxu0 0
  %225 = vmatprep.subr.bf16.mxu0 0
  %226 = vmatpush1.bf16.msra.mxu0 0
  %227 = vmatprep.mubr.bf16.mxu0 0
  %228 = vmatmul.mubr.bf16.gmra.mrb[0].mxu0 %v154
  %v229 = vpop.f32.mrb[0].mxu0
  %v230 = vadd.f32 0.0, %v229
  %v231 = vpop.f32.mrb[0].mxu0
  %v232 = vadd.f32 0.0, %v231
  %v233 = vpop.f32.mrb[0].mxu0
  %v234 = vadd.f32 0.0, %v233
  %v235 = vpop.f32.mrb[0].mxu0
  %v236 = vadd.f32 0.0, %v235
  %237 = vmatprep.mubr.bf16.mxu0 0
  %238 = vmatmul.mubr.bf16.gmra.mrb[0].mxu0 %v157
  %v239 = vpop.f32.mrb[0].mxu0
  %v240 = vadd.f32 0.0, %v239
  %v241 = vpop.f32.mrb[0].mxu0
  %v242 = vadd.f32 0.0, %v241
  %v243 = vpop.f32.mrb[0].mxu0
  %v244 = vadd.f32 0.0, %v243
  %v245 = vpop.f32.mrb[0].mxu0
  %v246 = vadd.f32 0.0, %v245
  %247 = vmatprep.mubr.bf16.mxu0 0
  %248 = vmatmul.mubr.bf16.gmra.mrb[0].mxu0 %v160
  %v249 = vpop.f32.mrb[0].mxu0
  %v250 = vadd.f32 0.0, %v249
  %v251 = vpop.f32.mrb[0].mxu0
  %v252 = vadd.f32 0.0, %v251
  %v253 = vpop.f32.mrb[0].mxu0
  %v254 = vadd.f32 0.0, %v253
  %v255 = vpop.f32.mrb[0].mxu0
  %v256 = vadd.f32 0.0, %v255
  %257 = vmatprep.mubr.bf16.mxu0 0
  %258 = vmatmul.mubr.bf16.gmra.mrb[0].mxu0 %v163
  %v259 = vpop.f32.mrb[0].mxu0
  %v260 = vadd.f32 0.0, %v259
  %v261 = vpop.f32.mrb[0].mxu0
  %v262 = vadd.f32 0.0, %v261
  %v263 = vpop.f32.mrb[0].mxu0
  %v264 = vadd.f32 0.0, %v263
  %v265 = vpop.f32.mrb[0].mxu0
  %v266 = vadd.f32 0.0, %v265
  %267 = vmatprep.mubr.bf16.mxu0 0
  %268 = vmatmul.mubr.bf16.gmra.mrb[0].mxu0 %v166
  %v269 = vpop.f32.mrb[0].mxu0
  %v270 = vadd.f32 0.0, %v269
  %v271 = vpop.f32.mrb[0].mxu0
  %v272 = vadd.f32 0.0, %v271
  %v273 = vpop.f32.mrb[0].mxu0
  %v274 = vadd.f32 0.0, %v273
  %v275 = vpop.f32.mrb[0].mxu0
  %v276 = vadd.f32 0.0, %v275
  %277 = vmatprep.mubr.bf16.mxu0 0
  %278 = vmatmul.mubr.bf16.gmra.mrb[0].mxu0 %v169
  %v279 = vpop.f32.mrb[0].mxu0
  %v280 = vadd.f32 0.0, %v279
  %v281 = vpop.f32.mrb[0].mxu0
  %v282 = vadd.f32 0.0, %v281
  %v283 = vpop.f32.mrb[0].mxu0
  %v284 = vadd.f32 0.0, %v283
  %v285 = vpop.f32.mrb[0].mxu0
  %v286 = vadd.f32 0.0, %v285
  %287 = vmatprep.mubr.bf16.mxu0 0
  %288 = vmatmul.mubr.bf16.gmra.mrb[0].mxu0 %v172
  %v289 = vpop.f32.mrb[0].mxu0
  %v290 = vadd.f32 0.0, %v289
  %v291 = vpop.f32.mrb[0].mxu0
  %v292 = vadd.f32 0.0, %v291
  %v293 = vpop.f32.mrb[0].mxu0
  %v294 = vadd.f32 0.0, %v293
  %v295 = vpop.f32.mrb[0].mxu0
  %v296 = vadd.f32 0.0, %v295
  %297 = vmatprep.mubr.bf16.mxu0 0
  %298 = vmatmul.mubr.bf16.gmra.mrb[0].mxu0 %v175
  %v299 = vpop.f32.mrb[0].mxu0
  %v300 = vadd.f32 0.0, %v299
  %v301 = vpop.f32.mrb[0].mxu0
  %v302 = vadd.f32 0.0, %v301
  %v303 = vpop.f32.mrb[0].mxu0
  %v304 = vadd.f32 0.0, %v303
  %v305 = vpop.f32.mrb[0].mxu0
  %v306 = vadd.f32 0.0, %v305
  %307 = vmatprep.mubr.bf16.mxu0 0
  %308 = vmatmul.mubr.bf16.gmra.mrb[0].mxu0 %v178
  %v309 = vpop.f32.mrb[0].mxu0
  %v310 = vadd.f32 0.0, %v309
  %v311 = vpop.f32.mrb[0].mxu0
  %v312 = vadd.f32 0.0, %v311
  %v313 = vpop.f32.mrb[0].mxu0
  %v314 = vadd.f32 0.0, %v313
  %v315 = vpop.f32.mrb[0].mxu0
  %v316 = vadd.f32 0.0, %v315
  %317 = vmatprep.mubr.bf16.mxu0 0
  %318 = vmatmul.mubr.bf16.gmra.mrb[0].mxu0 %v181
  %v319 = vpop.f32.mrb[0].mxu0
  %v320 = vadd.f32 0.0, %v319
  %v321 = vpop.f32.mrb[0].mxu0
  %v322 = vadd.f32 0.0, %v321
  %v323 = vpop.f32.mrb[0].mxu0
  %v324 = vadd.f32 0.0, %v323
  %v325 = vpop.f32.mrb[0].mxu0
  %v326 = vadd.f32 0.0, %v325
  %327 = vmatprep.mubr.bf16.mxu0 0
  %328 = vmatmul.mubr.bf16.gmra.mrb[0].mxu0 %v184
  %v329 = vpop.f32.mrb[0].mxu0
  %v330 = vadd.f32 0.0, %v329
  %v331 = vpop.f32.mrb[0].mxu0
  %v332 = vadd.f32 0.0, %v331
  %v333 = vpop.f32.mrb[0].mxu0
  %v334 = vadd.f32 0.0, %v333
  %v335 = vpop.f32.mrb[0].mxu0
  %v336 = vadd.f32 0.0, %v335
  %337 = vmatprep.mubr.bf16.mxu0 0
  %338 = vmatmul.mubr.bf16.gmra.mrb[0].mxu0 %v187
  %v339 = vpop.f32.mrb[0].mxu0
  %v340 = vadd.f32 0.0, %v339
  %v341 = vpop.f32.mrb[0].mxu0
  %v342 = vadd.f32 0.0, %v341
  %v343 = vpop.f32.mrb[0].mxu0
  %v344 = vadd.f32 0.0, %v343
  %v345 = vpop.f32.mrb[0].mxu0
  %v346 = vadd.f32 0.0, %v345
  %347 = vmatprep.mubr.bf16.mxu0 0
  %348 = vmatmul.mubr.bf16.gmra.mrb[0].mxu0 %v190
  %v349 = vpop.f32.mrb[0].mxu0
  %v350 = vadd.f32 0.0, %v349
  %v351 = vpop.f32.mrb[0].mxu0
  %v352 = vadd.f32 0.0, %v351
  %v353 = vpop.f32.mrb[0].mxu0
  %v354 = vadd.f32 0.0, %v353
  %v355 = vpop.f32.mrb[0].mxu0
  %v356 = vadd.f32 0.0, %v355
  %357 = vmatprep.mubr.bf16.mxu0 0
  %358 = vmatmul.mubr.bf16.gmra.mrb[0].mxu0 %v193
  %v359 = vpop.f32.mrb[0].mxu0
  %v360 = vadd.f32 0.0, %v359
  %v361 = vpop.f32.mrb[0].mxu0
  %v362 = vadd.f32 0.0, %v361
  %v363 = vpop.f32.mrb[0].mxu0
  %v364 = vadd.f32 0.0, %v363
  %v365 = vpop.f32.mrb[0].mxu0
  %v366 = vadd.f32 0.0, %v365
  %367 = vdwg.mxu0
  %v372 = vunpack.c.l.b16 %v109
  %v373 = vunpack.c.h.b16 %v109
  %v374 = vunpack.c.l.b16 %v110
  %v375 = vunpack.c.h.b16 %v110
  %v376 = vunpack.c.l.b16 %v111
  %v377 = vunpack.c.h.b16 %v111
  %v378 = vunpack.c.l.b16 %v112
  %v379 = vunpack.c.h.b16 %v112
  %v380 = vpack.c.b16 %v374, %v372
  %v381 = vpack.c.b16 %v375, %v373
  %v382 = vpack.c.b16 %v378, %v376
  %v383 = vpack.c.b16 %v379, %v377
  %v389 = vsel %vm152, %v95, 0
  %v392 = vsel %vm152, %v96, 0
  %v395 = vsel %vm152, %v97, 0
  %v398 = vsel %vm152, %v98, 0
  %v401 = vsel %vm152, %v99, 0
  %v404 = vsel %vm152, %v100, 0
  %v407 = vsel %vm152, %v101, 0
  %v410 = vsel %vm152, %v102, 0
  %v413 = vsel %vm152, %v103, 0
  %v416 = vsel %vm152, %v104, 0
  %v419 = vsel %vm152, %v105, 0
  %v422 = vsel %vm152, %v106, 0
  %v425 = vsel %vm152, %v107, 0
  %v428 = vsel %vm152, %v108, 0
  %430 = vmatprep.subr.bf16.mxu0 %v381
  %431 = vmatpush1.bf16.msra.mxu0 %v380
  %432 = vmatprep.subr.bf16.mxu0 %v383
  %433 = vmatpush1.bf16.msra.mxu0 %v382
  %434 = vmatprep.subr.bf16.mxu0 0
  %435 = vmatpush1.bf16.msra.mxu0 0
  %436 = vmatprep.subr.bf16.mxu0 0
  %437 = vmatpush1.bf16.msra.mxu0 0
  %438 = vmatprep.subr.bf16.mxu0 0
  %439 = vmatpush1.bf16.msra.mxu0 0
  %440 = vmatprep.subr.bf16.mxu0 0
  %441 = vmatpush1.bf16.msra.mxu0 0
  %442 = vmatprep.subr.bf16.mxu0 0
  %443 = vmatpush1.bf16.msra.mxu0 0
  %444 = vmatprep.subr.bf16.mxu0 0
  %445 = vmatpush1.bf16.msra.mxu0 0
  %446 = vmatprep.subr.bf16.mxu0 0
  %447 = vmatpush1.bf16.msra.mxu0 0
  %448 = vmatprep.subr.bf16.mxu0 0
  %449 = vmatpush1.bf16.msra.mxu0 0
  %450 = vmatprep.subr.bf16.mxu0 0
  %451 = vmatpush1.bf16.msra.mxu0 0
  %452 = vmatprep.subr.bf16.mxu0 0
  %453 = vmatpush1.bf16.msra.mxu0 0
  %454 = vmatprep.subr.bf16.mxu0 0
  %455 = vmatpush1.bf16.msra.mxu0 0
  %456 = vmatprep.subr.bf16.mxu0 0
  %457 = vmatpush1.bf16.msra.mxu0 0
  %458 = vmatprep.subr.bf16.mxu0 0
  %459 = vmatpush1.bf16.msra.mxu0 0
  %460 = vmatprep.subr.bf16.mxu0 0
  %461 = vmatpush1.bf16.msra.mxu0 0
  %462 = vmatprep.mubr.bf16.mxu0 0
  %463 = vmatmul.mubr.bf16.gmra.mrb[0].mxu0 %v389
  %v464 = vpop.f32.mrb[0].mxu0
  %v465 = vadd.f32 %v230, %v464
  %v466 = vpop.f32.mrb[0].mxu0
  %v467 = vadd.f32 %v232, %v466
  %v468 = vpop.f32.mrb[0].mxu0
  %v469 = vadd.f32 %v234, %v468
  %v470 = vpop.f32.mrb[0].mxu0
  %v471 = vadd.f32 %v236, %v470
  %472 = vmatprep.mubr.bf16.mxu0 0
  %473 = vmatmul.mubr.bf16.gmra.mrb[0].mxu0 %v392
  %v474 = vpop.f32.mrb[0].mxu0
  %v475 = vadd.f32 %v240, %v474
  %v476 = vpop.f32.mrb[0].mxu0
  %v477 = vadd.f32 %v242, %v476
  %v478 = vpop.f32.mrb[0].mxu0
  %v479 = vadd.f32 %v244, %v478
  %v480 = vpop.f32.mrb[0].mxu0
  %v481 = vadd.f32 %v246, %v480
  %482 = vmatprep.mubr.bf16.mxu0 0
  %483 = vmatmul.mubr.bf16.gmra.mrb[0].mxu0 %v395
  %v484 = vpop.f32.mrb[0].mxu0
  %v485 = vadd.f32 %v250, %v484
  %v486 = vpop.f32.mrb[0].mxu0
  %v487 = vadd.f32 %v252, %v486
  %v488 = vpop.f32.mrb[0].mxu0
  %v489 = vadd.f32 %v254, %v488
  %v490 = vpop.f32.mrb[0].mxu0
  %v491 = vadd.f32 %v256, %v490
  %492 = vmatprep.mubr.bf16.mxu0 0
  %493 = vmatmul.mubr.bf16.gmra.mrb[0].mxu0 %v398
  %v494 = vpop.f32.mrb[0].mxu0
  %v495 = vadd.f32 %v260, %v494
  %v496 = vpop.f32.mrb[0].mxu0
  %v497 = vadd.f32 %v262, %v496
  %v498 = vpop.f32.mrb[0].mxu0
  %v499 = vadd.f32 %v264, %v498
  %v500 = vpop.f32.mrb[0].mxu0
  %v501 = vadd.f32 %v266, %v500
  %502 = vmatprep.mubr.bf16.mxu0 0
  %503 = vmatmul.mubr.bf16.gmra.mrb[0].mxu0 %v401
  %v504 = vpop.f32.mrb[0].mxu0
  %v505 = vadd.f32 %v270, %v504
  %v506 = vpop.f32.mrb[0].mxu0
  %v507 = vadd.f32 %v272, %v506
  %v508 = vpop.f32.mrb[0].mxu0
  %v509 = vadd.f32 %v274, %v508
  %v510 = vpop.f32.mrb[0].mxu0
  %v511 = vadd.f32 %v276, %v510
  %512 = vmatprep.mubr.bf16.mxu0 0
  %513 = vmatmul.mubr.bf16.gmra.mrb[0].mxu0 %v404
  %v514 = vpop.f32.mrb[0].mxu0
  %v515 = vadd.f32 %v280, %v514
  %v516 = vpop.f32.mrb[0].mxu0
  %v517 = vadd.f32 %v282, %v516
  %v518 = vpop.f32.mrb[0].mxu0
  %v519 = vadd.f32 %v284, %v518
  %v520 = vpop.f32.mrb[0].mxu0
  %v521 = vadd.f32 %v286, %v520
  %522 = vmatprep.mubr.bf16.mxu0 0
  %523 = vmatmul.mubr.bf16.gmra.mrb[0].mxu0 %v407
  %v524 = vpop.f32.mrb[0].mxu0
  %v525 = vadd.f32 %v290, %v524
  %v526 = vpop.f32.mrb[0].mxu0
  %v527 = vadd.f32 %v292, %v526
  %v528 = vpop.f32.mrb[0].mxu0
  %v529 = vadd.f32 %v294, %v528
  %v530 = vpop.f32.mrb[0].mxu0
  %v531 = vadd.f32 %v296, %v530
  %532 = vmatprep.mubr.bf16.mxu0 0
  %533 = vmatmul.mubr.bf16.gmra.mrb[0].mxu0 %v410
  %v534 = vpop.f32.mrb[0].mxu0
  %v535 = vadd.f32 %v300, %v534
  %v536 = vpop.f32.mrb[0].mxu0
  %v537 = vadd.f32 %v302, %v536
  %v538 = vpop.f32.mrb[0].mxu0
  %v539 = vadd.f32 %v304, %v538
  %v540 = vpop.f32.mrb[0].mxu0
  %v541 = vadd.f32 %v306, %v540
  %542 = vmatprep.mubr.bf16.mxu0 0
  %543 = vmatmul.mubr.bf16.gmra.mrb[0].mxu0 %v413
  %v544 = vpop.f32.mrb[0].mxu0
  %v545 = vadd.f32 %v310, %v544
  %v546 = vpop.f32.mrb[0].mxu0
  %v547 = vadd.f32 %v312, %v546
  %v548 = vpop.f32.mrb[0].mxu0
  %v549 = vadd.f32 %v314, %v548
  %v550 = vpop.f32.mrb[0].mxu0
  %v551 = vadd.f32 %v316, %v550
  %552 = vmatprep.mubr.bf16.mxu0 0
  %553 = vmatmul.mubr.bf16.gmra.mrb[0].mxu0 %v416
  %v554 = vpop.f32.mrb[0].mxu0
  %v555 = vadd.f32 %v320, %v554
  %v556 = vpop.f32.mrb[0].mxu0
  %v557 = vadd.f32 %v322, %v556
  %v558 = vpop.f32.mrb[0].mxu0
  %v559 = vadd.f32 %v324, %v558
  %v560 = vpop.f32.mrb[0].mxu0
  %v561 = vadd.f32 %v326, %v560
  %562 = vmatprep.mubr.bf16.mxu0 0
  %563 = vmatmul.mubr.bf16.gmra.mrb[0].mxu0 %v419
  %v564 = vpop.f32.mrb[0].mxu0
  %v565 = vadd.f32 %v330, %v564
  %v566 = vpop.f32.mrb[0].mxu0
  %v567 = vadd.f32 %v332, %v566
  %v568 = vpop.f32.mrb[0].mxu0
  %v569 = vadd.f32 %v334, %v568
  %v570 = vpop.f32.mrb[0].mxu0
  %v571 = vadd.f32 %v336, %v570
  %572 = vmatprep.mubr.bf16.mxu0 0
  %573 = vmatmul.mubr.bf16.gmra.mrb[0].mxu0 %v422
  %v574 = vpop.f32.mrb[0].mxu0
  %v575 = vadd.f32 %v340, %v574
  %v576 = vpop.f32.mrb[0].mxu0
  %v577 = vadd.f32 %v342, %v576
  %v578 = vpop.f32.mrb[0].mxu0
  %v579 = vadd.f32 %v344, %v578
  %v580 = vpop.f32.mrb[0].mxu0
  %v581 = vadd.f32 %v346, %v580
  %582 = vmatprep.mubr.bf16.mxu0 0
  %583 = vmatmul.mubr.bf16.gmra.mrb[0].mxu0 %v425
  %v584 = vpop.f32.mrb[0].mxu0
  %v585 = vadd.f32 %v350, %v584
  %v586 = vpop.f32.mrb[0].mxu0
  %v587 = vadd.f32 %v352, %v586
  %v588 = vpop.f32.mrb[0].mxu0
  %v589 = vadd.f32 %v354, %v588
  %v590 = vpop.f32.mrb[0].mxu0
  %v591 = vadd.f32 %v356, %v590
  %592 = vmatprep.mubr.bf16.mxu0 0
  %593 = vmatmul.mubr.bf16.gmra.mrb[0].mxu0 %v428
  %v594 = vpop.f32.mrb[0].mxu0
  %v595 = vadd.f32 %v360, %v594
  %v596 = vpop.f32.mrb[0].mxu0
  %v597 = vadd.f32 %v362, %v596
  %v598 = vpop.f32.mrb[0].mxu0
  %v599 = vadd.f32 %v364, %v598
  %v600 = vpop.f32.mrb[0].mxu0
  %v601 = vadd.f32 %v366, %v600
  %602 = vdwg.mxu0
  %v603 = vpack.c.bf16 %v92, %v91
  %s604 = scalar_lea.vmem %s1, 64
  %v605 = vld [vmem:[%s604] sm:$0xff]
  %v606 = vld [vmem:[%s604 + $0x8] sm:$0xff]
  %v607 = vld [vmem:[%s604 + $0x10] sm:$0xff]
  %v608 = vld [vmem:[%s604 + $0x18] sm:$0xff]
  %v613 = vunpack.c.l.b16 %v605
  %v614 = vunpack.c.h.b16 %v605
  %v615 = vunpack.c.l.b16 %v606
  %v616 = vunpack.c.h.b16 %v606
  %v617 = vunpack.c.l.b16 %v607
  %v618 = vunpack.c.h.b16 %v607
  %v619 = vunpack.c.l.b16 %v608
  %v620 = vunpack.c.h.b16 %v608
  %v621 = vpack.c.b16 %v615, %v613
  %v622 = vpack.c.b16 %v616, %v614
  %v623 = vpack.c.b16 %v619, %v617
  %v624 = vpack.c.b16 %v620, %v618
  %v630 = vsel %vm152, %v603, 0
  %632 = vmatprep.subr.bf16.mxu0 %v622
  %633 = vmatpush1.bf16.msra.mxu0 %v621
  %634 = vmatprep.subr.bf16.mxu0 %v624
  %635 = vmatpush1.bf16.msra.mxu0 %v623
  %636 = vmatprep.subr.bf16.mxu0 0
  %637 = vmatpush1.bf16.msra.mxu0 0
  %638 = vmatprep.subr.bf16.mxu0 0
  %639 = vmatpush1.bf16.msra.mxu0 0
  %640 = vmatprep.subr.bf16.mxu0 0
  %641 = vmatpush1.bf16.msra.mxu0 0
  %642 = vmatprep.subr.bf16.mxu0 0
  %643 = vmatpush1.bf16.msra.mxu0 0
  %644 = vmatprep.subr.bf16.mxu0 0
  %645 = vmatpush1.bf16.msra.mxu0 0
  %646 = vmatprep.subr.bf16.mxu0 0
  %647 = vmatpush1.bf16.msra.mxu0 0
  %648 = vmatprep.subr.bf16.mxu0 0
  %649 = vmatpush1.bf16.msra.mxu0 0
  %650 = vmatprep.subr.bf16.mxu0 0
  %651 = vmatpush1.bf16.msra.mxu0 0
  %652 = vmatprep.subr.bf16.mxu0 0
  %653 = vmatpush1.bf16.msra.mxu0 0
  %654 = vmatprep.subr.bf16.mxu0 0
  %655 = vmatpush1.bf16.msra.mxu0 0
  %656 = vmatprep.subr.bf16.mxu0 0
  %657 = vmatpush1.bf16.msra.mxu0 0
  %658 = vmatprep.subr.bf16.mxu0 0
  %659 = vmatpush1.bf16.msra.mxu0 0
  %660 = vmatprep.subr.bf16.mxu0 0
  %661 = vmatpush1.bf16.msra.mxu0 0
  %662 = vmatprep.subr.bf16.mxu0 0
  %663 = vmatpush1.bf16.msra.mxu0 0
  %664 = vmatprep.mubr.bf16.mxu0 0
  %665 = vmatmul.mubr.bf16.gmra.mrb[0].mxu0 %v392
  %v666 = vpop.f32.mrb[0].mxu0
  %v667 = vadd.f32 0.0, %v666
  %v668 = vpop.f32.mrb[0].mxu0
  %v669 = vadd.f32 0.0, %v668
  %v670 = vpop.f32.mrb[0].mxu0
  %v671 = vadd.f32 0.0, %v670
  %v672 = vpop.f32.mrb[0].mxu0
  %v673 = vadd.f32 0.0, %v672
  %674 = vmatprep.mubr.bf16.mxu0 0
  %675 = vmatmul.mubr.bf16.gmra.mrb[0].mxu0 %v395
  %v676 = vpop.f32.mrb[0].mxu0
  %v677 = vadd.f32 0.0, %v676
  %v678 = vpop.f32.mrb[0].mxu0
  %v679 = vadd.f32 0.0, %v678
  %v680 = vpop.f32.mrb[0].mxu0
  %v681 = vadd.f32 0.0, %v680
  %v682 = vpop.f32.mrb[0].mxu0
  %v683 = vadd.f32 0.0, %v682
  %684 = vmatprep.mubr.bf16.mxu0 0
  %685 = vmatmul.mubr.bf16.gmra.mrb[0].mxu0 %v398
  %v686 = vpop.f32.mrb[0].mxu0
  %v687 = vadd.f32 0.0, %v686
  %v688 = vpop.f32.mrb[0].mxu0
  %v689 = vadd.f32 0.0, %v688
  %v690 = vpop.f32.mrb[0].mxu0
  %v691 = vadd.f32 0.0, %v690
  %v692 = vpop.f32.mrb[0].mxu0
  %v693 = vadd.f32 0.0, %v692
  %694 = vmatprep.mubr.bf16.mxu0 0
  %695 = vmatmul.mubr.bf16.gmra.mrb[0].mxu0 %v401
  %v696 = vpop.f32.mrb[0].mxu0
  %v697 = vadd.f32 0.0, %v696
  %v698 = vpop.f32.mrb[0].mxu0
  %v699 = vadd.f32 0.0, %v698
  %v700 = vpop.f32.mrb[0].mxu0
  %v701 = vadd.f32 0.0, %v700
  %v702 = vpop.f32.mrb[0].mxu0
  %v703 = vadd.f32 0.0, %v702
  %704 = vmatprep.mubr.bf16.mxu0 0
  %705 = vmatmul.mubr.bf16.gmra.mrb[0].mxu0 %v404
  %v706 = vpop.f32.mrb[0].mxu0
  %v707 = vadd.f32 0.0, %v706
  %v708 = vpop.f32.mrb[0].mxu0
  %v709 = vadd.f32 0.0, %v708
  %v710 = vpop.f32.mrb[0].mxu0
  %v711 = vadd.f32 0.0, %v710
  %v712 = vpop.f32.mrb[0].mxu0
  %v713 = vadd.f32 0.0, %v712
  %714 = vmatprep.mubr.bf16.mxu0 0
  %715 = vmatmul.mubr.bf16.gmra.mrb[0].mxu0 %v407
  %v716 = vpop.f32.mrb[0].mxu0
  %v717 = vadd.f32 0.0, %v716
  %v718 = vpop.f32.mrb[0].mxu0
  %v719 = vadd.f32 0.0, %v718
  %v720 = vpop.f32.mrb[0].mxu0
  %v721 = vadd.f32 0.0, %v720
  %v722 = vpop.f32.mrb[0].mxu0
  %v723 = vadd.f32 0.0, %v722
  %724 = vmatprep.mubr.bf16.mxu0 0
  %725 = vmatmul.mubr.bf16.gmra.mrb[0].mxu0 %v410
  %v726 = vpop.f32.mrb[0].mxu0
  %v727 = vadd.f32 0.0, %v726
  %v728 = vpop.f32.mrb[0].mxu0
  %v729 = vadd.f32 0.0, %v728
  %v730 = vpop.f32.mrb[0].mxu0
  %v731 = vadd.f32 0.0, %v730
  %v732 = vpop.f32.mrb[0].mxu0
  %v733 = vadd.f32 0.0, %v732
  %734 = vmatprep.mubr.bf16.mxu0 0
  %735 = vmatmul.mubr.bf16.gmra.mrb[0].mxu0 %v413
  %v736 = vpop.f32.mrb[0].mxu0
  %v737 = vadd.f32 0.0, %v736
  %v738 = vpop.f32.mrb[0].mxu0
  %v739 = vadd.f32 0.0, %v738
  %v740 = vpop.f32.mrb[0].mxu0
  %v741 = vadd.f32 0.0, %v740
  %v742 = vpop.f32.mrb[0].mxu0
  %v743 = vadd.f32 0.0, %v742
  %744 = vmatprep.mubr.bf16.mxu0 0
  %745 = vmatmul.mubr.bf16.gmra.mrb[0].mxu0 %v416
  %v746 = vpop.f32.mrb[0].mxu0
  %v747 = vadd.f32 0.0, %v746
  %v748 = vpop.f32.mrb[0].mxu0
  %v749 = vadd.f32 0.0, %v748
  %v750 = vpop.f32.mrb[0].mxu0
  %v751 = vadd.f32 0.0, %v750
  %v752 = vpop.f32.mrb[0].mxu0
  %v753 = vadd.f32 0.0, %v752
  %754 = vmatprep.mubr.bf16.mxu0 0
  %755 = vmatmul.mubr.bf16.gmra.mrb[0].mxu0 %v419
  %v756 = vpop.f32.mrb[0].mxu0
  %v757 = vadd.f32 0.0, %v756
  %v758 = vpop.f32.mrb[0].mxu0
  %v759 = vadd.f32 0.0, %v758
  %v760 = vpop.f32.mrb[0].mxu0
  %v761 = vadd.f32 0.0, %v760
  %v762 = vpop.f32.mrb[0].mxu0
  %v763 = vadd.f32 0.0, %v762
  %764 = vmatprep.mubr.bf16.mxu0 0
  %765 = vmatmul.mubr.bf16.gmra.mrb[0].mxu0 %v422
  %v766 = vpop.f32.mrb[0].mxu0
  %v767 = vadd.f32 0.0, %v766
  %v768 = vpop.f32.mrb[0].mxu0
  %v769 = vadd.f32 0.0, %v768
  %v770 = vpop.f32.mrb[0].mxu0
  %v771 = vadd.f32 0.0, %v770
  %v772 = vpop.f32.mrb[0].mxu0
  %v773 = vadd.f32 0.0, %v772
  %774 = vmatprep.mubr.bf16.mxu0 0
  %775 = vmatmul.mubr.bf16.gmra.mrb[0].mxu0 %v425
  %v776 = vpop.f32.mrb[0].mxu0
  %v777 = vadd.f32 0.0, %v776
  %v778 = vpop.f32.mrb[0].mxu0
  %v779 = vadd.f32 0.0, %v778
  %v780 = vpop.f32.mrb[0].mxu0
  %v781 = vadd.f32 0.0, %v780
  %v782 = vpop.f32.mrb[0].mxu0
  %v783 = vadd.f32 0.0, %v782
  %784 = vmatprep.mubr.bf16.mxu0 0
  %785 = vmatmul.mubr.bf16.gmra.mrb[0].mxu0 %v428
  %v786 = vpop.f32.mrb[0].mxu0
  %v787 = vadd.f32 0.0, %v786
  %v788 = vpop.f32.mrb[0].mxu0
  %v789 = vadd.f32 0.0, %v788
  %v790 = vpop.f32.mrb[0].mxu0
  %v791 = vadd.f32 0.0, %v790
  %v792 = vpop.f32.mrb[0].mxu0
  %v793 = vadd.f32 0.0, %v792
  %794 = vmatprep.mubr.bf16.mxu0 0
  %795 = vmatmul.mubr.bf16.gmra.mrb[0].mxu0 %v630
  %v796 = vpop.f32.mrb[0].mxu0
  %v797 = vadd.f32 0.0, %v796
  %v798 = vpop.f32.mrb[0].mxu0
  %v799 = vadd.f32 0.0, %v798
  %v800 = vpop.f32.mrb[0].mxu0
  %v801 = vadd.f32 0.0, %v800
  %v802 = vpop.f32.mrb[0].mxu0
  %v803 = vadd.f32 0.0, %v802
  %804 = vdwg.mxu0
  %v805 = vadd.f32 %v465, %v667
  %v806 = vadd.f32 %v467, %v669
  %v807 = vadd.f32 %v469, %v671
  %v808 = vadd.f32 %v471, %v673
  %v809 = vadd.f32 %v475, %v677
  %v810 = vadd.f32 %v477, %v679
  %v811 = vadd.f32 %v479, %v681
  %v812 = vadd.f32 %v481, %v683
  %v813 = vadd.f32 %v485, %v687
  %v814 = vadd.f32 %v487, %v689
  %v815 = vadd.f32 %v489, %v691
  %v816 = vadd.f32 %v491, %v693
  %v817 = vadd.f32 %v495, %v697
  %v818 = vadd.f32 %v497, %v699
  %v819 = vadd.f32 %v499, %v701
  %v820 = vadd.f32 %v501, %v703
  %v821 = vadd.f32 %v505, %v707
  %v822 = vadd.f32 %v507, %v709
  %v823 = vadd.f32 %v509, %v711
  %v824 = vadd.f32 %v511, %v713
  %v825 = vadd.f32 %v515, %v717
  %v826 = vadd.f32 %v517, %v719
  %v827 = vadd.f32 %v519, %v721
  %v828 = vadd.f32 %v521, %v723
  %v829 = vadd.f32 %v525, %v727
  %v830 = vadd.f32 %v527, %v729
  %v831 = vadd.f32 %v529, %v731
  %v832 = vadd.f32 %v531, %v733
  %v833 = vadd.f32 %v535, %v737
  %v834 = vadd.f32 %v537, %v739
  %v835 = vadd.f32 %v539, %v741
  %v836 = vadd.f32 %v541, %v743
  %v837 = vadd.f32 %v545, %v747
  %v838 = vadd.f32 %v547, %v749
  %v839 = vadd.f32 %v549, %v751
  %v840 = vadd.f32 %v551, %v753
  %v841 = vadd.f32 %v555, %v757
  %v842 = vadd.f32 %v557, %v759
  %v843 = vadd.f32 %v559, %v761
  %v844 = vadd.f32 %v561, %v763
  %v845 = vadd.f32 %v565, %v767
  %v846 = vadd.f32 %v567, %v769
  %v847 = vadd.f32 %v569, %v771
  %v848 = vadd.f32 %v571, %v773
  %v849 = vadd.f32 %v575, %v777
  %v850 = vadd.f32 %v577, %v779
  %v851 = vadd.f32 %v579, %v781
  %v852 = vadd.f32 %v581, %v783
  %v853 = vadd.f32 %v585, %v787
  %v854 = vadd.f32 %v587, %v789
  %v855 = vadd.f32 %v589, %v791
  %v856 = vadd.f32 %v591, %v793
  %v857 = vadd.f32 %v595, %v797
  %v858 = vadd.f32 %v597, %v799
  %v859 = vadd.f32 %v599, %v801
  %v860 = vadd.f32 %v601, %v803
  %v861 = vpack.c.bf16 %v93, %v92
  %s862 = scalar_lea.vmem %s1, 96
  %v863 = vld [vmem:[%s862] sm:$0xff]
  %v864 = vld [vmem:[%s862 + $0x8] sm:$0xff]
  %v865 = vld [vmem:[%s862 + $0x10] sm:$0xff]
  %v866 = vld [vmem:[%s862 + $0x18] sm:$0xff]
  %v871 = vunpack.c.l.b16 %v863
  %v872 = vunpack.c.h.b16 %v863
  %v873 = vunpack.c.l.b16 %v864
  %v874 = vunpack.c.h.b16 %v864
  %v875 = vunpack.c.l.b16 %v865
  %v876 = vunpack.c.h.b16 %v865
  %v877 = vunpack.c.l.b16 %v866
  %v878 = vunpack.c.h.b16 %v866
  %v879 = vpack.c.b16 %v873, %v871
  %v880 = vpack.c.b16 %v874, %v872
  %v881 = vpack.c.b16 %v877, %v875
  %v882 = vpack.c.b16 %v878, %v876
  %v888 = vsel %vm152, %v861, 0
  %890 = vmatprep.subr.bf16.mxu0 %v880
  %891 = vmatpush1.bf16.msra.mxu0 %v879
  %892 = vmatprep.subr.bf16.mxu0 %v882
  %893 = vmatpush1.bf16.msra.mxu0 %v881
  %894 = vmatprep.subr.bf16.mxu0 0
  %895 = vmatpush1.bf16.msra.mxu0 0
  %896 = vmatprep.subr.bf16.mxu0 0
  %897 = vmatpush1.bf16.msra.mxu0 0
  %898 = vmatprep.subr.bf16.mxu0 0
  %899 = vmatpush1.bf16.msra.mxu0 0
  %900 = vmatprep.subr.bf16.mxu0 0
  %901 = vmatpush1.bf16.msra.mxu0 0
  %902 = vmatprep.subr.bf16.mxu0 0
  %903 = vmatpush1.bf16.msra.mxu0 0
  %904 = vmatprep.subr.bf16.mxu0 0
  %905 = vmatpush1.bf16.msra.mxu0 0
  %906 = vmatprep.subr.bf16.mxu0 0
  %907 = vmatpush1.bf16.msra.mxu0 0
  %908 = vmatprep.subr.bf16.mxu0 0
  %909 = vmatpush1.bf16.msra.mxu0 0
  %910 = vmatprep.subr.bf16.mxu0 0
  %911 = vmatpush1.bf16.msra.mxu0 0
  %912 = vmatprep.subr.bf16.mxu0 0
  %913 = vmatpush1.bf16.msra.mxu0 0
  %914 = vmatprep.subr.bf16.mxu0 0
  %915 = vmatpush1.bf16.msra.mxu0 0
  %916 = vmatprep.subr.bf16.mxu0 0
  %917 = vmatpush1.bf16.msra.mxu0 0
  %918 = vmatprep.subr.bf16.mxu0 0
  %919 = vmatpush1.bf16.msra.mxu0 0
  %920 = vmatprep.subr.bf16.mxu0 0
  %921 = vmatpush1.bf16.msra.mxu0 0
  %922 = vmatprep.mubr.bf16.mxu0 0
  %923 = vmatmul.mubr.bf16.gmra.mrb[0].mxu0 %v157
  %v924 = vpop.f32.mrb[0].mxu0
  %v925 = vadd.f32 0.0, %v924
  %v926 = vpop.f32.mrb[0].mxu0
  %v927 = vadd.f32 0.0, %v926
  %v928 = vpop.f32.mrb[0].mxu0
  %v929 = vadd.f32 0.0, %v928
  %v930 = vpop.f32.mrb[0].mxu0
  %v931 = vadd.f32 0.0, %v930
  %932 = vmatprep.mubr.bf16.mxu0 0
  %933 = vmatmul.mubr.bf16.gmra.mrb[0].mxu0 %v160
  %v934 = vpop.f32.mrb[0].mxu0
  %v935 = vadd.f32 0.0, %v934
  %v936 = vpop.f32.mrb[0].mxu0
  %v937 = vadd.f32 0.0, %v936
  %v938 = vpop.f32.mrb[0].mxu0
  %v939 = vadd.f32 0.0, %v938
  %v940 = vpop.f32.mrb[0].mxu0
  %v941 = vadd.f32 0.0, %v940
  %942 = vmatprep.mubr.bf16.mxu0 0
  %943 = vmatmul.mubr.bf16.gmra.mrb[0].mxu0 %v163
  %v944 = vpop.f32.mrb[0].mxu0
  %v945 = vadd.f32 0.0, %v944
  %v946 = vpop.f32.mrb[0].mxu0
  %v947 = vadd.f32 0.0, %v946
  %v948 = vpop.f32.mrb[0].mxu0
  %v949 = vadd.f32 0.0, %v948
  %v950 = vpop.f32.mrb[0].mxu0
  %v951 = vadd.f32 0.0, %v950
  %952 = vmatprep.mubr.bf16.mxu0 0
  %953 = vmatmul.mubr.bf16.gmra.mrb[0].mxu0 %v166
  %v954 = vpop.f32.mrb[0].mxu0
  %v955 = vadd.f32 0.0, %v954
  %v956 = vpop.f32.mrb[0].mxu0
  %v957 = vadd.f32 0.0, %v956
  %v958 = vpop.f32.mrb[0].mxu0
  %v959 = vadd.f32 0.0, %v958
  %v960 = vpop.f32.mrb[0].mxu0
  %v961 = vadd.f32 0.0, %v960
  %962 = vmatprep.mubr.bf16.mxu0 0
  %963 = vmatmul.mubr.bf16.gmra.mrb[0].mxu0 %v169
  %v964 = vpop.f32.mrb[0].mxu0
  %v965 = vadd.f32 0.0, %v964
  %v966 = vpop.f32.mrb[0].mxu0
  %v967 = vadd.f32 0.0, %v966
  %v968 = vpop.f32.mrb[0].mxu0
  %v969 = vadd.f32 0.0, %v968
  %v970 = vpop.f32.mrb[0].mxu0
  %v971 = vadd.f32 0.0, %v970
  %972 = vmatprep.mubr.bf16.mxu0 0
  %973 = vmatmul.mubr.bf16.gmra.mrb[0].mxu0 %v172
  %v974 = vpop.f32.mrb[0].mxu0
  %v975 = vadd.f32 0.0, %v974
  %v976 = vpop.f32.mrb[0].mxu0
  %v977 = vadd.f32 0.0, %v976
  %v978 = vpop.f32.mrb[0].mxu0
  %v979 = vadd.f32 0.0, %v978
  %v980 = vpop.f32.mrb[0].mxu0
  %v981 = vadd.f32 0.0, %v980
  %982 = vmatprep.mubr.bf16.mxu0 0
  %983 = vmatmul.mubr.bf16.gmra.mrb[0].mxu0 %v175
  %v984 = vpop.f32.mrb[0].mxu0
  %v985 = vadd.f32 0.0, %v984
  %v986 = vpop.f32.mrb[0].mxu0
  %v987 = vadd.f32 0.0, %v986
  %v988 = vpop.f32.mrb[0].mxu0
  %v989 = vadd.f32 0.0, %v988
  %v990 = vpop.f32.mrb[0].mxu0
  %v991 = vadd.f32 0.0, %v990
  %992 = vmatprep.mubr.bf16.mxu0 0
  %993 = vmatmul.mubr.bf16.gmra.mrb[0].mxu0 %v178
  %v994 = vpop.f32.mrb[0].mxu0
  %v995 = vadd.f32 0.0, %v994
  %v996 = vpop.f32.mrb[0].mxu0
  %v997 = vadd.f32 0.0, %v996
  %v998 = vpop.f32.mrb[0].mxu0
  %v999 = vadd.f32 0.0, %v998
  %v1000 = vpop.f32.mrb[0].mxu0
  %v1001 = vadd.f32 0.0, %v1000
  %1002 = vmatprep.mubr.bf16.mxu0 0
  %1003 = vmatmul.mubr.bf16.gmra.mrb[0].mxu0 %v181
  %v1004 = vpop.f32.mrb[0].mxu0
  %v1005 = vadd.f32 0.0, %v1004
  %v1006 = vpop.f32.mrb[0].mxu0
  %v1007 = vadd.f32 0.0, %v1006
  %v1008 = vpop.f32.mrb[0].mxu0
  %v1009 = vadd.f32 0.0, %v1008
  %v1010 = vpop.f32.mrb[0].mxu0
  %v1011 = vadd.f32 0.0, %v1010
  %1012 = vmatprep.mubr.bf16.mxu0 0
  %1013 = vmatmul.mubr.bf16.gmra.mrb[0].mxu0 %v184
  %v1014 = vpop.f32.mrb[0].mxu0
  %v1015 = vadd.f32 0.0, %v1014
  %v1016 = vpop.f32.mrb[0].mxu0
  %v1017 = vadd.f32 0.0, %v1016
  %v1018 = vpop.f32.mrb[0].mxu0
  %v1019 = vadd.f32 0.0, %v1018
  %v1020 = vpop.f32.mrb[0].mxu0
  %v1021 = vadd.f32 0.0, %v1020
  %1022 = vmatprep.mubr.bf16.mxu0 0
  %1023 = vmatmul.mubr.bf16.gmra.mrb[0].mxu0 %v187
  %v1024 = vpop.f32.mrb[0].mxu0
  %v1025 = vadd.f32 0.0, %v1024
  %v1026 = vpop.f32.mrb[0].mxu0
  %v1027 = vadd.f32 0.0, %v1026
  %v1028 = vpop.f32.mrb[0].mxu0
  %v1029 = vadd.f32 0.0, %v1028
  %v1030 = vpop.f32.mrb[0].mxu0
  %v1031 = vadd.f32 0.0, %v1030
  %1032 = vmatprep.mubr.bf16.mxu0 0
  %1033 = vmatmul.mubr.bf16.gmra.mrb[0].mxu0 %v190
  %v1034 = vpop.f32.mrb[0].mxu0
  %v1035 = vadd.f32 0.0, %v1034
  %v1036 = vpop.f32.mrb[0].mxu0
  %v1037 = vadd.f32 0.0, %v1036
  %v1038 = vpop.f32.mrb[0].mxu0
  %v1039 = vadd.f32 0.0, %v1038
  %v1040 = vpop.f32.mrb[0].mxu0
  %v1041 = vadd.f32 0.0, %v1040
  %1042 = vmatprep.mubr.bf16.mxu0 0
  %1043 = vmatmul.mubr.bf16.gmra.mrb[0].mxu0 %v193
  %v1044 = vpop.f32.mrb[0].mxu0
  %v1045 = vadd.f32 0.0, %v1044
  %v1046 = vpop.f32.mrb[0].mxu0
  %v1047 = vadd.f32 0.0, %v1046
  %v1048 = vpop.f32.mrb[0].mxu0
  %v1049 = vadd.f32 0.0, %v1048
  %v1050 = vpop.f32.mrb[0].mxu0
  %v1051 = vadd.f32 0.0, %v1050
  %1052 = vmatprep.mubr.bf16.mxu0 0
  %1053 = vmatmul.mubr.bf16.gmra.mrb[0].mxu0 %v888
  %v1054 = vpop.f32.mrb[0].mxu0
  %v1055 = vadd.f32 0.0, %v1054
  %v1056 = vpop.f32.mrb[0].mxu0
  %v1057 = vadd.f32 0.0, %v1056
  %v1058 = vpop.f32.mrb[0].mxu0
  %v1059 = vadd.f32 0.0, %v1058
  %v1060 = vpop.f32.mrb[0].mxu0
  %v1061 = vadd.f32 0.0, %v1060
  %1062 = vdwg.mxu0
  %v1063 = vadd.f32 %v805, %v925
  %v1064 = vadd.f32 %v806, %v927
  %v1065 = vadd.f32 %v807, %v929
  %v1066 = vadd.f32 %v808, %v931
  %v1067 = vadd.f32 %v809, %v935
  %v1068 = vadd.f32 %v810, %v937
  %v1069 = vadd.f32 %v811, %v939
  %v1070 = vadd.f32 %v812, %v941
  %v1071 = vadd.f32 %v813, %v945
  %v1072 = vadd.f32 %v814, %v947
  %v1073 = vadd.f32 %v815, %v949
  %v1074 = vadd.f32 %v816, %v951
  %v1075 = vadd.f32 %v817, %v955
  %v1076 = vadd.f32 %v818, %v957
  %v1077 = vadd.f32 %v819, %v959
  %v1078 = vadd.f32 %v820, %v961
  %v1079 = vadd.f32 %v821, %v965
  %v1080 = vadd.f32 %v822, %v967
  %v1081 = vadd.f32 %v823, %v969
  %v1082 = vadd.f32 %v824, %v971
  %v1083 = vadd.f32 %v825, %v975
  %v1084 = vadd.f32 %v826, %v977
  %v1085 = vadd.f32 %v827, %v979
  %v1086 = vadd.f32 %v828, %v981
  %v1087 = vadd.f32 %v829, %v985
  %v1088 = vadd.f32 %v830, %v987
  %v1089 = vadd.f32 %v831, %v989
  %v1090 = vadd.f32 %v832, %v991
  %v1091 = vadd.f32 %v833, %v995
  %v1092 = vadd.f32 %v834, %v997
  %v1093 = vadd.f32 %v835, %v999
  %v1094 = vadd.f32 %v836, %v1001
  %v1095 = vadd.f32 %v837, %v1005
  %v1096 = vadd.f32 %v838, %v1007
  %v1097 = vadd.f32 %v839, %v1009
  %v1098 = vadd.f32 %v840, %v1011
  %v1099 = vadd.f32 %v841, %v1015
  %v1100 = vadd.f32 %v842, %v1017
  %v1101 = vadd.f32 %v843, %v1019
  %v1102 = vadd.f32 %v844, %v1021
  %v1103 = vadd.f32 %v845, %v1025
  %v1104 = vadd.f32 %v846, %v1027
  %v1105 = vadd.f32 %v847, %v1029
  %v1106 = vadd.f32 %v848, %v1031
  %v1107 = vadd.f32 %v849, %v1035
  %v1108 = vadd.f32 %v850, %v1037
  %v1109 = vadd.f32 %v851, %v1039
  %v1110 = vadd.f32 %v852, %v1041
  %v1111 = vadd.f32 %v853, %v1045
  %v1112 = vadd.f32 %v854, %v1047
  %v1113 = vadd.f32 %v855, %v1049
  %v1114 = vadd.f32 %v856, %v1051
  %v1115 = vadd.f32 %v857, %v1055
  %v1116 = vadd.f32 %v858, %v1057
  %v1117 = vadd.f32 %v859, %v1059
  %v1118 = vadd.f32 %v860, %v1061
  %v1119 = vpack.c.bf16 %v94, %v93
  %s1120 = scalar_lea.vmem %s1, 128
  %v1121 = vld [vmem:[%s1120] sm:$0xff]
  %v1122 = vld [vmem:[%s1120 + $0x8] sm:$0xff]
  %v1123 = vld [vmem:[%s1120 + $0x10] sm:$0xff]
  %v1124 = vld [vmem:[%s1120 + $0x18] sm:$0xff]
  %v1129 = vunpack.c.l.b16 %v1121
  %v1130 = vunpack.c.h.b16 %v1121
  %v1131 = vunpack.c.l.b16 %v1122
  %v1132 = vunpack.c.h.b16 %v1122
  %v1133 = vunpack.c.l.b16 %v1123
  %v1134 = vunpack.c.h.b16 %v1123
  %v1135 = vunpack.c.l.b16 %v1124
  %v1136 = vunpack.c.h.b16 %v1124
  %v1137 = vpack.c.b16 %v1131, %v1129
  %v1138 = vpack.c.b16 %v1132, %v1130
  %v1139 = vpack.c.b16 %v1135, %v1133
  %v1140 = vpack.c.b16 %v1136, %v1134
  %v1146 = vsel %vm152, %v1119, 0
  %1148 = vmatprep.subr.bf16.mxu0 %v1138
  %1149 = vmatpush1.bf16.msra.mxu0 %v1137
  %1150 = vmatprep.subr.bf16.mxu0 %v1140
  %1151 = vmatpush1.bf16.msra.mxu0 %v1139
  %1152 = vmatprep.subr.bf16.mxu0 0
  %1153 = vmatpush1.bf16.msra.mxu0 0
  %1154 = vmatprep.subr.bf16.mxu0 0
  %1155 = vmatpush1.bf16.msra.mxu0 0
  %1156 = vmatprep.subr.bf16.mxu0 0
  %1157 = vmatpush1.bf16.msra.mxu0 0
  %1158 = vmatprep.subr.bf16.mxu0 0
  %1159 = vmatpush1.bf16.msra.mxu0 0
  %1160 = vmatprep.subr.bf16.mxu0 0
  %1161 = vmatpush1.bf16.msra.mxu0 0
  %1162 = vmatprep.subr.bf16.mxu0 0
  %1163 = vmatpush1.bf16.msra.mxu0 0
  %1164 = vmatprep.subr.bf16.mxu0 0
  %1165 = vmatpush1.bf16.msra.mxu0 0
  %1166 = vmatprep.subr.bf16.mxu0 0
  %1167 = vmatpush1.bf16.msra.mxu0 0
  %1168 = vmatprep.subr.bf16.mxu0 0
  %1169 = vmatpush1.bf16.msra.mxu0 0
  %1170 = vmatprep.subr.bf16.mxu0 0
  %1171 = vmatpush1.bf16.msra.mxu0 0
  %1172 = vmatprep.subr.bf16.mxu0 0
  %1173 = vmatpush1.bf16.msra.mxu0 0
  %1174 = vmatprep.subr.bf16.mxu0 0
  %1175 = vmatpush1.bf16.msra.mxu0 0
  %1176 = vmatprep.subr.bf16.mxu0 0
  %1177 = vmatpush1.bf16.msra.mxu0 0
  %1178 = vmatprep.subr.bf16.mxu0 0
  %1179 = vmatpush1.bf16.msra.mxu0 0
  %1180 = vmatprep.mubr.bf16.mxu0 0
  %1181 = vmatmul.mubr.bf16.gmra.mrb[0].mxu0 %v395
  %v1182 = vpop.f32.mrb[0].mxu0
  %v1183 = vadd.f32 0.0, %v1182
  %v1184 = vpop.f32.mrb[0].mxu0
  %v1185 = vadd.f32 0.0, %v1184
  %v1186 = vpop.f32.mrb[0].mxu0
  %v1187 = vadd.f32 0.0, %v1186
  %v1188 = vpop.f32.mrb[0].mxu0
  %v1189 = vadd.f32 0.0, %v1188
  %1190 = vmatprep.mubr.bf16.mxu0 0
  %1191 = vmatmul.mubr.bf16.gmra.mrb[0].mxu0 %v398
  %v1192 = vpop.f32.mrb[0].mxu0
  %v1193 = vadd.f32 0.0, %v1192
  %v1194 = vpop.f32.mrb[0].mxu0
  %v1195 = vadd.f32 0.0, %v1194
  %v1196 = vpop.f32.mrb[0].mxu0
  %v1197 = vadd.f32 0.0, %v1196
  %v1198 = vpop.f32.mrb[0].mxu0
  %v1199 = vadd.f32 0.0, %v1198
  %1200 = vmatprep.mubr.bf16.mxu0 0
  %1201 = vmatmul.mubr.bf16.gmra.mrb[0].mxu0 %v401
  %v1202 = vpop.f32.mrb[0].mxu0
  %v1203 = vadd.f32 0.0, %v1202
  %v1204 = vpop.f32.mrb[0].mxu0
  %v1205 = vadd.f32 0.0, %v1204
  %v1206 = vpop.f32.mrb[0].mxu0
  %v1207 = vadd.f32 0.0, %v1206
  %v1208 = vpop.f32.mrb[0].mxu0
  %v1209 = vadd.f32 0.0, %v1208
  %1210 = vmatprep.mubr.bf16.mxu0 0
  %1211 = vmatmul.mubr.bf16.gmra.mrb[0].mxu0 %v404
  %v1212 = vpop.f32.mrb[0].mxu0
  %v1213 = vadd.f32 0.0, %v1212
  %v1214 = vpop.f32.mrb[0].mxu0
  %v1215 = vadd.f32 0.0, %v1214
  %v1216 = vpop.f32.mrb[0].mxu0
  %v1217 = vadd.f32 0.0, %v1216
  %v1218 = vpop.f32.mrb[0].mxu0
  %v1219 = vadd.f32 0.0, %v1218
  %1220 = vmatprep.mubr.bf16.mxu0 0
  %1221 = vmatmul.mubr.bf16.gmra.mrb[0].mxu0 %v407
  %v1222 = vpop.f32.mrb[0].mxu0
  %v1223 = vadd.f32 0.0, %v1222
  %v1224 = vpop.f32.mrb[0].mxu0
  %v1225 = vadd.f32 0.0, %v1224
  %v1226 = vpop.f32.mrb[0].mxu0
  %v1227 = vadd.f32 0.0, %v1226
  %v1228 = vpop.f32.mrb[0].mxu0
  %v1229 = vadd.f32 0.0, %v1228
  %1230 = vmatprep.mubr.bf16.mxu0 0
  %1231 = vmatmul.mubr.bf16.gmra.mrb[0].mxu0 %v410
  %v1232 = vpop.f32.mrb[0].mxu0
  %v1233 = vadd.f32 0.0, %v1232
  %v1234 = vpop.f32.mrb[0].mxu0
  %v1235 = vadd.f32 0.0, %v1234
  %v1236 = vpop.f32.mrb[0].mxu0
  %v1237 = vadd.f32 0.0, %v1236
  %v1238 = vpop.f32.mrb[0].mxu0
  %v1239 = vadd.f32 0.0, %v1238
  %1240 = vmatprep.mubr.bf16.mxu0 0
  %1241 = vmatmul.mubr.bf16.gmra.mrb[0].mxu0 %v413
  %v1242 = vpop.f32.mrb[0].mxu0
  %v1243 = vadd.f32 0.0, %v1242
  %v1244 = vpop.f32.mrb[0].mxu0
  %v1245 = vadd.f32 0.0, %v1244
  %v1246 = vpop.f32.mrb[0].mxu0
  %v1247 = vadd.f32 0.0, %v1246
  %v1248 = vpop.f32.mrb[0].mxu0
  %v1249 = vadd.f32 0.0, %v1248
  %1250 = vmatprep.mubr.bf16.mxu0 0
  %1251 = vmatmul.mubr.bf16.gmra.mrb[0].mxu0 %v416
  %v1252 = vpop.f32.mrb[0].mxu0
  %v1253 = vadd.f32 0.0, %v1252
  %v1254 = vpop.f32.mrb[0].mxu0
  %v1255 = vadd.f32 0.0, %v1254
  %v1256 = vpop.f32.mrb[0].mxu0
  %v1257 = vadd.f32 0.0, %v1256
  %v1258 = vpop.f32.mrb[0].mxu0
  %v1259 = vadd.f32 0.0, %v1258
  %1260 = vmatprep.mubr.bf16.mxu0 0
  %1261 = vmatmul.mubr.bf16.gmra.mrb[0].mxu0 %v419
  %v1262 = vpop.f32.mrb[0].mxu0
  %v1263 = vadd.f32 0.0, %v1262
  %v1264 = vpop.f32.mrb[0].mxu0
  %v1265 = vadd.f32 0.0, %v1264
  %v1266 = vpop.f32.mrb[0].mxu0
  %v1267 = vadd.f32 0.0, %v1266
  %v1268 = vpop.f32.mrb[0].mxu0
  %v1269 = vadd.f32 0.0, %v1268
  %1270 = vmatprep.mubr.bf16.mxu0 0
  %1271 = vmatmul.mubr.bf16.gmra.mrb[0].mxu0 %v422
  %v1272 = vpop.f32.mrb[0].mxu0
  %v1273 = vadd.f32 0.0, %v1272
  %v1274 = vpop.f32.mrb[0].mxu0
  %v1275 = vadd.f32 0.0, %v1274
  %v1276 = vpop.f32.mrb[0].mxu0
  %v1277 = vadd.f32 0.0, %v1276
  %v1278 = vpop.f32.mrb[0].mxu0
  %v1279 = vadd.f32 0.0, %v1278
  %1280 = vmatprep.mubr.bf16.mxu0 0
  %1281 = vmatmul.mubr.bf16.gmra.mrb[0].mxu0 %v425
  %v1282 = vpop.f32.mrb[0].mxu0
  %v1283 = vadd.f32 0.0, %v1282
  %v1284 = vpop.f32.mrb[0].mxu0
  %v1285 = vadd.f32 0.0, %v1284
  %v1286 = vpop.f32.mrb[0].mxu0
  %v1287 = vadd.f32 0.0, %v1286
  %v1288 = vpop.f32.mrb[0].mxu0
  %v1289 = vadd.f32 0.0, %v1288
  %1290 = vmatprep.mubr.bf16.mxu0 0
  %1291 = vmatmul.mubr.bf16.gmra.mrb[0].mxu0 %v428
  %v1292 = vpop.f32.mrb[0].mxu0
  %v1293 = vadd.f32 0.0, %v1292
  %v1294 = vpop.f32.mrb[0].mxu0
  %v1295 = vadd.f32 0.0, %v1294
  %v1296 = vpop.f32.mrb[0].mxu0
  %v1297 = vadd.f32 0.0, %v1296
  %v1298 = vpop.f32.mrb[0].mxu0
  %v1299 = vadd.f32 0.0, %v1298
  %1300 = vmatprep.mubr.bf16.mxu0 0
  %1301 = vmatmul.mubr.bf16.gmra.mrb[0].mxu0 %v630
  %v1302 = vpop.f32.mrb[0].mxu0
  %v1303 = vadd.f32 0.0, %v1302
  %v1304 = vpop.f32.mrb[0].mxu0
  %v1305 = vadd.f32 0.0, %v1304
  %v1306 = vpop.f32.mrb[0].mxu0
  %v1307 = vadd.f32 0.0, %v1306
  %v1308 = vpop.f32.mrb[0].mxu0
  %v1309 = vadd.f32 0.0, %v1308
  %1310 = vmatprep.mubr.bf16.mxu0 0
  %1311 = vmatmul.mubr.bf16.gmra.mrb[0].mxu0 %v1146
  %v1312 = vpop.f32.mrb[0].mxu0
  %v1313 = vadd.f32 0.0, %v1312
  %v1314 = vpop.f32.mrb[0].mxu0
  %v1315 = vadd.f32 0.0, %v1314
  %v1316 = vpop.f32.mrb[0].mxu0
  %v1317 = vadd.f32 0.0, %v1316
  %v1318 = vpop.f32.mrb[0].mxu0
  %v1319 = vadd.f32 0.0, %v1318
  %1320 = vdwg.mxu0
  %v1321 = vadd.f32 %v1063, %v1183
  %v1322 = vadd.f32 %v1064, %v1185
  %v1323 = vadd.f32 %v1065, %v1187
  %v1324 = vadd.f32 %v1066, %v1189
  %v1325 = vadd.f32 %v1067, %v1193
  %v1326 = vadd.f32 %v1068, %v1195
  %v1327 = vadd.f32 %v1069, %v1197
  %v1328 = vadd.f32 %v1070, %v1199
  %v1329 = vadd.f32 %v1071, %v1203
  %v1330 = vadd.f32 %v1072, %v1205
  %v1331 = vadd.f32 %v1073, %v1207
  %v1332 = vadd.f32 %v1074, %v1209
  %v1333 = vadd.f32 %v1075, %v1213
  %v1334 = vadd.f32 %v1076, %v1215
  %v1335 = vadd.f32 %v1077, %v1217
  %v1336 = vadd.f32 %v1078, %v1219
  %v1337 = vadd.f32 %v1079, %v1223
  %v1338 = vadd.f32 %v1080, %v1225
  %v1339 = vadd.f32 %v1081, %v1227
  %v1340 = vadd.f32 %v1082, %v1229
  %v1341 = vadd.f32 %v1083, %v1233
  %v1342 = vadd.f32 %v1084, %v1235
  %v1343 = vadd.f32 %v1085, %v1237
  %v1344 = vadd.f32 %v1086, %v1239
  %v1345 = vadd.f32 %v1087, %v1243
  %v1346 = vadd.f32 %v1088, %v1245
  %v1347 = vadd.f32 %v1089, %v1247
  %v1348 = vadd.f32 %v1090, %v1249
  %v1349 = vadd.f32 %v1091, %v1253
  %v1350 = vadd.f32 %v1092, %v1255
  %v1351 = vadd.f32 %v1093, %v1257
  %v1352 = vadd.f32 %v1094, %v1259
  %v1353 = vadd.f32 %v1095, %v1263
  %v1354 = vadd.f32 %v1096, %v1265
  %v1355 = vadd.f32 %v1097, %v1267
  %v1356 = vadd.f32 %v1098, %v1269
  %v1357 = vadd.f32 %v1099, %v1273
  %v1358 = vadd.f32 %v1100, %v1275
  %v1359 = vadd.f32 %v1101, %v1277
  %v1360 = vadd.f32 %v1102, %v1279
  %v1361 = vadd.f32 %v1103, %v1283
  %v1362 = vadd.f32 %v1104, %v1285
  %v1363 = vadd.f32 %v1105, %v1287
  %v1364 = vadd.f32 %v1106, %v1289
  %v1365 = vadd.f32 %v1107, %v1293
  %v1366 = vadd.f32 %v1108, %v1295
  %v1367 = vadd.f32 %v1109, %v1297
  %v1368 = vadd.f32 %v1110, %v1299
  %v1369 = vadd.f32 %v1111, %v1303
  %v1370 = vadd.f32 %v1112, %v1305
  %v1371 = vadd.f32 %v1113, %v1307
  %v1372 = vadd.f32 %v1114, %v1309
  %v1373 = vadd.f32 %v1115, %v1313
  %v1374 = vadd.f32 %v1116, %v1315
  %v1375 = vadd.f32 %v1117, %v1317
  %v1376 = vadd.f32 %v1118, %v1319
  %v1377 = vld [vmem:[%s2] sm:$0x3]
  %v1379 = vlaneseq
  %v1380 = vshrl.u32 %v1379, 7
  %v1381 = vsub.s32 0, %v1380
  %v1382 = vrot.slane %v1377, %v1381
  %v1383 = vlaneseq
  %v1384 = vshrl.u32 %v1383, 7
  %v1385 = vsub.s32 1, %v1384
  %v1386 = vrot.slane %v1377, %v1385
  %v1389 = vadd.f32 %v1321, %v1382
  %v1390 = vadd.f32 %v1322, %v1386
  %v1391 = vadd.f32 %v1323, %v1382
  %v1392 = vadd.f32 %v1324, %v1386
  %v1393 = vadd.f32 %v1325, %v1382
  %v1394 = vadd.f32 %v1326, %v1386
  %v1395 = vadd.f32 %v1327, %v1382
  %v1396 = vadd.f32 %v1328, %v1386
  %v1397 = vadd.f32 %v1329, %v1382
  %v1398 = vadd.f32 %v1330, %v1386
  %v1399 = vadd.f32 %v1331, %v1382
  %v1400 = vadd.f32 %v1332, %v1386
  %v1401 = vadd.f32 %v1333, %v1382
  %v1402 = vadd.f32 %v1334, %v1386
  %v1403 = vadd.f32 %v1335, %v1382
  %v1404 = vadd.f32 %v1336, %v1386
  %v1405 = vadd.f32 %v1337, %v1382
  %v1406 = vadd.f32 %v1338, %v1386
  %v1407 = vadd.f32 %v1339, %v1382
  %v1408 = vadd.f32 %v1340, %v1386
  %v1409 = vadd.f32 %v1341, %v1382
  %v1410 = vadd.f32 %v1342, %v1386
  %v1411 = vadd.f32 %v1343, %v1382
  %v1412 = vadd.f32 %v1344, %v1386
  %v1413 = vadd.f32 %v1345, %v1382
  %v1414 = vadd.f32 %v1346, %v1386
  %v1415 = vadd.f32 %v1347, %v1382
  %v1416 = vadd.f32 %v1348, %v1386
  %v1417 = vadd.f32 %v1349, %v1382
  %v1418 = vadd.f32 %v1350, %v1386
  %v1419 = vadd.f32 %v1351, %v1382
  %v1420 = vadd.f32 %v1352, %v1386
  %v1421 = vadd.f32 %v1353, %v1382
  %v1422 = vadd.f32 %v1354, %v1386
  %v1423 = vadd.f32 %v1355, %v1382
  %v1424 = vadd.f32 %v1356, %v1386
  %v1425 = vadd.f32 %v1357, %v1382
  %v1426 = vadd.f32 %v1358, %v1386
  %v1427 = vadd.f32 %v1359, %v1382
  %v1428 = vadd.f32 %v1360, %v1386
  %v1429 = vadd.f32 %v1361, %v1382
  %v1430 = vadd.f32 %v1362, %v1386
  %v1431 = vadd.f32 %v1363, %v1382
  %v1432 = vadd.f32 %v1364, %v1386
  %v1433 = vadd.f32 %v1365, %v1382
  %v1434 = vadd.f32 %v1366, %v1386
  %v1435 = vadd.f32 %v1367, %v1382
  %v1436 = vadd.f32 %v1368, %v1386
  %v1437 = vadd.f32 %v1369, %v1382
  %v1438 = vadd.f32 %v1370, %v1386
  %v1439 = vadd.f32 %v1371, %v1382
  %v1440 = vadd.f32 %v1372, %v1386
  %v1441 = vadd.f32 %v1373, %v1382
  %v1442 = vadd.f32 %v1374, %v1386
  %v1443 = vadd.f32 %v1375, %v1382
  %v1444 = vadd.f32 %v1376, %v1386
  %v1445 = vxor.u32 %v1389, 2147483648
  %v1446 = vxor.u32 %v1390, 2147483648
  %v1447 = vxor.u32 %v1391, 2147483648
  %v1448 = vxor.u32 %v1392, 2147483648
  %v1449 = vxor.u32 %v1393, 2147483648
  %v1450 = vxor.u32 %v1394, 2147483648
  %v1451 = vxor.u32 %v1395, 2147483648
  %v1452 = vxor.u32 %v1396, 2147483648
  %v1453 = vxor.u32 %v1397, 2147483648
  %v1454 = vxor.u32 %v1398, 2147483648
  %v1455 = vxor.u32 %v1399, 2147483648
  %v1456 = vxor.u32 %v1400, 2147483648
  %v1457 = vxor.u32 %v1401, 2147483648
  %v1458 = vxor.u32 %v1402, 2147483648
  %v1459 = vxor.u32 %v1403, 2147483648
  %v1460 = vxor.u32 %v1404, 2147483648
  %v1461 = vxor.u32 %v1405, 2147483648
  %v1462 = vxor.u32 %v1406, 2147483648
  %v1463 = vxor.u32 %v1407, 2147483648
  %v1464 = vxor.u32 %v1408, 2147483648
  %v1465 = vxor.u32 %v1409, 2147483648
  %v1466 = vxor.u32 %v1410, 2147483648
  %v1467 = vxor.u32 %v1411, 2147483648
  %v1468 = vxor.u32 %v1412, 2147483648
  %v1469 = vxor.u32 %v1413, 2147483648
  %v1470 = vxor.u32 %v1414, 2147483648
  %v1471 = vxor.u32 %v1415, 2147483648
  %v1472 = vxor.u32 %v1416, 2147483648
  %v1473 = vxor.u32 %v1417, 2147483648
  %v1474 = vxor.u32 %v1418, 2147483648
  %v1475 = vxor.u32 %v1419, 2147483648
  %v1476 = vxor.u32 %v1420, 2147483648
  %v1477 = vxor.u32 %v1421, 2147483648
  %v1478 = vxor.u32 %v1422, 2147483648
  %v1479 = vxor.u32 %v1423, 2147483648
  %v1480 = vxor.u32 %v1424, 2147483648
  %v1481 = vxor.u32 %v1425, 2147483648
  %v1482 = vxor.u32 %v1426, 2147483648
  %v1483 = vxor.u32 %v1427, 2147483648
  %v1484 = vxor.u32 %v1428, 2147483648
  %v1485 = vxor.u32 %v1429, 2147483648
  %v1486 = vxor.u32 %v1430, 2147483648
  %v1487 = vxor.u32 %v1431, 2147483648
  %v1488 = vxor.u32 %v1432, 2147483648
  %v1489 = vxor.u32 %v1433, 2147483648
  %v1490 = vxor.u32 %v1434, 2147483648
  %v1491 = vxor.u32 %v1435, 2147483648
  %v1492 = vxor.u32 %v1436, 2147483648
  %v1493 = vxor.u32 %v1437, 2147483648
  %v1494 = vxor.u32 %v1438, 2147483648
  %v1495 = vxor.u32 %v1439, 2147483648
  %v1496 = vxor.u32 %v1440, 2147483648
  %v1497 = vxor.u32 %v1441, 2147483648
  %v1498 = vxor.u32 %v1442, 2147483648
  %v1499 = vxor.u32 %v1443, 2147483648
  %v1500 = vxor.u32 %v1444, 2147483648
  %v1501 = vmul.f32 %v1445, 1.442695
  %v1502 = vpow.pop %v1501
  %v1503 = vmul.f32 %v1446, 1.442695
  %v1504 = vpow.pop %v1503
  %v1505 = vmul.f32 %v1447, 1.442695
  %v1506 = vpow.pop %v1505
  %v1507 = vmul.f32 %v1448, 1.442695
  %v1508 = vpow.pop %v1507
  %v1509 = vmul.f32 %v1449, 1.442695
  %v1510 = vpow.pop %v1509
  %v1511 = vmul.f32 %v1450, 1.442695
  %v1512 = vpow.pop %v1511
  %v1513 = vmul.f32 %v1451, 1.442695
  %v1514 = vpow.pop %v1513
  %v1515 = vmul.f32 %v1452, 1.442695
  %v1516 = vpow.pop %v1515
  %v1517 = vmul.f32 %v1453, 1.442695
  %v1518 = vpow.pop %v1517
  %v1519 = vmul.f32 %v1454, 1.442695
  %v1520 = vpow.pop %v1519
  %v1521 = vmul.f32 %v1455, 1.442695
  %v1522 = vpow.pop %v1521
  %v1523 = vmul.f32 %v1456, 1.442695
  %v1524 = vpow.pop %v1523
  %v1525 = vmul.f32 %v1457, 1.442695
  %v1526 = vpow.pop %v1525
  %v1527 = vmul.f32 %v1458, 1.442695
  %v1528 = vpow.pop %v1527
  %v1529 = vmul.f32 %v1459, 1.442695
  %v1530 = vpow.pop %v1529
  %v1531 = vmul.f32 %v1460, 1.442695
  %v1532 = vpow.pop %v1531
  %v1533 = vmul.f32 %v1461, 1.442695
  %v1534 = vpow.pop %v1533
  %v1535 = vmul.f32 %v1462, 1.442695
  %v1536 = vpow.pop %v1535
  %v1537 = vmul.f32 %v1463, 1.442695
  %v1538 = vpow.pop %v1537
  %v1539 = vmul.f32 %v1464, 1.442695
  %v1540 = vpow.pop %v1539
  %v1541 = vmul.f32 %v1465, 1.442695
  %v1542 = vpow.pop %v1541
  %v1543 = vmul.f32 %v1466, 1.442695
  %v1544 = vpow.pop %v1543
  %v1545 = vmul.f32 %v1467, 1.442695
  %v1546 = vpow.pop %v1545
  %v1547 = vmul.f32 %v1468, 1.442695
  %v1548 = vpow.pop %v1547
  %v1549 = vmul.f32 %v1469, 1.442695
  %v1550 = vpow.pop %v1549
  %v1551 = vmul.f32 %v1470, 1.442695
  %v1552 = vpow.pop %v1551
  %v1553 = vmul.f32 %v1471, 1.442695
  %v1554 = vpow.pop %v1553
  %v1555 = vmul.f32 %v1472, 1.442695
  %v1556 = vpow.pop %v1555
  %v1557 = vmul.f32 %v1473, 1.442695
  %v1558 = vpow.pop %v1557
  %v1559 = vmul.f32 %v1474, 1.442695
  %v1560 = vpow.pop %v1559
  %v1561 = vmul.f32 %v1475, 1.442695
  %v1562 = vpow.pop %v1561
  %v1563 = vmul.f32 %v1476, 1.442695
  %v1564 = vpow.pop %v1563
  %v1565 = vmul.f32 %v1477, 1.442695
  %v1566 = vpow.pop %v1565
  %v1567 = vmul.f32 %v1478, 1.442695
  %v1568 = vpow.pop %v1567
  %v1569 = vmul.f32 %v1479, 1.442695
  %v1570 = vpow.pop %v1569
  %v1571 = vmul.f32 %v1480, 1.442695
  %v1572 = vpow.pop %v1571
  %v1573 = vmul.f32 %v1481, 1.442695
  %v1574 = vpow.pop %v1573
  %v1575 = vmul.f32 %v1482, 1.442695
  %v1576 = vpow.pop %v1575
  %v1577 = vmul.f32 %v1483, 1.442695
  %v1578 = vpow.pop %v1577
  %v1579 = vmul.f32 %v1484, 1.442695
  %v1580 = vpow.pop %v1579
  %v1581 = vmul.f32 %v1485, 1.442695
  %v1582 = vpow.pop %v1581
  %v1583 = vmul.f32 %v1486, 1.442695
  %v1584 = vpow.pop %v1583
  %v1585 = vmul.f32 %v1487, 1.442695
  %v1586 = vpow.pop %v1585
  %v1587 = vmul.f32 %v1488, 1.442695
  %v1588 = vpow.pop %v1587
  %v1589 = vmul.f32 %v1489, 1.442695
  %v1590 = vpow.pop %v1589
  %v1591 = vmul.f32 %v1490, 1.442695
  %v1592 = vpow.pop %v1591
  %v1593 = vmul.f32 %v1491, 1.442695
  %v1594 = vpow.pop %v1593
  %v1595 = vmul.f32 %v1492, 1.442695
  %v1596 = vpow.pop %v1595
  %v1597 = vmul.f32 %v1493, 1.442695
  %v1598 = vpow.pop %v1597
  %v1599 = vmul.f32 %v1494, 1.442695
  %v1600 = vpow.pop %v1599
  %v1601 = vmul.f32 %v1495, 1.442695
  %v1602 = vpow.pop %v1601
  %v1603 = vmul.f32 %v1496, 1.442695
  %v1604 = vpow.pop %v1603
  %v1605 = vmul.f32 %v1497, 1.442695
  %v1606 = vpow.pop %v1605
  %v1607 = vmul.f32 %v1498, 1.442695
  %v1608 = vpow.pop %v1607
  %v1609 = vmul.f32 %v1499, 1.442695
  %v1610 = vpow.pop %v1609
  %v1611 = vmul.f32 %v1500, 1.442695
  %v1612 = vpow.pop %v1611
  %v1613 = vadd.f32 %v1502, 1.0
  %v1614 = vadd.f32 %v1504, 1.0
  %v1615 = vadd.f32 %v1506, 1.0
  %v1616 = vadd.f32 %v1508, 1.0
  %v1617 = vadd.f32 %v1510, 1.0
  %v1618 = vadd.f32 %v1512, 1.0
  %v1619 = vadd.f32 %v1514, 1.0
  %v1620 = vadd.f32 %v1516, 1.0
  %v1621 = vadd.f32 %v1518, 1.0
  %v1622 = vadd.f32 %v1520, 1.0
  %v1623 = vadd.f32 %v1522, 1.0
  %v1624 = vadd.f32 %v1524, 1.0
  %v1625 = vadd.f32 %v1526, 1.0
  %v1626 = vadd.f32 %v1528, 1.0
  %v1627 = vadd.f32 %v1530, 1.0
  %v1628 = vadd.f32 %v1532, 1.0
  %v1629 = vadd.f32 %v1534, 1.0
  %v1630 = vadd.f32 %v1536, 1.0
  %v1631 = vadd.f32 %v1538, 1.0
  %v1632 = vadd.f32 %v1540, 1.0
  %v1633 = vadd.f32 %v1542, 1.0
  %v1634 = vadd.f32 %v1544, 1.0
  %v1635 = vadd.f32 %v1546, 1.0
  %v1636 = vadd.f32 %v1548, 1.0
  %v1637 = vadd.f32 %v1550, 1.0
  %v1638 = vadd.f32 %v1552, 1.0
  %v1639 = vadd.f32 %v1554, 1.0
  %v1640 = vadd.f32 %v1556, 1.0
  %v1641 = vadd.f32 %v1558, 1.0
  %v1642 = vadd.f32 %v1560, 1.0
  %v1643 = vadd.f32 %v1562, 1.0
  %v1644 = vadd.f32 %v1564, 1.0
  %v1645 = vadd.f32 %v1566, 1.0
  %v1646 = vadd.f32 %v1568, 1.0
  %v1647 = vadd.f32 %v1570, 1.0
  %v1648 = vadd.f32 %v1572, 1.0
  %v1649 = vadd.f32 %v1574, 1.0
  %v1650 = vadd.f32 %v1576, 1.0
  %v1651 = vadd.f32 %v1578, 1.0
  %v1652 = vadd.f32 %v1580, 1.0
  %v1653 = vadd.f32 %v1582, 1.0
  %v1654 = vadd.f32 %v1584, 1.0
  %v1655 = vadd.f32 %v1586, 1.0
  %v1656 = vadd.f32 %v1588, 1.0
  %v1657 = vadd.f32 %v1590, 1.0
  %v1658 = vadd.f32 %v1592, 1.0
  %v1659 = vadd.f32 %v1594, 1.0
  %v1660 = vadd.f32 %v1596, 1.0
  %v1661 = vadd.f32 %v1598, 1.0
  %v1662 = vadd.f32 %v1600, 1.0
  %v1663 = vadd.f32 %v1602, 1.0
  %v1664 = vadd.f32 %v1604, 1.0
  %v1665 = vadd.f32 %v1606, 1.0
  %v1666 = vadd.f32 %v1608, 1.0
  %v1667 = vadd.f32 %v1610, 1.0
  %v1668 = vadd.f32 %v1612, 1.0
  %v1669 = vrcp.pop %v1613
  %v1670 = vmul.f32 1.0, %v1669
  %v1671 = vrcp.pop %v1614
  %v1672 = vmul.f32 1.0, %v1671
  %v1673 = vrcp.pop %v1615
  %v1674 = vmul.f32 1.0, %v1673
  %v1675 = vrcp.pop %v1616
  %v1676 = vmul.f32 1.0, %v1675
  %v1677 = vrcp.pop %v1617
  %v1678 = vmul.f32 1.0, %v1677
  %v1679 = vrcp.pop %v1618
  %v1680 = vmul.f32 1.0, %v1679
  %v1681 = vrcp.pop %v1619
  %v1682 = vmul.f32 1.0, %v1681
  %v1683 = vrcp.pop %v1620
  %v1684 = vmul.f32 1.0, %v1683
  %v1685 = vrcp.pop %v1621
  %v1686 = vmul.f32 1.0, %v1685
  %v1687 = vrcp.pop %v1622
  %v1688 = vmul.f32 1.0, %v1687
  %v1689 = vrcp.pop %v1623
  %v1690 = vmul.f32 1.0, %v1689
  %v1691 = vrcp.pop %v1624
  %v1692 = vmul.f32 1.0, %v1691
  %v1693 = vrcp.pop %v1625
  %v1694 = vmul.f32 1.0, %v1693
  %v1695 = vrcp.pop %v1626
  %v1696 = vmul.f32 1.0, %v1695
  %v1697 = vrcp.pop %v1627
  %v1698 = vmul.f32 1.0, %v1697
  %v1699 = vrcp.pop %v1628
  %v1700 = vmul.f32 1.0, %v1699
  %v1701 = vrcp.pop %v1629
  %v1702 = vmul.f32 1.0, %v1701
  %v1703 = vrcp.pop %v1630
  %v1704 = vmul.f32 1.0, %v1703
  %v1705 = vrcp.pop %v1631
  %v1706 = vmul.f32 1.0, %v1705
  %v1707 = vrcp.pop %v1632
  %v1708 = vmul.f32 1.0, %v1707
  %v1709 = vrcp.pop %v1633
  %v1710 = vmul.f32 1.0, %v1709
  %v1711 = vrcp.pop %v1634
  %v1712 = vmul.f32 1.0, %v1711
  %v1713 = vrcp.pop %v1635
  %v1714 = vmul.f32 1.0, %v1713
  %v1715 = vrcp.pop %v1636
  %v1716 = vmul.f32 1.0, %v1715
  %v1717 = vrcp.pop %v1637
  %v1718 = vmul.f32 1.0, %v1717
  %v1719 = vrcp.pop %v1638
  %v1720 = vmul.f32 1.0, %v1719
  %v1721 = vrcp.pop %v1639
  %v1722 = vmul.f32 1.0, %v1721
  %v1723 = vrcp.pop %v1640
  %v1724 = vmul.f32 1.0, %v1723
  %v1725 = vrcp.pop %v1641
  %v1726 = vmul.f32 1.0, %v1725
  %v1727 = vrcp.pop %v1642
  %v1728 = vmul.f32 1.0, %v1727
  %v1729 = vrcp.pop %v1643
  %v1730 = vmul.f32 1.0, %v1729
  %v1731 = vrcp.pop %v1644
  %v1732 = vmul.f32 1.0, %v1731
  %v1733 = vrcp.pop %v1645
  %v1734 = vmul.f32 1.0, %v1733
  %v1735 = vrcp.pop %v1646
  %v1736 = vmul.f32 1.0, %v1735
  %v1737 = vrcp.pop %v1647
  %v1738 = vmul.f32 1.0, %v1737
  %v1739 = vrcp.pop %v1648
  %v1740 = vmul.f32 1.0, %v1739
  %v1741 = vrcp.pop %v1649
  %v1742 = vmul.f32 1.0, %v1741
  %v1743 = vrcp.pop %v1650
  %v1744 = vmul.f32 1.0, %v1743
  %v1745 = vrcp.pop %v1651
  %v1746 = vmul.f32 1.0, %v1745
  %v1747 = vrcp.pop %v1652
  %v1748 = vmul.f32 1.0, %v1747
  %v1749 = vrcp.pop %v1653
  %v1750 = vmul.f32 1.0, %v1749
  %v1751 = vrcp.pop %v1654
  %v1752 = vmul.f32 1.0, %v1751
  %v1753 = vrcp.pop %v1655
  %v1754 = vmul.f32 1.0, %v1753
  %v1755 = vrcp.pop %v1656
  %v1756 = vmul.f32 1.0, %v1755
  %v1757 = vrcp.pop %v1657
  %v1758 = vmul.f32 1.0, %v1757
  %v1759 = vrcp.pop %v1658
  %v1760 = vmul.f32 1.0, %v1759
  %v1761 = vrcp.pop %v1659
  %v1762 = vmul.f32 1.0, %v1761
  %v1763 = vrcp.pop %v1660
  %v1764 = vmul.f32 1.0, %v1763
  %v1765 = vrcp.pop %v1661
  %v1766 = vmul.f32 1.0, %v1765
  %v1767 = vrcp.pop %v1662
  %v1768 = vmul.f32 1.0, %v1767
  %v1769 = vrcp.pop %v1663
  %v1770 = vmul.f32 1.0, %v1769
  %v1771 = vrcp.pop %v1664
  %v1772 = vmul.f32 1.0, %v1771
  %v1773 = vrcp.pop %v1665
  %v1774 = vmul.f32 1.0, %v1773
  %v1775 = vrcp.pop %v1666
  %v1776 = vmul.f32 1.0, %v1775
  %v1777 = vrcp.pop %v1667
  %v1778 = vmul.f32 1.0, %v1777
  %v1779 = vrcp.pop %v1668
  %v1780 = vmul.f32 1.0, %v1779
  %v1781 = vld [vmem:[%s3] sm:$0xff]
  %v1782 = vld [vmem:[%s3 + $0x8] sm:$0xff]
  %v1783 = vld [vmem:[%s3 + $0x10] sm:$0xff]
  %v1784 = vld [vmem:[%s3 + $0x18] sm:$0xff]
  %v1785 = vld [vmem:[%s3 + $0x20] sm:$0xff]
  %v1786 = vld [vmem:[%s3 + $0x28] sm:$0xff]
  %v1787 = vld [vmem:[%s3 + $0x30] sm:$0xff]
  %v1788 = vld [vmem:[%s3 + $0x38] sm:$0xff]
  %v1789 = vld [vmem:[%s3 + $0x40] sm:$0xff]
  %v1790 = vld [vmem:[%s3 + $0x48] sm:$0xff]
  %v1791 = vld [vmem:[%s3 + $0x50] sm:$0xff]
  %v1792 = vld [vmem:[%s3 + $0x58] sm:$0xff]
  %v1793 = vld [vmem:[%s3 + $0x60] sm:$0xff]
  %v1794 = vld [vmem:[%s3 + $0x68] sm:$0xff]
  %v1795 = vld [vmem:[%s3 + $0x70] sm:$0xff]
  %v1796 = vld [vmem:[%s3 + $0x78] sm:$0xff]
  %v1797 = vld [vmem:[%s3 + $0x80] sm:$0xff]
  %v1798 = vld [vmem:[%s3 + $0x88] sm:$0xff]
  %v1799 = vld [vmem:[%s3 + $0x90] sm:$0xff]
  %v1800 = vld [vmem:[%s3 + $0x98] sm:$0xff]
  %v1801 = vld [vmem:[%s3 + $0xa0] sm:$0xff]
  %v1802 = vld [vmem:[%s3 + $0xa8] sm:$0xff]
  %v1803 = vld [vmem:[%s3 + $0xb0] sm:$0xff]
  %v1804 = vld [vmem:[%s3 + $0xb8] sm:$0xff]
  %v1805 = vld [vmem:[%s3 + $0xc0] sm:$0xff]
  %v1806 = vld [vmem:[%s3 + $0xc8] sm:$0xff]
  %v1807 = vld [vmem:[%s3 + $0xd0] sm:$0xff]
  %v1808 = vld [vmem:[%s3 + $0xd8] sm:$0xff]
  %vm1809 = vcmask 785408
  %v1811 = vsel %vm1809, %v1782, 0
  %v1814 = vsel %vm1809, %v1784, 0
  %v1817 = vsel %vm1809, %v1786, 0
  %v1820 = vsel %vm1809, %v1788, 0
  %v1823 = vsel %vm1809, %v1790, 0
  %v1826 = vsel %vm1809, %v1792, 0
  %v1829 = vsel %vm1809, %v1794, 0
  %v1832 = vsel %vm1809, %v1796, 0
  %v1835 = vsel %vm1809, %v1798, 0
  %v1838 = vsel %vm1809, %v1800, 0
  %v1841 = vsel %vm1809, %v1802, 0
  %v1844 = vsel %vm1809, %v1804, 0
  %v1847 = vsel %vm1809, %v1806, 0
  %v1850 = vsel %vm1809, %v1808, 0
  %1852 = vmatprep.subr.mxu0 %v1672
  %1853 = vmatpush1.msra.mxu0 %v1670
  %1854 = vmatprep.subr.mxu0 %v1676
  %1855 = vmatpush1.msra.mxu0 %v1674
  %1856 = vmatprep.subr.mxu0 %v1680
  %1857 = vmatpush1.msra.mxu0 %v1678
  %1858 = vmatprep.subr.mxu0 %v1684
  %1859 = vmatpush1.msra.mxu0 %v1682
  %1860 = vmatprep.subr.mxu0 %v1688
  %1861 = vmatpush1.msra.mxu0 %v1686
  %1862 = vmatprep.subr.mxu0 %v1692
  %1863 = vmatpush1.msra.mxu0 %v1690
  %1864 = vmatprep.subr.mxu0 %v1696
  %1865 = vmatpush1.msra.mxu0 %v1694
  %1866 = vmatprep.subr.mxu0 %v1700
  %1867 = vmatpush1.msra.mxu0 %v1698
  %1868 = vmatprep.subr.mxu0 %v1704
  %1869 = vmatpush1.msra.mxu0 %v1702
  %1870 = vmatprep.subr.mxu0 %v1708
  %1871 = vmatpush1.msra.mxu0 %v1706
  %1872 = vmatprep.subr.mxu0 %v1712
  %1873 = vmatpush1.msra.mxu0 %v1710
  %1874 = vmatprep.subr.mxu0 %v1716
  %1875 = vmatpush1.msra.mxu0 %v1714
  %1876 = vmatprep.subr.mxu0 %v1720
  %1877 = vmatpush1.msra.mxu0 %v1718
  %1878 = vmatprep.subr.mxu0 %v1724
  %1879 = vmatpush1.msra.mxu0 %v1722
  %1880 = vmatprep.subr.mxu0 %v1728
  %1881 = vmatpush1.msra.mxu0 %v1726
  %1882 = vmatprep.subr.mxu0 %v1732
  %1883 = vmatpush1.msra.mxu0 %v1730
  %1884 = vmatprep.subr.mxu0 %v1736
  %1885 = vmatpush1.msra.mxu0 %v1734
  %1886 = vmatprep.subr.mxu0 %v1740
  %1887 = vmatpush1.msra.mxu0 %v1738
  %1888 = vmatprep.subr.mxu0 %v1744
  %1889 = vmatpush1.msra.mxu0 %v1742
  %1890 = vmatprep.subr.mxu0 %v1748
  %1891 = vmatpush1.msra.mxu0 %v1746
  %1892 = vmatprep.subr.mxu0 %v1752
  %1893 = vmatpush1.msra.mxu0 %v1750
  %1894 = vmatprep.subr.mxu0 %v1756
  %1895 = vmatpush1.msra.mxu0 %v1754
  %1896 = vmatprep.subr.mxu0 %v1760
  %1897 = vmatpush1.msra.mxu0 %v1758
  %1898 = vmatprep.subr.mxu0 %v1764
  %1899 = vmatpush1.msra.mxu0 %v1762
  %1900 = vmatprep.subr.mxu0 %v1768
  %1901 = vmatpush1.msra.mxu0 %v1766
  %1902 = vmatprep.subr.mxu0 %v1772
  %1903 = vmatpush1.msra.mxu0 %v1770
  %1904 = vmatprep.subr.mxu0 %v1776
  %1905 = vmatpush1.msra.mxu0 %v1774
  %1906 = vmatprep.subr.mxu0 %v1780
  %1907 = vmatpush1.msra.mxu0 %v1778
  %1908 = vmatprep.subr.mxu0 0.0
  %1909 = vmatpush1.msra.mxu0 0.0
  %1910 = vmatprep.subr.mxu0 0.0
  %1911 = vmatpush1.msra.mxu0 0.0
  %1912 = vmatprep.subr.mxu0 0.0
  %1913 = vmatpush1.msra.mxu0 0.0
  %1914 = vmatprep.subr.mxu0 0.0
  %1915 = vmatpush1.msra.mxu0 0.0
  %1916 = vmatprep.mubr.f32.mxu0 %v1811
  %1917 = vmatmul.mubr.f32.gmra.mrb[0].mxu0 %v1781
  %v1918 = vpop.f32.mrb[0].mxu0
  %v1919 = vadd.f32 0.0, %v1918
  %v1920 = vpop.f32.mrb[0].mxu0
  %v1921 = vadd.f32 0.0, %v1920
  %1922 = vmatprep.mubr.f32.mxu0 %v1814
  %1923 = vmatmul.mubr.f32.gmra.mrb[0].mxu0 %v1783
  %v1924 = vpop.f32.mrb[0].mxu0
  %v1925 = vadd.f32 0.0, %v1924
  %v1926 = vpop.f32.mrb[0].mxu0
  %v1927 = vadd.f32 0.0, %v1926
  %1928 = vmatprep.mubr.f32.mxu0 %v1817
  %1929 = vmatmul.mubr.f32.gmra.mrb[0].mxu0 %v1785
  %v1930 = vpop.f32.mrb[0].mxu0
  %v1931 = vadd.f32 0.0, %v1930
  %v1932 = vpop.f32.mrb[0].mxu0
  %v1933 = vadd.f32 0.0, %v1932
  %1934 = vmatprep.mubr.f32.mxu0 %v1820
  %1935 = vmatmul.mubr.f32.gmra.mrb[0].mxu0 %v1787
  %v1936 = vpop.f32.mrb[0].mxu0
  %v1937 = vadd.f32 0.0, %v1936
  %v1938 = vpop.f32.mrb[0].mxu0
  %v1939 = vadd.f32 0.0, %v1938
  %1940 = vmatprep.mubr.f32.mxu0 %v1823
  %1941 = vmatmul.mubr.f32.gmra.mrb[0].mxu0 %v1789
  %v1942 = vpop.f32.mrb[0].mxu0
  %v1943 = vadd.f32 0.0, %v1942
  %v1944 = vpop.f32.mrb[0].mxu0
  %v1945 = vadd.f32 0.0, %v1944
  %1946 = vmatprep.mubr.f32.mxu0 %v1826
  %1947 = vmatmul.mubr.f32.gmra.mrb[0].mxu0 %v1791
  %v1948 = vpop.f32.mrb[0].mxu0
  %v1949 = vadd.f32 0.0, %v1948
  %v1950 = vpop.f32.mrb[0].mxu0
  %v1951 = vadd.f32 0.0, %v1950
  %1952 = vmatprep.mubr.f32.mxu0 %v1829
  %1953 = vmatmul.mubr.f32.gmra.mrb[0].mxu0 %v1793
  %v1954 = vpop.f32.mrb[0].mxu0
  %v1955 = vadd.f32 0.0, %v1954
  %v1956 = vpop.f32.mrb[0].mxu0
  %v1957 = vadd.f32 0.0, %v1956
  %1958 = vmatprep.mubr.f32.mxu0 %v1832
  %1959 = vmatmul.mubr.f32.gmra.mrb[0].mxu0 %v1795
  %v1960 = vpop.f32.mrb[0].mxu0
  %v1961 = vadd.f32 0.0, %v1960
  %v1962 = vpop.f32.mrb[0].mxu0
  %v1963 = vadd.f32 0.0, %v1962
  %1964 = vmatprep.mubr.f32.mxu0 %v1835
  %1965 = vmatmul.mubr.f32.gmra.mrb[0].mxu0 %v1797
  %v1966 = vpop.f32.mrb[0].mxu0
  %v1967 = vadd.f32 0.0, %v1966
  %v1968 = vpop.f32.mrb[0].mxu0
  %v1969 = vadd.f32 0.0, %v1968
  %1970 = vmatprep.mubr.f32.mxu0 %v1838
  %1971 = vmatmul.mubr.f32.gmra.mrb[0].mxu0 %v1799
  %v1972 = vpop.f32.mrb[0].mxu0
  %v1973 = vadd.f32 0.0, %v1972
  %v1974 = vpop.f32.mrb[0].mxu0
  %v1975 = vadd.f32 0.0, %v1974
  %1976 = vmatprep.mubr.f32.mxu0 %v1841
  %1977 = vmatmul.mubr.f32.gmra.mrb[0].mxu0 %v1801
  %v1978 = vpop.f32.mrb[0].mxu0
  %v1979 = vadd.f32 0.0, %v1978
  %v1980 = vpop.f32.mrb[0].mxu0
  %v1981 = vadd.f32 0.0, %v1980
  %1982 = vmatprep.mubr.f32.mxu0 %v1844
  %1983 = vmatmul.mubr.f32.gmra.mrb[0].mxu0 %v1803
  %v1984 = vpop.f32.mrb[0].mxu0
  %v1985 = vadd.f32 0.0, %v1984
  %v1986 = vpop.f32.mrb[0].mxu0
  %v1987 = vadd.f32 0.0, %v1986
  %1988 = vmatprep.mubr.f32.mxu0 %v1847
  %1989 = vmatmul.mubr.f32.gmra.mrb[0].mxu0 %v1805
  %v1990 = vpop.f32.mrb[0].mxu0
  %v1991 = vadd.f32 0.0, %v1990
  %v1992 = vpop.f32.mrb[0].mxu0
  %v1993 = vadd.f32 0.0, %v1992
  %1994 = vmatprep.mubr.f32.mxu0 %v1850
  %1995 = vmatmul.mubr.f32.gmra.mrb[0].mxu0 %v1807
  %v1996 = vpop.f32.mrb[0].mxu0
  %v1997 = vadd.f32 0.0, %v1996
  %v1998 = vpop.f32.mrb[0].mxu0
  %v1999 = vadd.f32 0.0, %v1998
  %2000 = vdwg.mxu0
  %v2001 = vld [vmem:[%s4] sm:$0xff]
  %v2002 = vld [vmem:[%s4 + $0x8] sm:$0xff]
  %v2003 = vld [vmem:[%s4 + $0x10] sm:$0xff]
  %v2004 = vld [vmem:[%s4 + $0x18] sm:$0xff]
  %v2005 = vld [vmem:[%s4 + $0x20] sm:$0xff]
  %v2006 = vld [vmem:[%s4 + $0x28] sm:$0xff]
  %v2007 = vld [vmem:[%s4 + $0x30] sm:$0xff]
  %v2008 = vld [vmem:[%s4 + $0x38] sm:$0xff]
  %v2009 = vld [vmem:[%s4 + $0x40] sm:$0xff]
  %v2010 = vld [vmem:[%s4 + $0x48] sm:$0xff]
  %v2011 = vld [vmem:[%s4 + $0x50] sm:$0xff]
  %v2012 = vld [vmem:[%s4 + $0x58] sm:$0xff]
  %v2013 = vld [vmem:[%s4 + $0x60] sm:$0xff]
  %v2014 = vld [vmem:[%s4 + $0x68] sm:$0xff]
  %v2015 = vld [vmem:[%s4 + $0x70] sm:$0xff]
  %v2016 = vld [vmem:[%s4 + $0x78] sm:$0xff]
  %v2017 = vld [vmem:[%s4 + $0x80] sm:$0xff]
  %v2018 = vld [vmem:[%s4 + $0x88] sm:$0xff]
  %v2019 = vld [vmem:[%s4 + $0x90] sm:$0xff]
  %v2020 = vld [vmem:[%s4 + $0x98] sm:$0xff]
  %v2021 = vld [vmem:[%s4 + $0xa0] sm:$0xff]
  %v2022 = vld [vmem:[%s4 + $0xa8] sm:$0xff]
  %v2023 = vld [vmem:[%s4 + $0xb0] sm:$0xff]
  %v2024 = vld [vmem:[%s4 + $0xb8] sm:$0xff]
  %v2025 = vld [vmem:[%s4 + $0xc0] sm:$0xff]
  %v2026 = vld [vmem:[%s4 + $0xc8] sm:$0xff]
  %v2027 = vld [vmem:[%s4 + $0xd0] sm:$0xff]
  %v2028 = vld [vmem:[%s4 + $0xd8] sm:$0xff]
  %v2030 = vsel %vm1809, %v2002, 0
  %v2033 = vsel %vm1809, %v2004, 0
  %v2036 = vsel %vm1809, %v2006, 0
  %v2039 = vsel %vm1809, %v2008, 0
  %v2042 = vsel %vm1809, %v2010, 0
  %v2045 = vsel %vm1809, %v2012, 0
  %v2048 = vsel %vm1809, %v2014, 0
  %v2051 = vsel %vm1809, %v2016, 0
  %v2054 = vsel %vm1809, %v2018, 0
  %v2057 = vsel %vm1809, %v2020, 0
  %v2060 = vsel %vm1809, %v2022, 0
  %v2063 = vsel %vm1809, %v2024, 0
  %v2066 = vsel %vm1809, %v2026, 0
  %v2069 = vsel %vm1809, %v2028, 0
  %2071 = vmatprep.subr.mxu0 %v1672
  %2072 = vmatpush1.msra.mxu0 %v1670
  %2073 = vmatprep.subr.mxu0 %v1676
  %2074 = vmatpush1.msra.mxu0 %v1674
  %2075 = vmatprep.subr.mxu0 %v1680
  %2076 = vmatpush1.msra.mxu0 %v1678
  %2077 = vmatprep.subr.mxu0 %v1684
  %2078 = vmatpush1.msra.mxu0 %v1682
  %2079 = vmatprep.subr.mxu0 %v1688
  %2080 = vmatpush1.msra.mxu0 %v1686
  %2081 = vmatprep.subr.mxu0 %v1692
  %2082 = vmatpush1.msra.mxu0 %v1690
  %2083 = vmatprep.subr.mxu0 %v1696
  %2084 = vmatpush1.msra.mxu0 %v1694
  %2085 = vmatprep.subr.mxu0 %v1700
  %2086 = vmatpush1.msra.mxu0 %v1698
  %2087 = vmatprep.subr.mxu0 %v1704
  %2088 = vmatpush1.msra.mxu0 %v1702
  %2089 = vmatprep.subr.mxu0 %v1708
  %2090 = vmatpush1.msra.mxu0 %v1706
  %2091 = vmatprep.subr.mxu0 %v1712
  %2092 = vmatpush1.msra.mxu0 %v1710
  %2093 = vmatprep.subr.mxu0 %v1716
  %2094 = vmatpush1.msra.mxu0 %v1714
  %2095 = vmatprep.subr.mxu0 %v1720
  %2096 = vmatpush1.msra.mxu0 %v1718
  %2097 = vmatprep.subr.mxu0 %v1724
  %2098 = vmatpush1.msra.mxu0 %v1722
  %2099 = vmatprep.subr.mxu0 %v1728
  %2100 = vmatpush1.msra.mxu0 %v1726
  %2101 = vmatprep.subr.mxu0 %v1732
  %2102 = vmatpush1.msra.mxu0 %v1730
  %2103 = vmatprep.subr.mxu0 %v1736
  %2104 = vmatpush1.msra.mxu0 %v1734
  %2105 = vmatprep.subr.mxu0 %v1740
  %2106 = vmatpush1.msra.mxu0 %v1738
  %2107 = vmatprep.subr.mxu0 %v1744
  %2108 = vmatpush1.msra.mxu0 %v1742
  %2109 = vmatprep.subr.mxu0 %v1748
  %2110 = vmatpush1.msra.mxu0 %v1746
  %2111 = vmatprep.subr.mxu0 %v1752
  %2112 = vmatpush1.msra.mxu0 %v1750
  %2113 = vmatprep.subr.mxu0 %v1756
  %2114 = vmatpush1.msra.mxu0 %v1754
  %2115 = vmatprep.subr.mxu0 %v1760
  %2116 = vmatpush1.msra.mxu0 %v1758
  %2117 = vmatprep.subr.mxu0 %v1764
  %2118 = vmatpush1.msra.mxu0 %v1762
  %2119 = vmatprep.subr.mxu0 %v1768
  %2120 = vmatpush1.msra.mxu0 %v1766
  %2121 = vmatprep.subr.mxu0 %v1772
  %2122 = vmatpush1.msra.mxu0 %v1770
  %2123 = vmatprep.subr.mxu0 %v1776
  %2124 = vmatpush1.msra.mxu0 %v1774
  %2125 = vmatprep.subr.mxu0 %v1780
  %2126 = vmatpush1.msra.mxu0 %v1778
  %2127 = vmatprep.subr.mxu0 0.0
  %2128 = vmatpush1.msra.mxu0 0.0
  %2129 = vmatprep.subr.mxu0 0.0
  %2130 = vmatpush1.msra.mxu0 0.0
  %2131 = vmatprep.subr.mxu0 0.0
  %2132 = vmatpush1.msra.mxu0 0.0
  %2133 = vmatprep.subr.mxu0 0.0
  %2134 = vmatpush1.msra.mxu0 0.0
  %2135 = vmatprep.mubr.f32.mxu0 %v2030
  %2136 = vmatmul.mubr.f32.gmra.mrb[0].mxu0 %v2001
  %v2137 = vpop.f32.mrb[0].mxu0
  %v2138 = vadd.f32 0.0, %v2137
  %v2139 = vpop.f32.mrb[0].mxu0
  %v2140 = vadd.f32 0.0, %v2139
  %2141 = vmatprep.mubr.f32.mxu0 %v2033
  %2142 = vmatmul.mubr.f32.gmra.mrb[0].mxu0 %v2003
  %v2143 = vpop.f32.mrb[0].mxu0
  %v2144 = vadd.f32 0.0, %v2143
  %v2145 = vpop.f32.mrb[0].mxu0
  %v2146 = vadd.f32 0.0, %v2145
  %2147 = vmatprep.mubr.f32.mxu0 %v2036
  %2148 = vmatmul.mubr.f32.gmra.mrb[0].mxu0 %v2005
  %v2149 = vpop.f32.mrb[0].mxu0
  %v2150 = vadd.f32 0.0, %v2149
  %v2151 = vpop.f32.mrb[0].mxu0
  %v2152 = vadd.f32 0.0, %v2151
  %2153 = vmatprep.mubr.f32.mxu0 %v2039
  %2154 = vmatmul.mubr.f32.gmra.mrb[0].mxu0 %v2007
  %v2155 = vpop.f32.mrb[0].mxu0
  %v2156 = vadd.f32 0.0, %v2155
  %v2157 = vpop.f32.mrb[0].mxu0
  %v2158 = vadd.f32 0.0, %v2157
  %2159 = vmatprep.mubr.f32.mxu0 %v2042
  %2160 = vmatmul.mubr.f32.gmra.mrb[0].mxu0 %v2009
  %v2161 = vpop.f32.mrb[0].mxu0
  %v2162 = vadd.f32 0.0, %v2161
  %v2163 = vpop.f32.mrb[0].mxu0
  %v2164 = vadd.f32 0.0, %v2163
  %2165 = vmatprep.mubr.f32.mxu0 %v2045
  %2166 = vmatmul.mubr.f32.gmra.mrb[0].mxu0 %v2011
  %v2167 = vpop.f32.mrb[0].mxu0
  %v2168 = vadd.f32 0.0, %v2167
  %v2169 = vpop.f32.mrb[0].mxu0
  %v2170 = vadd.f32 0.0, %v2169
  %2171 = vmatprep.mubr.f32.mxu0 %v2048
  %2172 = vmatmul.mubr.f32.gmra.mrb[0].mxu0 %v2013
  %v2173 = vpop.f32.mrb[0].mxu0
  %v2174 = vadd.f32 0.0, %v2173
  %v2175 = vpop.f32.mrb[0].mxu0
  %v2176 = vadd.f32 0.0, %v2175
  %2177 = vmatprep.mubr.f32.mxu0 %v2051
  %2178 = vmatmul.mubr.f32.gmra.mrb[0].mxu0 %v2015
  %v2179 = vpop.f32.mrb[0].mxu0
  %v2180 = vadd.f32 0.0, %v2179
  %v2181 = vpop.f32.mrb[0].mxu0
  %v2182 = vadd.f32 0.0, %v2181
  %2183 = vmatprep.mubr.f32.mxu0 %v2054
  %2184 = vmatmul.mubr.f32.gmra.mrb[0].mxu0 %v2017
  %v2185 = vpop.f32.mrb[0].mxu0
  %v2186 = vadd.f32 0.0, %v2185
  %v2187 = vpop.f32.mrb[0].mxu0
  %v2188 = vadd.f32 0.0, %v2187
  %2189 = vmatprep.mubr.f32.mxu0 %v2057
  %2190 = vmatmul.mubr.f32.gmra.mrb[0].mxu0 %v2019
  %v2191 = vpop.f32.mrb[0].mxu0
  %v2192 = vadd.f32 0.0, %v2191
  %v2193 = vpop.f32.mrb[0].mxu0
  %v2194 = vadd.f32 0.0, %v2193
  %2195 = vmatprep.mubr.f32.mxu0 %v2060
  %2196 = vmatmul.mubr.f32.gmra.mrb[0].mxu0 %v2021
  %v2197 = vpop.f32.mrb[0].mxu0
  %v2198 = vadd.f32 0.0, %v2197
  %v2199 = vpop.f32.mrb[0].mxu0
  %v2200 = vadd.f32 0.0, %v2199
  %2201 = vmatprep.mubr.f32.mxu0 %v2063
  %2202 = vmatmul.mubr.f32.gmra.mrb[0].mxu0 %v2023
  %v2203 = vpop.f32.mrb[0].mxu0
  %v2204 = vadd.f32 0.0, %v2203
  %v2205 = vpop.f32.mrb[0].mxu0
  %v2206 = vadd.f32 0.0, %v2205
  %2207 = vmatprep.mubr.f32.mxu0 %v2066
  %2208 = vmatmul.mubr.f32.gmra.mrb[0].mxu0 %v2025
  %v2209 = vpop.f32.mrb[0].mxu0
  %v2210 = vadd.f32 0.0, %v2209
  %v2211 = vpop.f32.mrb[0].mxu0
  %v2212 = vadd.f32 0.0, %v2211
  %2213 = vmatprep.mubr.f32.mxu0 %v2069
  %2214 = vmatmul.mubr.f32.gmra.mrb[0].mxu0 %v2027
  %v2215 = vpop.f32.mrb[0].mxu0
  %v2216 = vadd.f32 0.0, %v2215
  %v2217 = vpop.f32.mrb[0].mxu0
  %v2218 = vadd.f32 0.0, %v2217
  %2219 = vdwg.mxu0
  %v2220 = vmax.f32 %v1919, %v2138
  %v2221 = vmax.f32 %v1921, %v2140
  %v2222 = vmax.f32 %v1925, %v2144
  %v2223 = vmax.f32 %v1927, %v2146
  %v2224 = vmax.f32 %v1931, %v2150
  %v2225 = vmax.f32 %v1933, %v2152
  %v2226 = vmax.f32 %v1937, %v2156
  %v2227 = vmax.f32 %v1939, %v2158
  %v2228 = vmax.f32 %v1943, %v2162
  %v2229 = vmax.f32 %v1945, %v2164
  %v2230 = vmax.f32 %v1949, %v2168
  %v2231 = vmax.f32 %v1951, %v2170
  %v2232 = vmax.f32 %v1955, %v2174
  %v2233 = vmax.f32 %v1957, %v2176
  %v2234 = vmax.f32 %v1961, %v2180
  %v2235 = vmax.f32 %v1963, %v2182
  %v2236 = vmax.f32 %v1967, %v2186
  %v2237 = vmax.f32 %v1969, %v2188
  %v2238 = vmax.f32 %v1973, %v2192
  %v2239 = vmax.f32 %v1975, %v2194
  %v2240 = vmax.f32 %v1979, %v2198
  %v2241 = vmax.f32 %v1981, %v2200
  %v2242 = vmax.f32 %v1985, %v2204
  %v2243 = vmax.f32 %v1987, %v2206
  %v2244 = vmax.f32 %v1991, %v2210
  %v2245 = vmax.f32 %v1993, %v2212
  %v2246 = vmax.f32 %v1997, %v2216
  %v2247 = vmax.f32 %v1999, %v2218
  %v2248 = vld [vmem:[%s5] sm:$0xff]
  %v2249 = vld [vmem:[%s5 + $0x8] sm:$0xff]
  %v2250 = vld [vmem:[%s5 + $0x10] sm:$0xff]
  %v2251 = vld [vmem:[%s5 + $0x18] sm:$0xff]
  %v2252 = vld [vmem:[%s5 + $0x20] sm:$0xff]
  %v2253 = vld [vmem:[%s5 + $0x28] sm:$0xff]
  %v2254 = vld [vmem:[%s5 + $0x30] sm:$0xff]
  %v2255 = vld [vmem:[%s5 + $0x38] sm:$0xff]
  %v2256 = vld [vmem:[%s5 + $0x40] sm:$0xff]
  %v2257 = vld [vmem:[%s5 + $0x48] sm:$0xff]
  %v2258 = vld [vmem:[%s5 + $0x50] sm:$0xff]
  %v2259 = vld [vmem:[%s5 + $0x58] sm:$0xff]
  %v2260 = vld [vmem:[%s5 + $0x60] sm:$0xff]
  %v2261 = vld [vmem:[%s5 + $0x68] sm:$0xff]
  %v2262 = vld [vmem:[%s5 + $0x70] sm:$0xff]
  %v2263 = vld [vmem:[%s5 + $0x78] sm:$0xff]
  %v2264 = vld [vmem:[%s5 + $0x80] sm:$0xff]
  %v2265 = vld [vmem:[%s5 + $0x88] sm:$0xff]
  %v2266 = vld [vmem:[%s5 + $0x90] sm:$0xff]
  %v2267 = vld [vmem:[%s5 + $0x98] sm:$0xff]
  %v2268 = vld [vmem:[%s5 + $0xa0] sm:$0xff]
  %vm2269 = vcmask 326656
  %v2271 = vsel %vm2269, %v2221, 0
  %v2274 = vsel %vm2269, %v2223, 0
  %v2277 = vsel %vm2269, %v2225, 0
  %v2280 = vsel %vm2269, %v2227, 0
  %v2283 = vsel %vm2269, %v2229, 0
  %v2286 = vsel %vm2269, %v2231, 0
  %v2289 = vsel %vm2269, %v2233, 0
  %v2292 = vsel %vm2269, %v2235, 0
  %v2295 = vsel %vm2269, %v2237, 0
  %v2298 = vsel %vm2269, %v2239, 0
  %v2301 = vsel %vm2269, %v2241, 0
  %v2304 = vsel %vm2269, %v2243, 0
  %v2307 = vsel %vm2269, %v2245, 0
  %v2310 = vsel %vm2269, %v2247, 0
  %2312 = vmatprep.subr.mxu0 0.0
  %2313 = vmatpush1.msra.mxu0 %v2248
  %2314 = vmatprep.subr.mxu0 0.0
  %2315 = vmatpush1.msra.mxu0 %v2249
  %2316 = vmatprep.subr.mxu0 0.0
  %2317 = vmatpush1.msra.mxu0 %v2250
  %2318 = vmatprep.subr.mxu0 0.0
  %2319 = vmatpush1.msra.mxu0 %v2251
  %2320 = vmatprep.subr.mxu0 0.0
  %2321 = vmatpush1.msra.mxu0 %v2252
  %2322 = vmatprep.subr.mxu0 0.0
  %2323 = vmatpush1.msra.mxu0 %v2253
  %2324 = vmatprep.subr.mxu0 0.0
  %2325 = vmatpush1.msra.mxu0 %v2254
  %2326 = vmatprep.subr.mxu0 0.0
  %2327 = vmatpush1.msra.mxu0 %v2255
  %2328 = vmatprep.subr.mxu0 0.0
  %2329 = vmatpush1.msra.mxu0 %v2256
  %2330 = vmatprep.subr.mxu0 0.0
  %2331 = vmatpush1.msra.mxu0 %v2257
  %2332 = vmatprep.subr.mxu0 0.0
  %2333 = vmatpush1.msra.mxu0 %v2258
  %2334 = vmatprep.subr.mxu0 0.0
  %2335 = vmatpush1.msra.mxu0 %v2259
  %2336 = vmatprep.subr.mxu0 0.0
  %2337 = vmatpush1.msra.mxu0 %v2260
  %2338 = vmatprep.subr.mxu0 0.0
  %2339 = vmatpush1.msra.mxu0 %v2261
  %2340 = vmatprep.subr.mxu0 0.0
  %2341 = vmatpush1.msra.mxu0 %v2262
  %2342 = vmatprep.subr.mxu0 0.0
  %2343 = vmatpush1.msra.mxu0 %v2263
  %2344 = vmatprep.subr.mxu0 0.0
  %2345 = vmatpush1.msra.mxu0 %v2264
  %2346 = vmatprep.subr.mxu0 0.0
  %2347 = vmatpush1.msra.mxu0 %v2265
  %2348 = vmatprep.subr.mxu0 0.0
  %2349 = vmatpush1.msra.mxu0 %v2266
  %2350 = vmatprep.subr.mxu0 0.0
  %2351 = vmatpush1.msra.mxu0 %v2267
  %2352 = vmatprep.subr.mxu0 0.0
  %2353 = vmatpush1.msra.mxu0 %v2268
  %2354 = vmatprep.subr.mxu0 0.0
  %2355 = vmatpush1.msra.mxu0 0.0
  %2356 = vmatprep.subr.mxu0 0.0
  %2357 = vmatpush1.msra.mxu0 0.0
  %2358 = vmatprep.subr.mxu0 0.0
  %2359 = vmatpush1.msra.mxu0 0.0
  %2360 = vmatprep.subr.mxu0 0.0
  %2361 = vmatpush1.msra.mxu0 0.0
  %2362 = vmatprep.subr.mxu0 0.0
  %2363 = vmatpush1.msra.mxu0 0.0
  %2364 = vmatprep.subr.mxu0 0.0
  %2365 = vmatpush1.msra.mxu0 0.0
  %2366 = vmatprep.subr.mxu0 0.0
  %2367 = vmatpush1.msra.mxu0 0.0
  %2368 = vmatprep.subr.mxu0 0.0
  %2369 = vmatpush1.msra.mxu0 0.0
  %2370 = vmatprep.subr.mxu0 0.0
  %2371 = vmatpush1.msra.mxu0 0.0
  %2372 = vmatprep.subr.mxu0 0.0
  %2373 = vmatpush1.msra.mxu0 0.0
  %2374 = vmatprep.subr.mxu0 0.0
  %2375 = vmatpush1.msra.mxu0 0.0
  %2376 = vmatprep.mubr.f32.mxu0 %v2271
  %2377 = vmatmul.mubr.f32.gmra.mrb[0].mxu0 %v2220
  %v2378 = vpop.f32.mrb[0].mxu0
  %v2379 = vadd.f32 0.0, %v2378
  %v2380 = vpop.f32.mrb[0].mxu0
  %2381 = vmatprep.mubr.f32.mxu0 %v2274
  %2382 = vmatmul.mubr.f32.gmra.mrb[0].mxu0 %v2222
  %v2383 = vpop.f32.mrb[0].mxu0
  %v2384 = vadd.f32 0.0, %v2383
  %v2385 = vpop.f32.mrb[0].mxu0
  %2386 = vmatprep.mubr.f32.mxu0 %v2277
  %2387 = vmatmul.mubr.f32.gmra.mrb[0].mxu0 %v2224
  %v2388 = vpop.f32.mrb[0].mxu0
  %v2389 = vadd.f32 0.0, %v2388
  %v2390 = vpop.f32.mrb[0].mxu0
  %2391 = vmatprep.mubr.f32.mxu0 %v2280
  %2392 = vmatmul.mubr.f32.gmra.mrb[0].mxu0 %v2226
  %v2393 = vpop.f32.mrb[0].mxu0
  %v2394 = vadd.f32 0.0, %v2393
  %v2395 = vpop.f32.mrb[0].mxu0
  %2396 = vmatprep.mubr.f32.mxu0 %v2283
  %2397 = vmatmul.mubr.f32.gmra.mrb[0].mxu0 %v2228
  %v2398 = vpop.f32.mrb[0].mxu0
  %v2399 = vadd.f32 0.0, %v2398
  %v2400 = vpop.f32.mrb[0].mxu0
  %2401 = vmatprep.mubr.f32.mxu0 %v2286
  %2402 = vmatmul.mubr.f32.gmra.mrb[0].mxu0 %v2230
  %v2403 = vpop.f32.mrb[0].mxu0
  %v2404 = vadd.f32 0.0, %v2403
  %v2405 = vpop.f32.mrb[0].mxu0
  %2406 = vmatprep.mubr.f32.mxu0 %v2289
  %2407 = vmatmul.mubr.f32.gmra.mrb[0].mxu0 %v2232
  %v2408 = vpop.f32.mrb[0].mxu0
  %v2409 = vadd.f32 0.0, %v2408
  %v2410 = vpop.f32.mrb[0].mxu0
  %2411 = vmatprep.mubr.f32.mxu0 %v2292
  %2412 = vmatmul.mubr.f32.gmra.mrb[0].mxu0 %v2234
  %v2413 = vpop.f32.mrb[0].mxu0
  %v2414 = vadd.f32 0.0, %v2413
  %v2415 = vpop.f32.mrb[0].mxu0
  %2416 = vmatprep.mubr.f32.mxu0 %v2295
  %2417 = vmatmul.mubr.f32.gmra.mrb[0].mxu0 %v2236
  %v2418 = vpop.f32.mrb[0].mxu0
  %v2419 = vadd.f32 0.0, %v2418
  %v2420 = vpop.f32.mrb[0].mxu0
  %2421 = vmatprep.mubr.f32.mxu0 %v2298
  %2422 = vmatmul.mubr.f32.gmra.mrb[0].mxu0 %v2238
  %v2423 = vpop.f32.mrb[0].mxu0
  %v2424 = vadd.f32 0.0, %v2423
  %v2425 = vpop.f32.mrb[0].mxu0
  %2426 = vmatprep.mubr.f32.mxu0 %v2301
  %2427 = vmatmul.mubr.f32.gmra.mrb[0].mxu0 %v2240
  %v2428 = vpop.f32.mrb[0].mxu0
  %v2429 = vadd.f32 0.0, %v2428
  %v2430 = vpop.f32.mrb[0].mxu0
  %2431 = vmatprep.mubr.f32.mxu0 %v2304
  %2432 = vmatmul.mubr.f32.gmra.mrb[0].mxu0 %v2242
  %v2433 = vpop.f32.mrb[0].mxu0
  %v2434 = vadd.f32 0.0, %v2433
  %v2435 = vpop.f32.mrb[0].mxu0
  %2436 = vmatprep.mubr.f32.mxu0 %v2307
  %2437 = vmatmul.mubr.f32.gmra.mrb[0].mxu0 %v2244
  %v2438 = vpop.f32.mrb[0].mxu0
  %v2439 = vadd.f32 0.0, %v2438
  %v2440 = vpop.f32.mrb[0].mxu0
  %2441 = vmatprep.mubr.f32.mxu0 %v2310
  %2442 = vmatmul.mubr.f32.gmra.mrb[0].mxu0 %v2246
  %v2443 = vpop.f32.mrb[0].mxu0
  %v2444 = vadd.f32 0.0, %v2443
  %v2445 = vpop.f32.mrb[0].mxu0
  %2446 = vdwg.mxu0
  %v2447 = vld [vmem:[%s6] sm:$0xff]
  %v2448 = vld [vmem:[%s6 + $0x8] sm:$0xff]
  %v2449 = vld [vmem:[%s6 + $0x10] sm:$0xff]
  %v2450 = vld [vmem:[%s6 + $0x18] sm:$0xff]
  %v2451 = vld [vmem:[%s6 + $0x20] sm:$0xff]
  %v2452 = vld [vmem:[%s6 + $0x28] sm:$0xff]
  %v2453 = vld [vmem:[%s6 + $0x30] sm:$0xff]
  %v2454 = vld [vmem:[%s6 + $0x38] sm:$0xff]
  %v2455 = vld [vmem:[%s6 + $0x40] sm:$0xff]
  %v2456 = vld [vmem:[%s6 + $0x48] sm:$0xff]
  %v2457 = vld [vmem:[%s6 + $0x50] sm:$0xff]
  %v2458 = vld [vmem:[%s6 + $0x58] sm:$0xff]
  %v2459 = vld [vmem:[%s6 + $0x60] sm:$0xff]
  %v2460 = vld [vmem:[%s6 + $0x68] sm:$0xff]
  %v2461 = vld [vmem:[%s6 + $0x70] sm:$0xff]
  %v2462 = vld [vmem:[%s6 + $0x78] sm:$0xff]
  %v2463 = vld [vmem:[%s6 + $0x80] sm:$0xff]
  %v2464 = vld [vmem:[%s6 + $0x88] sm:$0xff]
  %v2465 = vld [vmem:[%s6 + $0x90] sm:$0xff]
  %v2466 = vld [vmem:[%s6 + $0x98] sm:$0xff]
  %v2467 = vld [vmem:[%s6 + $0xa0] sm:$0xff]
  %2468 = vmatprep.subr.mxu0 0.0
  %2469 = vmatpush1.msra.mxu0 %v2447
  %2470 = vmatprep.subr.mxu0 0.0
  %2471 = vmatpush1.msra.mxu0 %v2448
  %2472 = vmatprep.subr.mxu0 0.0
  %2473 = vmatpush1.msra.mxu0 %v2449
  %2474 = vmatprep.subr.mxu0 0.0
  %2475 = vmatpush1.msra.mxu0 %v2450
  %2476 = vmatprep.subr.mxu0 0.0
  %2477 = vmatpush1.msra.mxu0 %v2451
  %2478 = vmatprep.subr.mxu0 0.0
  %2479 = vmatpush1.msra.mxu0 %v2452
  %2480 = vmatprep.subr.mxu0 0.0
  %2481 = vmatpush1.msra.mxu0 %v2453
  %2482 = vmatprep.subr.mxu0 0.0
  %2483 = vmatpush1.msra.mxu0 %v2454
  %2484 = vmatprep.subr.mxu0 0.0
  %2485 = vmatpush1.msra.mxu0 %v2455
  %2486 = vmatprep.subr.mxu0 0.0
  %2487 = vmatpush1.msra.mxu0 %v2456
  %2488 = vmatprep.subr.mxu0 0.0
  %2489 = vmatpush1.msra.mxu0 %v2457
  %2490 = vmatprep.subr.mxu0 0.0
  %2491 = vmatpush1.msra.mxu0 %v2458
  %2492 = vmatprep.subr.mxu0 0.0
  %2493 = vmatpush1.msra.mxu0 %v2459
  %2494 = vmatprep.subr.mxu0 0.0
  %2495 = vmatpush1.msra.mxu0 %v2460
  %2496 = vmatprep.subr.mxu0 0.0
  %2497 = vmatpush1.msra.mxu0 %v2461
  %2498 = vmatprep.subr.mxu0 0.0
  %2499 = vmatpush1.msra.mxu0 %v2462
  %2500 = vmatprep.subr.mxu0 0.0
  %2501 = vmatpush1.msra.mxu0 %v2463
  %2502 = vmatprep.subr.mxu0 0.0
  %2503 = vmatpush1.msra.mxu0 %v2464
  %2504 = vmatprep.subr.mxu0 0.0
  %2505 = vmatpush1.msra.mxu0 %v2465
  %2506 = vmatprep.subr.mxu0 0.0
  %2507 = vmatpush1.msra.mxu0 %v2466
  %2508 = vmatprep.subr.mxu0 0.0
  %2509 = vmatpush1.msra.mxu0 %v2467
  %2510 = vmatprep.subr.mxu0 0.0
  %2511 = vmatpush1.msra.mxu0 0.0
  %2512 = vmatprep.subr.mxu0 0.0
  %2513 = vmatpush1.msra.mxu0 0.0
  %2514 = vmatprep.subr.mxu0 0.0
  %2515 = vmatpush1.msra.mxu0 0.0
  %2516 = vmatprep.subr.mxu0 0.0
  %2517 = vmatpush1.msra.mxu0 0.0
  %2518 = vmatprep.subr.mxu0 0.0
  %2519 = vmatpush1.msra.mxu0 0.0
  %2520 = vmatprep.subr.mxu0 0.0
  %2521 = vmatpush1.msra.mxu0 0.0
  %2522 = vmatprep.subr.mxu0 0.0
  %2523 = vmatpush1.msra.mxu0 0.0
  %2524 = vmatprep.subr.mxu0 0.0
  %2525 = vmatpush1.msra.mxu0 0.0
  %2526 = vmatprep.subr.mxu0 0.0
  %2527 = vmatpush1.msra.mxu0 0.0
  %2528 = vmatprep.subr.mxu0 0.0
  %2529 = vmatpush1.msra.mxu0 0.0
  %2530 = vmatprep.subr.mxu0 0.0
  %2531 = vmatpush1.msra.mxu0 0.0
  %2532 = vmatprep.mubr.f32.mxu0 %v2271
  %2533 = vmatmul.mubr.f32.gmra.mrb[0].mxu0 %v2220
  %v2534 = vpop.f32.mrb[0].mxu0
  %v2535 = vadd.f32 0.0, %v2534
  %v2536 = vpop.f32.mrb[0].mxu0
  %2537 = vmatprep.mubr.f32.mxu0 %v2274
  %2538 = vmatmul.mubr.f32.gmra.mrb[0].mxu0 %v2222
  %v2539 = vpop.f32.mrb[0].mxu0
  %v2540 = vadd.f32 0.0, %v2539
  %v2541 = vpop.f32.mrb[0].mxu0
  %2542 = vmatprep.mubr.f32.mxu0 %v2277
  %2543 = vmatmul.mubr.f32.gmra.mrb[0].mxu0 %v2224
  %v2544 = vpop.f32.mrb[0].mxu0
  %v2545 = vadd.f32 0.0, %v2544
  %v2546 = vpop.f32.mrb[0].mxu0
  %2547 = vmatprep.mubr.f32.mxu0 %v2280
  %2548 = vmatmul.mubr.f32.gmra.mrb[0].mxu0 %v2226
  %v2549 = vpop.f32.mrb[0].mxu0
  %v2550 = vadd.f32 0.0, %v2549
  %v2551 = vpop.f32.mrb[0].mxu0
  %2552 = vmatprep.mubr.f32.mxu0 %v2283
  %2553 = vmatmul.mubr.f32.gmra.mrb[0].mxu0 %v2228
  %v2554 = vpop.f32.mrb[0].mxu0
  %v2555 = vadd.f32 0.0, %v2554
  %v2556 = vpop.f32.mrb[0].mxu0
  %2557 = vmatprep.mubr.f32.mxu0 %v2286
  %2558 = vmatmul.mubr.f32.gmra.mrb[0].mxu0 %v2230
  %v2559 = vpop.f32.mrb[0].mxu0
  %v2560 = vadd.f32 0.0, %v2559
  %v2561 = vpop.f32.mrb[0].mxu0
  %2562 = vmatprep.mubr.f32.mxu0 %v2289
  %2563 = vmatmul.mubr.f32.gmra.mrb[0].mxu0 %v2232
  %v2564 = vpop.f32.mrb[0].mxu0
  %v2565 = vadd.f32 0.0, %v2564
  %v2566 = vpop.f32.mrb[0].mxu0
  %2567 = vmatprep.mubr.f32.mxu0 %v2292
  %2568 = vmatmul.mubr.f32.gmra.mrb[0].mxu0 %v2234
  %v2569 = vpop.f32.mrb[0].mxu0
  %v2570 = vadd.f32 0.0, %v2569
  %v2571 = vpop.f32.mrb[0].mxu0
  %2572 = vmatprep.mubr.f32.mxu0 %v2295
  %2573 = vmatmul.mubr.f32.gmra.mrb[0].mxu0 %v2236
  %v2574 = vpop.f32.mrb[0].mxu0
  %v2575 = vadd.f32 0.0, %v2574
  %v2576 = vpop.f32.mrb[0].mxu0
  %2577 = vmatprep.mubr.f32.mxu0 %v2298
  %2578 = vmatmul.mubr.f32.gmra.mrb[0].mxu0 %v2238
  %v2579 = vpop.f32.mrb[0].mxu0
  %v2580 = vadd.f32 0.0, %v2579
  %v2581 = vpop.f32.mrb[0].mxu0
  %2582 = vmatprep.mubr.f32.mxu0 %v2301
  %2583 = vmatmul.mubr.f32.gmra.mrb[0].mxu0 %v2240
  %v2584 = vpop.f32.mrb[0].mxu0
  %v2585 = vadd.f32 0.0, %v2584
  %v2586 = vpop.f32.mrb[0].mxu0
  %2587 = vmatprep.mubr.f32.mxu0 %v2304
  %2588 = vmatmul.mubr.f32.gmra.mrb[0].mxu0 %v2242
  %v2589 = vpop.f32.mrb[0].mxu0
  %v2590 = vadd.f32 0.0, %v2589
  %v2591 = vpop.f32.mrb[0].mxu0
  %2592 = vmatprep.mubr.f32.mxu0 %v2307
  %2593 = vmatmul.mubr.f32.gmra.mrb[0].mxu0 %v2244
  %v2594 = vpop.f32.mrb[0].mxu0
  %v2595 = vadd.f32 0.0, %v2594
  %v2596 = vpop.f32.mrb[0].mxu0
  %2597 = vmatprep.mubr.f32.mxu0 %v2310
  %2598 = vmatmul.mubr.f32.gmra.mrb[0].mxu0 %v2246
  %v2599 = vpop.f32.mrb[0].mxu0
  %v2600 = vadd.f32 0.0, %v2599
  %v2601 = vpop.f32.mrb[0].mxu0
  %2602 = vdwg.mxu0
  %v2603 = vmax.f32 %v2379, %v2535
  %v2604 = vmax.f32 %v2384, %v2540
  %v2605 = vmax.f32 %v2389, %v2545
  %v2606 = vmax.f32 %v2394, %v2550
  %v2607 = vmax.f32 %v2399, %v2555
  %v2608 = vmax.f32 %v2404, %v2560
  %v2609 = vmax.f32 %v2409, %v2565
  %v2610 = vmax.f32 %v2414, %v2570
  %v2611 = vmax.f32 %v2419, %v2575
  %v2612 = vmax.f32 %v2424, %v2580
  %v2613 = vmax.f32 %v2429, %v2585
  %v2614 = vmax.f32 %v2434, %v2590
  %v2615 = vmax.f32 %v2439, %v2595
  %v2616 = vmax.f32 %v2444, %v2600
  %v2617 = vpack.c.bf16 %v2604, %v2603
  %v2618 = vpack.c.bf16 %v2606, %v2605
  %v2619 = vpack.c.bf16 %v2608, %v2607
  %v2620 = vpack.c.bf16 %v2610, %v2609
  %v2621 = vpack.c.bf16 %v2612, %v2611
  %v2622 = vld [vmem:[%s7] sm:$0xff]
  %v2623 = vld [vmem:[%s7 + $0x8] sm:$0xff]
  %v2624 = vld [vmem:[%s7 + $0x10] sm:$0xff]
  %v2625 = vld [vmem:[%s7 + $0x18] sm:$0xff]
  %v2626 = vld [vmem:[%s7 + $0x20] sm:$0xff]
  %v2627 = vld [vmem:[%s7 + $0x28] sm:$0xff]
  %v2628 = vld [vmem:[%s7 + $0x30] sm:$0xff]
  %v2629 = vld [vmem:[%s7 + $0x38] sm:$0xff]
  %v2630 = vld [vmem:[%s7 + $0x40] sm:$0xff]
  %v2631 = vld [vmem:[%s7 + $0x48] sm:$0xff]
  %v2632 = vld [vmem:[%s7 + $0x50] sm:$0xff]
  %v2633 = vld [vmem:[%s7 + $0x58] sm:$0xff]
  %v2634 = vld [vmem:[%s7 + $0x60] sm:$0xff]
  %v2635 = vld [vmem:[%s7 + $0x68] sm:$0xff]
  %v2636 = vld [vmem:[%s7 + $0x70] sm:$0xff]
  %v2637 = vld [vmem:[%s7 + $0x78] sm:$0xff]
  %v2638 = vpack.c.bf16 %v2605, %v2604
  %v2639 = vpack.c.bf16 %v2607, %v2606
  %v2640 = vpack.c.bf16 %v2609, %v2608
  %v2641 = vpack.c.bf16 %v2611, %v2610
  %v2642 = vpack.c.bf16 %v2613, %v2612
  %s2643 = scalar_lea.vmem %s7, 128
  %v2644 = vld [vmem:[%s2643] sm:$0xff]
  %v2645 = vld [vmem:[%s2643 + $0x8] sm:$0xff]
  %v2646 = vld [vmem:[%s2643 + $0x10] sm:$0xff]
  %v2647 = vld [vmem:[%s2643 + $0x18] sm:$0xff]
  %v2648 = vld [vmem:[%s2643 + $0x20] sm:$0xff]
  %v2649 = vld [vmem:[%s2643 + $0x28] sm:$0xff]
  %v2650 = vld [vmem:[%s2643 + $0x30] sm:$0xff]
  %v2651 = vld [vmem:[%s2643 + $0x38] sm:$0xff]
  %v2652 = vld [vmem:[%s2643 + $0x40] sm:$0xff]
  %v2653 = vld [vmem:[%s2643 + $0x48] sm:$0xff]
  %v2654 = vld [vmem:[%s2643 + $0x50] sm:$0xff]
  %v2655 = vld [vmem:[%s2643 + $0x58] sm:$0xff]
  %v2656 = vld [vmem:[%s2643 + $0x60] sm:$0xff]
  %v2657 = vld [vmem:[%s2643 + $0x68] sm:$0xff]
  %v2658 = vld [vmem:[%s2643 + $0x70] sm:$0xff]
  %v2659 = vld [vmem:[%s2643 + $0x78] sm:$0xff]
  %v2676 = vunpack.c.l.b16 %v2644
  %v2677 = vunpack.c.h.b16 %v2644
  %v2678 = vunpack.c.l.b16 %v2645
  %v2679 = vunpack.c.h.b16 %v2645
  %v2680 = vunpack.c.l.b16 %v2646
  %v2681 = vunpack.c.h.b16 %v2646
  %v2682 = vunpack.c.l.b16 %v2647
  %v2683 = vunpack.c.h.b16 %v2647
  %v2684 = vunpack.c.l.b16 %v2648
  %v2685 = vunpack.c.h.b16 %v2648
  %v2686 = vunpack.c.l.b16 %v2649
  %v2687 = vunpack.c.h.b16 %v2649
  %v2688 = vunpack.c.l.b16 %v2650
  %v2689 = vunpack.c.h.b16 %v2650
  %v2690 = vunpack.c.l.b16 %v2651
  %v2691 = vunpack.c.h.b16 %v2651
  %v2692 = vunpack.c.l.b16 %v2652
  %v2693 = vunpack.c.h.b16 %v2652
  %v2694 = vunpack.c.l.b16 %v2653
  %v2695 = vunpack.c.h.b16 %v2653
  %v2696 = vunpack.c.l.b16 %v2654
  %v2697 = vunpack.c.h.b16 %v2654
  %v2698 = vunpack.c.l.b16 %v2655
  %v2699 = vunpack.c.h.b16 %v2655
  %v2700 = vunpack.c.l.b16 %v2656
  %v2701 = vunpack.c.h.b16 %v2656
  %v2702 = vunpack.c.l.b16 %v2657
  %v2703 = vunpack.c.h.b16 %v2657
  %v2704 = vunpack.c.l.b16 %v2658
  %v2705 = vunpack.c.h.b16 %v2658
  %v2706 = vunpack.c.l.b16 %v2659
  %v2707 = vunpack.c.h.b16 %v2659
  %v2708 = vpack.c.b16 %v2678, %v2676
  %v2709 = vpack.c.b16 %v2679, %v2677
  %v2710 = vpack.c.b16 %v2682, %v2680
  %v2711 = vpack.c.b16 %v2683, %v2681
  %v2712 = vpack.c.b16 %v2686, %v2684
  %v2713 = vpack.c.b16 %v2687, %v2685
  %v2714 = vpack.c.b16 %v2690, %v2688
  %v2715 = vpack.c.b16 %v2691, %v2689
  %v2716 = vpack.c.b16 %v2694, %v2692
  %v2717 = vpack.c.b16 %v2695, %v2693
  %v2718 = vpack.c.b16 %v2698, %v2696
  %v2719 = vpack.c.b16 %v2699, %v2697
  %v2720 = vpack.c.b16 %v2702, %v2700
  %v2721 = vpack.c.b16 %v2703, %v2701
  %v2722 = vpack.c.b16 %v2706, %v2704
  %v2723 = vpack.c.b16 %v2707, %v2705
  %2740 = vmatprep.subr.bf16.mxu0 %v2709
  %2741 = vmatpush1.bf16.msra.mxu0 %v2708
  %2742 = vmatprep.subr.bf16.mxu0 %v2711
  %2743 = vmatpush1.bf16.msra.mxu0 %v2710
  %2744 = vmatprep.subr.bf16.mxu0 %v2713
  %2745 = vmatpush1.bf16.msra.mxu0 %v2712
  %2746 = vmatprep.subr.bf16.mxu0 %v2715
  %2747 = vmatpush1.bf16.msra.mxu0 %v2714
  %2748 = vmatprep.subr.bf16.mxu0 %v2717
  %2749 = vmatpush1.bf16.msra.mxu0 %v2716
  %2750 = vmatprep.subr.bf16.mxu0 %v2719
  %2751 = vmatpush1.bf16.msra.mxu0 %v2718
  %2752 = vmatprep.subr.bf16.mxu0 %v2721
  %2753 = vmatpush1.bf16.msra.mxu0 %v2720
  %2754 = vmatprep.subr.bf16.mxu0 %v2723
  %2755 = vmatpush1.bf16.msra.mxu0 %v2722
  %2756 = vmatprep.subr.bf16.mxu0 0
  %2757 = vmatpush1.bf16.msra.mxu0 0
  %2758 = vmatprep.subr.bf16.mxu0 0
  %2759 = vmatpush1.bf16.msra.mxu0 0
  %2760 = vmatprep.subr.bf16.mxu0 0
  %2761 = vmatpush1.bf16.msra.mxu0 0
  %2762 = vmatprep.subr.bf16.mxu0 0
  %2763 = vmatpush1.bf16.msra.mxu0 0
  %2764 = vmatprep.subr.bf16.mxu0 0
  %2765 = vmatpush1.bf16.msra.mxu0 0
  %2766 = vmatprep.subr.bf16.mxu0 0
  %2767 = vmatpush1.bf16.msra.mxu0 0
  %2768 = vmatprep.subr.bf16.mxu0 0
  %2769 = vmatpush1.bf16.msra.mxu0 0
  %2770 = vmatprep.subr.bf16.mxu0 0
  %2771 = vmatpush1.bf16.msra.mxu0 0
  %2772 = vmatprep.mubr.bf16.mxu0 0
  %2773 = vmatmul.mubr.bf16.gmra.mrb[0].mxu0 %v2638
  %v2774 = vpop.f32.mrb[0].mxu0
  %v2775 = vadd.f32 0.0, %v2774
  %v2776 = vpop.f32.mrb[0].mxu0
  %v2777 = vadd.f32 0.0, %v2776
  %v2778 = vpop.f32.mrb[0].mxu0
  %v2779 = vadd.f32 0.0, %v2778
  %v2780 = vpop.f32.mrb[0].mxu0
  %v2781 = vadd.f32 0.0, %v2780
  %2782 = vmatprep.mubr.bf16.mxu0 0
  %2783 = vmatmul.mubr.bf16.gmra.mrb[0].mxu0 %v2639
  %v2784 = vpop.f32.mrb[0].mxu0
  %v2785 = vadd.f32 0.0, %v2784
  %v2786 = vpop.f32.mrb[0].mxu0
  %v2787 = vadd.f32 0.0, %v2786
  %v2788 = vpop.f32.mrb[0].mxu0
  %v2789 = vadd.f32 0.0, %v2788
  %v2790 = vpop.f32.mrb[0].mxu0
  %v2791 = vadd.f32 0.0, %v2790
  %2792 = vmatprep.mubr.bf16.mxu0 0
  %2793 = vmatmul.mubr.bf16.gmra.mrb[0].mxu0 %v2640
  %v2794 = vpop.f32.mrb[0].mxu0
  %v2795 = vadd.f32 0.0, %v2794
  %v2796 = vpop.f32.mrb[0].mxu0
  %v2797 = vadd.f32 0.0, %v2796
  %v2798 = vpop.f32.mrb[0].mxu0
  %v2799 = vadd.f32 0.0, %v2798
  %v2800 = vpop.f32.mrb[0].mxu0
  %v2801 = vadd.f32 0.0, %v2800
  %2802 = vmatprep.mubr.bf16.mxu0 0
  %2803 = vmatmul.mubr.bf16.gmra.mrb[0].mxu0 %v2641
  %v2804 = vpop.f32.mrb[0].mxu0
  %v2805 = vadd.f32 0.0, %v2804
  %v2806 = vpop.f32.mrb[0].mxu0
  %v2807 = vadd.f32 0.0, %v2806
  %v2808 = vpop.f32.mrb[0].mxu0
  %v2809 = vadd.f32 0.0, %v2808
  %v2810 = vpop.f32.mrb[0].mxu0
  %v2811 = vadd.f32 0.0, %v2810
  %2812 = vmatprep.mubr.bf16.mxu0 0
  %2813 = vmatmul.mubr.bf16.gmra.mrb[0].mxu0 %v2642
  %v2814 = vpop.f32.mrb[0].mxu0
  %v2815 = vadd.f32 0.0, %v2814
  %v2816 = vpop.f32.mrb[0].mxu0
  %v2817 = vadd.f32 0.0, %v2816
  %v2818 = vpop.f32.mrb[0].mxu0
  %v2819 = vadd.f32 0.0, %v2818
  %v2820 = vpop.f32.mrb[0].mxu0
  %v2821 = vadd.f32 0.0, %v2820
  %2822 = vdwg.mxu0
  %v2839 = vunpack.c.l.b16 %v2622
  %v2840 = vunpack.c.h.b16 %v2622
  %v2841 = vunpack.c.l.b16 %v2623
  %v2842 = vunpack.c.h.b16 %v2623
  %v2843 = vunpack.c.l.b16 %v2624
  %v2844 = vunpack.c.h.b16 %v2624
  %v2845 = vunpack.c.l.b16 %v2625
  %v2846 = vunpack.c.h.b16 %v2625
  %v2847 = vunpack.c.l.b16 %v2626
  %v2848 = vunpack.c.h.b16 %v2626
  %v2849 = vunpack.c.l.b16 %v2627
  %v2850 = vunpack.c.h.b16 %v2627
  %v2851 = vunpack.c.l.b16 %v2628
  %v2852 = vunpack.c.h.b16 %v2628
  %v2853 = vunpack.c.l.b16 %v2629
  %v2854 = vunpack.c.h.b16 %v2629
  %v2855 = vunpack.c.l.b16 %v2630
  %v2856 = vunpack.c.h.b16 %v2630
  %v2857 = vunpack.c.l.b16 %v2631
  %v2858 = vunpack.c.h.b16 %v2631
  %v2859 = vunpack.c.l.b16 %v2632
  %v2860 = vunpack.c.h.b16 %v2632
  %v2861 = vunpack.c.l.b16 %v2633
  %v2862 = vunpack.c.h.b16 %v2633
  %v2863 = vunpack.c.l.b16 %v2634
  %v2864 = vunpack.c.h.b16 %v2634
  %v2865 = vunpack.c.l.b16 %v2635
  %v2866 = vunpack.c.h.b16 %v2635
  %v2867 = vunpack.c.l.b16 %v2636
  %v2868 = vunpack.c.h.b16 %v2636
  %v2869 = vunpack.c.l.b16 %v2637
  %v2870 = vunpack.c.h.b16 %v2637
  %v2871 = vpack.c.b16 %v2841, %v2839
  %v2872 = vpack.c.b16 %v2842, %v2840
  %v2873 = vpack.c.b16 %v2845, %v2843
  %v2874 = vpack.c.b16 %v2846, %v2844
  %v2875 = vpack.c.b16 %v2849, %v2847
  %v2876 = vpack.c.b16 %v2850, %v2848
  %v2877 = vpack.c.b16 %v2853, %v2851
  %v2878 = vpack.c.b16 %v2854, %v2852
  %v2879 = vpack.c.b16 %v2857, %v2855
  %v2880 = vpack.c.b16 %v2858, %v2856
  %v2881 = vpack.c.b16 %v2861, %v2859
  %v2882 = vpack.c.b16 %v2862, %v2860
  %v2883 = vpack.c.b16 %v2865, %v2863
  %v2884 = vpack.c.b16 %v2866, %v2864
  %v2885 = vpack.c.b16 %v2869, %v2867
  %v2886 = vpack.c.b16 %v2870, %v2868
  %2903 = vmatprep.subr.bf16.mxu0 %v2872
  %2904 = vmatpush1.bf16.msra.mxu0 %v2871
  %2905 = vmatprep.subr.bf16.mxu0 %v2874
  %2906 = vmatpush1.bf16.msra.mxu0 %v2873
  %2907 = vmatprep.subr.bf16.mxu0 %v2876
  %2908 = vmatpush1.bf16.msra.mxu0 %v2875
  %2909 = vmatprep.subr.bf16.mxu0 %v2878
  %2910 = vmatpush1.bf16.msra.mxu0 %v2877
  %2911 = vmatprep.subr.bf16.mxu0 %v2880
  %2912 = vmatpush1.bf16.msra.mxu0 %v2879
  %2913 = vmatprep.subr.bf16.mxu0 %v2882
  %2914 = vmatpush1.bf16.msra.mxu0 %v2881
  %2915 = vmatprep.subr.bf16.mxu0 %v2884
  %2916 = vmatpush1.bf16.msra.mxu0 %v2883
  %2917 = vmatprep.subr.bf16.mxu0 %v2886
  %2918 = vmatpush1.bf16.msra.mxu0 %v2885
  %2919 = vmatprep.subr.bf16.mxu0 0
  %2920 = vmatpush1.bf16.msra.mxu0 0
  %2921 = vmatprep.subr.bf16.mxu0 0
  %2922 = vmatpush1.bf16.msra.mxu0 0
  %2923 = vmatprep.subr.bf16.mxu0 0
  %2924 = vmatpush1.bf16.msra.mxu0 0
  %2925 = vmatprep.subr.bf16.mxu0 0
  %2926 = vmatpush1.bf16.msra.mxu0 0
  %2927 = vmatprep.subr.bf16.mxu0 0
  %2928 = vmatpush1.bf16.msra.mxu0 0
  %2929 = vmatprep.subr.bf16.mxu0 0
  %2930 = vmatpush1.bf16.msra.mxu0 0
  %2931 = vmatprep.subr.bf16.mxu0 0
  %2932 = vmatpush1.bf16.msra.mxu0 0
  %2933 = vmatprep.subr.bf16.mxu0 0
  %2934 = vmatpush1.bf16.msra.mxu0 0
  %2935 = vmatprep.mubr.bf16.mxu0 0
  %2936 = vmatmul.mubr.bf16.gmra.mrb[0].mxu0 %v2617
  %v2937 = vpop.f32.mrb[0].mxu0
  %v2938 = vadd.f32 %v2775, %v2937
  %v2939 = vpop.f32.mrb[0].mxu0
  %v2940 = vadd.f32 %v2777, %v2939
  %v2941 = vpop.f32.mrb[0].mxu0
  %v2942 = vadd.f32 %v2779, %v2941
  %v2943 = vpop.f32.mrb[0].mxu0
  %v2944 = vadd.f32 %v2781, %v2943
  %2945 = vmatprep.mubr.bf16.mxu0 0
  %2946 = vmatmul.mubr.bf16.gmra.mrb[0].mxu0 %v2618
  %v2947 = vpop.f32.mrb[0].mxu0
  %v2948 = vadd.f32 %v2785, %v2947
  %v2949 = vpop.f32.mrb[0].mxu0
  %v2950 = vadd.f32 %v2787, %v2949
  %v2951 = vpop.f32.mrb[0].mxu0
  %v2952 = vadd.f32 %v2789, %v2951
  %v2953 = vpop.f32.mrb[0].mxu0
  %v2954 = vadd.f32 %v2791, %v2953
  %2955 = vmatprep.mubr.bf16.mxu0 0
  %2956 = vmatmul.mubr.bf16.gmra.mrb[0].mxu0 %v2619
  %v2957 = vpop.f32.mrb[0].mxu0
  %v2958 = vadd.f32 %v2795, %v2957
  %v2959 = vpop.f32.mrb[0].mxu0
  %v2960 = vadd.f32 %v2797, %v2959
  %v2961 = vpop.f32.mrb[0].mxu0
  %v2962 = vadd.f32 %v2799, %v2961
  %v2963 = vpop.f32.mrb[0].mxu0
  %v2964 = vadd.f32 %v2801, %v2963
  %2965 = vmatprep.mubr.bf16.mxu0 0
  %2966 = vmatmul.mubr.bf16.gmra.mrb[0].mxu0 %v2620
  %v2967 = vpop.f32.mrb[0].mxu0
  %v2968 = vadd.f32 %v2805, %v2967
  %v2969 = vpop.f32.mrb[0].mxu0
  %v2970 = vadd.f32 %v2807, %v2969
  %v2971 = vpop.f32.mrb[0].mxu0
  %v2972 = vadd.f32 %v2809, %v2971
  %v2973 = vpop.f32.mrb[0].mxu0
  %v2974 = vadd.f32 %v2811, %v2973
  %2975 = vmatprep.mubr.bf16.mxu0 0
  %2976 = vmatmul.mubr.bf16.gmra.mrb[0].mxu0 %v2621
  %v2977 = vpop.f32.mrb[0].mxu0
  %v2978 = vadd.f32 %v2815, %v2977
  %v2979 = vpop.f32.mrb[0].mxu0
  %v2980 = vadd.f32 %v2817, %v2979
  %v2981 = vpop.f32.mrb[0].mxu0
  %v2982 = vadd.f32 %v2819, %v2981
  %v2983 = vpop.f32.mrb[0].mxu0
  %v2984 = vadd.f32 %v2821, %v2983
  %2985 = vdwg.mxu0
  %v2986 = vpack.c.bf16 %v2614, %v2613
  %s2987 = scalar_lea.vmem %s7, 256
  %v2988 = vld [vmem:[%s2987] sm:$0xff]
  %v2989 = vld [vmem:[%s2987 + $0x8] sm:$0xff]
  %v2990 = vld [vmem:[%s2987 + $0x10] sm:$0xff]
  %v2991 = vld [vmem:[%s2987 + $0x18] sm:$0xff]
  %v2992 = vld [vmem:[%s2987 + $0x20] sm:$0xff]
  %v2993 = vld [vmem:[%s2987 + $0x28] sm:$0xff]
  %v2994 = vld [vmem:[%s2987 + $0x30] sm:$0xff]
  %v2995 = vld [vmem:[%s2987 + $0x38] sm:$0xff]
  %v2996 = vld [vmem:[%s2987 + $0x40] sm:$0xff]
  %v2997 = vld [vmem:[%s2987 + $0x48] sm:$0xff]
  %v2998 = vld [vmem:[%s2987 + $0x50] sm:$0xff]
  %v2999 = vld [vmem:[%s2987 + $0x58] sm:$0xff]
  %v3000 = vld [vmem:[%s2987 + $0x60] sm:$0xff]
  %v3001 = vld [vmem:[%s2987 + $0x68] sm:$0xff]
  %v3002 = vld [vmem:[%s2987 + $0x70] sm:$0xff]
  %v3003 = vld [vmem:[%s2987 + $0x78] sm:$0xff]
  %v3020 = vunpack.c.l.b16 %v2988
  %v3021 = vunpack.c.h.b16 %v2988
  %v3022 = vunpack.c.l.b16 %v2989
  %v3023 = vunpack.c.h.b16 %v2989
  %v3024 = vunpack.c.l.b16 %v2990
  %v3025 = vunpack.c.h.b16 %v2990
  %v3026 = vunpack.c.l.b16 %v2991
  %v3027 = vunpack.c.h.b16 %v2991
  %v3028 = vunpack.c.l.b16 %v2992
  %v3029 = vunpack.c.h.b16 %v2992
  %v3030 = vunpack.c.l.b16 %v2993
  %v3031 = vunpack.c.h.b16 %v2993
  %v3032 = vunpack.c.l.b16 %v2994
  %v3033 = vunpack.c.h.b16 %v2994
  %v3034 = vunpack.c.l.b16 %v2995
  %v3035 = vunpack.c.h.b16 %v2995
  %v3036 = vunpack.c.l.b16 %v2996
  %v3037 = vunpack.c.h.b16 %v2996
  %v3038 = vunpack.c.l.b16 %v2997
  %v3039 = vunpack.c.h.b16 %v2997
  %v3040 = vunpack.c.l.b16 %v2998
  %v3041 = vunpack.c.h.b16 %v2998
  %v3042 = vunpack.c.l.b16 %v2999
  %v3043 = vunpack.c.h.b16 %v2999
  %v3044 = vunpack.c.l.b16 %v3000
  %v3045 = vunpack.c.h.b16 %v3000
  %v3046 = vunpack.c.l.b16 %v3001
  %v3047 = vunpack.c.h.b16 %v3001
  %v3048 = vunpack.c.l.b16 %v3002
  %v3049 = vunpack.c.h.b16 %v3002
  %v3050 = vunpack.c.l.b16 %v3003
  %v3051 = vunpack.c.h.b16 %v3003
  %v3052 = vpack.c.b16 %v3022, %v3020
  %v3053 = vpack.c.b16 %v3023, %v3021
  %v3054 = vpack.c.b16 %v3026, %v3024
  %v3055 = vpack.c.b16 %v3027, %v3025
  %v3056 = vpack.c.b16 %v3030, %v3028
  %v3057 = vpack.c.b16 %v3031, %v3029
  %v3058 = vpack.c.b16 %v3034, %v3032
  %v3059 = vpack.c.b16 %v3035, %v3033
  %v3060 = vpack.c.b16 %v3038, %v3036
  %v3061 = vpack.c.b16 %v3039, %v3037
  %v3062 = vpack.c.b16 %v3042, %v3040
  %v3063 = vpack.c.b16 %v3043, %v3041
  %v3064 = vpack.c.b16 %v3046, %v3044
  %v3065 = vpack.c.b16 %v3047, %v3045
  %v3066 = vpack.c.b16 %v3050, %v3048
  %v3067 = vpack.c.b16 %v3051, %v3049
  %3084 = vmatprep.subr.bf16.mxu0 %v3053
  %3085 = vmatpush1.bf16.msra.mxu0 %v3052
  %3086 = vmatprep.subr.bf16.mxu0 %v3055
  %3087 = vmatpush1.bf16.msra.mxu0 %v3054
  %3088 = vmatprep.subr.bf16.mxu0 %v3057
  %3089 = vmatpush1.bf16.msra.mxu0 %v3056
  %3090 = vmatprep.subr.bf16.mxu0 %v3059
  %3091 = vmatpush1.bf16.msra.mxu0 %v3058
  %3092 = vmatprep.subr.bf16.mxu0 %v3061
  %3093 = vmatpush1.bf16.msra.mxu0 %v3060
  %3094 = vmatprep.subr.bf16.mxu0 %v3063
  %3095 = vmatpush1.bf16.msra.mxu0 %v3062
  %3096 = vmatprep.subr.bf16.mxu0 %v3065
  %3097 = vmatpush1.bf16.msra.mxu0 %v3064
  %3098 = vmatprep.subr.bf16.mxu0 %v3067
  %3099 = vmatpush1.bf16.msra.mxu0 %v3066
  %3100 = vmatprep.subr.bf16.mxu0 0
  %3101 = vmatpush1.bf16.msra.mxu0 0
  %3102 = vmatprep.subr.bf16.mxu0 0
  %3103 = vmatpush1.bf16.msra.mxu0 0
  %3104 = vmatprep.subr.bf16.mxu0 0
  %3105 = vmatpush1.bf16.msra.mxu0 0
  %3106 = vmatprep.subr.bf16.mxu0 0
  %3107 = vmatpush1.bf16.msra.mxu0 0
  %3108 = vmatprep.subr.bf16.mxu0 0
  %3109 = vmatpush1.bf16.msra.mxu0 0
  %3110 = vmatprep.subr.bf16.mxu0 0
  %3111 = vmatpush1.bf16.msra.mxu0 0
  %3112 = vmatprep.subr.bf16.mxu0 0
  %3113 = vmatpush1.bf16.msra.mxu0 0
  %3114 = vmatprep.subr.bf16.mxu0 0
  %3115 = vmatpush1.bf16.msra.mxu0 0
  %3116 = vmatprep.mubr.bf16.mxu0 0
  %3117 = vmatmul.mubr.bf16.gmra.mrb[0].mxu0 %v2618
  %v3118 = vpop.f32.mrb[0].mxu0
  %v3119 = vadd.f32 0.0, %v3118
  %v3120 = vpop.f32.mrb[0].mxu0
  %v3121 = vadd.f32 0.0, %v3120
  %v3122 = vpop.f32.mrb[0].mxu0
  %v3123 = vadd.f32 0.0, %v3122
  %v3124 = vpop.f32.mrb[0].mxu0
  %v3125 = vadd.f32 0.0, %v3124
  %3126 = vmatprep.mubr.bf16.mxu0 0
  %3127 = vmatmul.mubr.bf16.gmra.mrb[0].mxu0 %v2619
  %v3128 = vpop.f32.mrb[0].mxu0
  %v3129 = vadd.f32 0.0, %v3128
  %v3130 = vpop.f32.mrb[0].mxu0
  %v3131 = vadd.f32 0.0, %v3130
  %v3132 = vpop.f32.mrb[0].mxu0
  %v3133 = vadd.f32 0.0, %v3132
  %v3134 = vpop.f32.mrb[0].mxu0
  %v3135 = vadd.f32 0.0, %v3134
  %3136 = vmatprep.mubr.bf16.mxu0 0
  %3137 = vmatmul.mubr.bf16.gmra.mrb[0].mxu0 %v2620
  %v3138 = vpop.f32.mrb[0].mxu0
  %v3139 = vadd.f32 0.0, %v3138
  %v3140 = vpop.f32.mrb[0].mxu0
  %v3141 = vadd.f32 0.0, %v3140
  %v3142 = vpop.f32.mrb[0].mxu0
  %v3143 = vadd.f32 0.0, %v3142
  %v3144 = vpop.f32.mrb[0].mxu0
  %v3145 = vadd.f32 0.0, %v3144
  %3146 = vmatprep.mubr.bf16.mxu0 0
  %3147 = vmatmul.mubr.bf16.gmra.mrb[0].mxu0 %v2621
  %v3148 = vpop.f32.mrb[0].mxu0
  %v3149 = vadd.f32 0.0, %v3148
  %v3150 = vpop.f32.mrb[0].mxu0
  %v3151 = vadd.f32 0.0, %v3150
  %v3152 = vpop.f32.mrb[0].mxu0
  %v3153 = vadd.f32 0.0, %v3152
  %v3154 = vpop.f32.mrb[0].mxu0
  %v3155 = vadd.f32 0.0, %v3154
  %3156 = vmatprep.mubr.bf16.mxu0 0
  %3157 = vmatmul.mubr.bf16.gmra.mrb[0].mxu0 %v2986
  %v3158 = vpop.f32.mrb[0].mxu0
  %v3159 = vadd.f32 0.0, %v3158
  %v3160 = vpop.f32.mrb[0].mxu0
  %v3161 = vadd.f32 0.0, %v3160
  %v3162 = vpop.f32.mrb[0].mxu0
  %v3163 = vadd.f32 0.0, %v3162
  %v3164 = vpop.f32.mrb[0].mxu0
  %v3165 = vadd.f32 0.0, %v3164
  %3166 = vdwg.mxu0
  %v3167 = vadd.f32 %v2938, %v3119
  %v3168 = vadd.f32 %v2940, %v3121
  %v3169 = vadd.f32 %v2942, %v3123
  %v3170 = vadd.f32 %v2944, %v3125
  %v3171 = vadd.f32 %v2948, %v3129
  %v3172 = vadd.f32 %v2950, %v3131
  %v3173 = vadd.f32 %v2952, %v3133
  %v3174 = vadd.f32 %v2954, %v3135
  %v3175 = vadd.f32 %v2958, %v3139
  %v3176 = vadd.f32 %v2960, %v3141
  %v3177 = vadd.f32 %v2962, %v3143
  %v3178 = vadd.f32 %v2964, %v3145
  %v3179 = vadd.f32 %v2968, %v3149
  %v3180 = vadd.f32 %v2970, %v3151
  %v3181 = vadd.f32 %v2972, %v3153
  %v3182 = vadd.f32 %v2974, %v3155
  %v3183 = vadd.f32 %v2978, %v3159
  %v3184 = vadd.f32 %v2980, %v3161
  %v3185 = vadd.f32 %v2982, %v3163
  %v3186 = vadd.f32 %v2984, %v3165
  %v3187 = vpack.c.bf16 %v2615, %v2614
  %s3188 = scalar_lea.vmem %s7, 384
  %v3189 = vld [vmem:[%s3188] sm:$0xff]
  %v3190 = vld [vmem:[%s3188 + $0x8] sm:$0xff]
  %v3191 = vld [vmem:[%s3188 + $0x10] sm:$0xff]
  %v3192 = vld [vmem:[%s3188 + $0x18] sm:$0xff]
  %v3193 = vld [vmem:[%s3188 + $0x20] sm:$0xff]
  %v3194 = vld [vmem:[%s3188 + $0x28] sm:$0xff]
  %v3195 = vld [vmem:[%s3188 + $0x30] sm:$0xff]
  %v3196 = vld [vmem:[%s3188 + $0x38] sm:$0xff]
  %v3197 = vld [vmem:[%s3188 + $0x40] sm:$0xff]
  %v3198 = vld [vmem:[%s3188 + $0x48] sm:$0xff]
  %v3199 = vld [vmem:[%s3188 + $0x50] sm:$0xff]
  %v3200 = vld [vmem:[%s3188 + $0x58] sm:$0xff]
  %v3201 = vld [vmem:[%s3188 + $0x60] sm:$0xff]
  %v3202 = vld [vmem:[%s3188 + $0x68] sm:$0xff]
  %v3203 = vld [vmem:[%s3188 + $0x70] sm:$0xff]
  %v3204 = vld [vmem:[%s3188 + $0x78] sm:$0xff]
  %v3221 = vunpack.c.l.b16 %v3189
  %v3222 = vunpack.c.h.b16 %v3189
  %v3223 = vunpack.c.l.b16 %v3190
  %v3224 = vunpack.c.h.b16 %v3190
  %v3225 = vunpack.c.l.b16 %v3191
  %v3226 = vunpack.c.h.b16 %v3191
  %v3227 = vunpack.c.l.b16 %v3192
  %v3228 = vunpack.c.h.b16 %v3192
  %v3229 = vunpack.c.l.b16 %v3193
  %v3230 = vunpack.c.h.b16 %v3193
  %v3231 = vunpack.c.l.b16 %v3194
  %v3232 = vunpack.c.h.b16 %v3194
  %v3233 = vunpack.c.l.b16 %v3195
  %v3234 = vunpack.c.h.b16 %v3195
  %v3235 = vunpack.c.l.b16 %v3196
  %v3236 = vunpack.c.h.b16 %v3196
  %v3237 = vunpack.c.l.b16 %v3197
  %v3238 = vunpack.c.h.b16 %v3197
  %v3239 = vunpack.c.l.b16 %v3198
  %v3240 = vunpack.c.h.b16 %v3198
  %v3241 = vunpack.c.l.b16 %v3199
  %v3242 = vunpack.c.h.b16 %v3199
  %v3243 = vunpack.c.l.b16 %v3200
  %v3244 = vunpack.c.h.b16 %v3200
  %v3245 = vunpack.c.l.b16 %v3201
  %v3246 = vunpack.c.h.b16 %v3201
  %v3247 = vunpack.c.l.b16 %v3202
  %v3248 = vunpack.c.h.b16 %v3202
  %v3249 = vunpack.c.l.b16 %v3203
  %v3250 = vunpack.c.h.b16 %v3203
  %v3251 = vunpack.c.l.b16 %v3204
  %v3252 = vunpack.c.h.b16 %v3204
  %v3253 = vpack.c.b16 %v3223, %v3221
  %v3254 = vpack.c.b16 %v3224, %v3222
  %v3255 = vpack.c.b16 %v3227, %v3225
  %v3256 = vpack.c.b16 %v3228, %v3226
  %v3257 = vpack.c.b16 %v3231, %v3229
  %v3258 = vpack.c.b16 %v3232, %v3230
  %v3259 = vpack.c.b16 %v3235, %v3233
  %v3260 = vpack.c.b16 %v3236, %v3234
  %v3261 = vpack.c.b16 %v3239, %v3237
  %v3262 = vpack.c.b16 %v3240, %v3238
  %v3263 = vpack.c.b16 %v3243, %v3241
  %v3264 = vpack.c.b16 %v3244, %v3242
  %v3265 = vpack.c.b16 %v3247, %v3245
  %v3266 = vpack.c.b16 %v3248, %v3246
  %v3267 = vpack.c.b16 %v3251, %v3249
  %v3268 = vpack.c.b16 %v3252, %v3250
  %3285 = vmatprep.subr.bf16.mxu0 %v3254
  %3286 = vmatpush1.bf16.msra.mxu0 %v3253
  %3287 = vmatprep.subr.bf16.mxu0 %v3256
  %3288 = vmatpush1.bf16.msra.mxu0 %v3255
  %3289 = vmatprep.subr.bf16.mxu0 %v3258
  %3290 = vmatpush1.bf16.msra.mxu0 %v3257
  %3291 = vmatprep.subr.bf16.mxu0 %v3260
  %3292 = vmatpush1.bf16.msra.mxu0 %v3259
  %3293 = vmatprep.subr.bf16.mxu0 %v3262
  %3294 = vmatpush1.bf16.msra.mxu0 %v3261
  %3295 = vmatprep.subr.bf16.mxu0 %v3264
  %3296 = vmatpush1.bf16.msra.mxu0 %v3263
  %3297 = vmatprep.subr.bf16.mxu0 %v3266
  %3298 = vmatpush1.bf16.msra.mxu0 %v3265
  %3299 = vmatprep.subr.bf16.mxu0 %v3268
  %3300 = vmatpush1.bf16.msra.mxu0 %v3267
  %3301 = vmatprep.subr.bf16.mxu0 0
  %3302 = vmatpush1.bf16.msra.mxu0 0
  %3303 = vmatprep.subr.bf16.mxu0 0
  %3304 = vmatpush1.bf16.msra.mxu0 0
  %3305 = vmatprep.subr.bf16.mxu0 0
  %3306 = vmatpush1.bf16.msra.mxu0 0
  %3307 = vmatprep.subr.bf16.mxu0 0
  %3308 = vmatpush1.bf16.msra.mxu0 0
  %3309 = vmatprep.subr.bf16.mxu0 0
  %3310 = vmatpush1.bf16.msra.mxu0 0
  %3311 = vmatprep.subr.bf16.mxu0 0
  %3312 = vmatpush1.bf16.msra.mxu0 0
  %3313 = vmatprep.subr.bf16.mxu0 0
  %3314 = vmatpush1.bf16.msra.mxu0 0
  %3315 = vmatprep.subr.bf16.mxu0 0
  %3316 = vmatpush1.bf16.msra.mxu0 0
  %3317 = vmatprep.mubr.bf16.mxu0 0
  %3318 = vmatmul.mubr.bf16.gmra.mrb[0].mxu0 %v2639
  %v3319 = vpop.f32.mrb[0].mxu0
  %v3320 = vadd.f32 0.0, %v3319
  %v3321 = vpop.f32.mrb[0].mxu0
  %v3322 = vadd.f32 0.0, %v3321
  %v3323 = vpop.f32.mrb[0].mxu0
  %v3324 = vadd.f32 0.0, %v3323
  %v3325 = vpop.f32.mrb[0].mxu0
  %v3326 = vadd.f32 0.0, %v3325
  %3327 = vmatprep.mubr.bf16.mxu0 0
  %3328 = vmatmul.mubr.bf16.gmra.mrb[0].mxu0 %v2640
  %v3329 = vpop.f32.mrb[0].mxu0
  %v3330 = vadd.f32 0.0, %v3329
  %v3331 = vpop.f32.mrb[0].mxu0
  %v3332 = vadd.f32 0.0, %v3331
  %v3333 = vpop.f32.mrb[0].mxu0
  %v3334 = vadd.f32 0.0, %v3333
  %v3335 = vpop.f32.mrb[0].mxu0
  %v3336 = vadd.f32 0.0, %v3335
  %3337 = vmatprep.mubr.bf16.mxu0 0
  %3338 = vmatmul.mubr.bf16.gmra.mrb[0].mxu0 %v2641
  %v3339 = vpop.f32.mrb[0].mxu0
  %v3340 = vadd.f32 0.0, %v3339
  %v3341 = vpop.f32.mrb[0].mxu0
  %v3342 = vadd.f32 0.0, %v3341
  %v3343 = vpop.f32.mrb[0].mxu0
  %v3344 = vadd.f32 0.0, %v3343
  %v3345 = vpop.f32.mrb[0].mxu0
  %v3346 = vadd.f32 0.0, %v3345
  %3347 = vmatprep.mubr.bf16.mxu0 0
  %3348 = vmatmul.mubr.bf16.gmra.mrb[0].mxu0 %v2642
  %v3349 = vpop.f32.mrb[0].mxu0
  %v3350 = vadd.f32 0.0, %v3349
  %v3351 = vpop.f32.mrb[0].mxu0
  %v3352 = vadd.f32 0.0, %v3351
  %v3353 = vpop.f32.mrb[0].mxu0
  %v3354 = vadd.f32 0.0, %v3353
  %v3355 = vpop.f32.mrb[0].mxu0
  %v3356 = vadd.f32 0.0, %v3355
  %3357 = vmatprep.mubr.bf16.mxu0 0
  %3358 = vmatmul.mubr.bf16.gmra.mrb[0].mxu0 %v3187
  %v3359 = vpop.f32.mrb[0].mxu0
  %v3360 = vadd.f32 0.0, %v3359
  %v3361 = vpop.f32.mrb[0].mxu0
  %v3362 = vadd.f32 0.0, %v3361
  %v3363 = vpop.f32.mrb[0].mxu0
  %v3364 = vadd.f32 0.0, %v3363
  %v3365 = vpop.f32.mrb[0].mxu0
  %v3366 = vadd.f32 0.0, %v3365
  %3367 = vdwg.mxu0
  %v3368 = vadd.f32 %v3167, %v3320
  %v3369 = vadd.f32 %v3168, %v3322
  %v3370 = vadd.f32 %v3169, %v3324
  %v3371 = vadd.f32 %v3170, %v3326
  %v3372 = vadd.f32 %v3171, %v3330
  %v3373 = vadd.f32 %v3172, %v3332
  %v3374 = vadd.f32 %v3173, %v3334
  %v3375 = vadd.f32 %v3174, %v3336
  %v3376 = vadd.f32 %v3175, %v3340
  %v3377 = vadd.f32 %v3176, %v3342
  %v3378 = vadd.f32 %v3177, %v3344
  %v3379 = vadd.f32 %v3178, %v3346
  %v3380 = vadd.f32 %v3179, %v3350
  %v3381 = vadd.f32 %v3180, %v3352
  %v3382 = vadd.f32 %v3181, %v3354
  %v3383 = vadd.f32 %v3182, %v3356
  %v3384 = vadd.f32 %v3183, %v3360
  %v3385 = vadd.f32 %v3184, %v3362
  %v3386 = vadd.f32 %v3185, %v3364
  %v3387 = vadd.f32 %v3186, %v3366
  %v3388 = vpack.c.bf16 %v2616, %v2615
  %s3389 = scalar_lea.vmem %s7, 512
  %v3390 = vld [vmem:[%s3389] sm:$0xff]
  %v3391 = vld [vmem:[%s3389 + $0x8] sm:$0xff]
  %v3392 = vld [vmem:[%s3389 + $0x10] sm:$0xff]
  %v3393 = vld [vmem:[%s3389 + $0x18] sm:$0xff]
  %v3394 = vld [vmem:[%s3389 + $0x20] sm:$0xff]
  %v3395 = vld [vmem:[%s3389 + $0x28] sm:$0xff]
  %v3396 = vld [vmem:[%s3389 + $0x30] sm:$0xff]
  %v3397 = vld [vmem:[%s3389 + $0x38] sm:$0xff]
  %v3398 = vld [vmem:[%s3389 + $0x40] sm:$0xff]
  %v3399 = vld [vmem:[%s3389 + $0x48] sm:$0xff]
  %v3400 = vld [vmem:[%s3389 + $0x50] sm:$0xff]
  %v3401 = vld [vmem:[%s3389 + $0x58] sm:$0xff]
  %v3402 = vld [vmem:[%s3389 + $0x60] sm:$0xff]
  %v3403 = vld [vmem:[%s3389 + $0x68] sm:$0xff]
  %v3404 = vld [vmem:[%s3389 + $0x70] sm:$0xff]
  %v3405 = vld [vmem:[%s3389 + $0x78] sm:$0xff]
  %v3422 = vunpack.c.l.b16 %v3390
  %v3423 = vunpack.c.h.b16 %v3390
  %v3424 = vunpack.c.l.b16 %v3391
  %v3425 = vunpack.c.h.b16 %v3391
  %v3426 = vunpack.c.l.b16 %v3392
  %v3427 = vunpack.c.h.b16 %v3392
  %v3428 = vunpack.c.l.b16 %v3393
  %v3429 = vunpack.c.h.b16 %v3393
  %v3430 = vunpack.c.l.b16 %v3394
  %v3431 = vunpack.c.h.b16 %v3394
  %v3432 = vunpack.c.l.b16 %v3395
  %v3433 = vunpack.c.h.b16 %v3395
  %v3434 = vunpack.c.l.b16 %v3396
  %v3435 = vunpack.c.h.b16 %v3396
  %v3436 = vunpack.c.l.b16 %v3397
  %v3437 = vunpack.c.h.b16 %v3397
  %v3438 = vunpack.c.l.b16 %v3398
  %v3439 = vunpack.c.h.b16 %v3398
  %v3440 = vunpack.c.l.b16 %v3399
  %v3441 = vunpack.c.h.b16 %v3399
  %v3442 = vunpack.c.l.b16 %v3400
  %v3443 = vunpack.c.h.b16 %v3400
  %v3444 = vunpack.c.l.b16 %v3401
  %v3445 = vunpack.c.h.b16 %v3401
  %v3446 = vunpack.c.l.b16 %v3402
  %v3447 = vunpack.c.h.b16 %v3402
  %v3448 = vunpack.c.l.b16 %v3403
  %v3449 = vunpack.c.h.b16 %v3403
  %v3450 = vunpack.c.l.b16 %v3404
  %v3451 = vunpack.c.h.b16 %v3404
  %v3452 = vunpack.c.l.b16 %v3405
  %v3453 = vunpack.c.h.b16 %v3405
  %v3454 = vpack.c.b16 %v3424, %v3422
  %v3455 = vpack.c.b16 %v3425, %v3423
  %v3456 = vpack.c.b16 %v3428, %v3426
  %v3457 = vpack.c.b16 %v3429, %v3427
  %v3458 = vpack.c.b16 %v3432, %v3430
  %v3459 = vpack.c.b16 %v3433, %v3431
  %v3460 = vpack.c.b16 %v3436, %v3434
  %v3461 = vpack.c.b16 %v3437, %v3435
  %v3462 = vpack.c.b16 %v3440, %v3438
  %v3463 = vpack.c.b16 %v3441, %v3439
  %v3464 = vpack.c.b16 %v3444, %v3442
  %v3465 = vpack.c.b16 %v3445, %v3443
  %v3466 = vpack.c.b16 %v3448, %v3446
  %v3467 = vpack.c.b16 %v3449, %v3447
  %v3468 = vpack.c.b16 %v3452, %v3450
  %v3469 = vpack.c.b16 %v3453, %v3451
  %3486 = vmatprep.subr.bf16.mxu0 %v3455
  %3487 = vmatpush1.bf16.msra.mxu0 %v3454
  %3488 = vmatprep.subr.bf16.mxu0 %v3457
  %3489 = vmatpush1.bf16.msra.mxu0 %v3456
  %3490 = vmatprep.subr.bf16.mxu0 %v3459
  %3491 = vmatpush1.bf16.msra.mxu0 %v3458
  %3492 = vmatprep.subr.bf16.mxu0 %v3461
  %3493 = vmatpush1.bf16.msra.mxu0 %v3460
  %3494 = vmatprep.subr.bf16.mxu0 %v3463
  %3495 = vmatpush1.bf16.msra.mxu0 %v3462
  %3496 = vmatprep.subr.bf16.mxu0 %v3465
  %3497 = vmatpush1.bf16.msra.mxu0 %v3464
  %3498 = vmatprep.subr.bf16.mxu0 %v3467
  %3499 = vmatpush1.bf16.msra.mxu0 %v3466
  %3500 = vmatprep.subr.bf16.mxu0 %v3469
  %3501 = vmatpush1.bf16.msra.mxu0 %v3468
  %3502 = vmatprep.subr.bf16.mxu0 0
  %3503 = vmatpush1.bf16.msra.mxu0 0
  %3504 = vmatprep.subr.bf16.mxu0 0
  %3505 = vmatpush1.bf16.msra.mxu0 0
  %3506 = vmatprep.subr.bf16.mxu0 0
  %3507 = vmatpush1.bf16.msra.mxu0 0
  %3508 = vmatprep.subr.bf16.mxu0 0
  %3509 = vmatpush1.bf16.msra.mxu0 0
  %3510 = vmatprep.subr.bf16.mxu0 0
  %3511 = vmatpush1.bf16.msra.mxu0 0
  %3512 = vmatprep.subr.bf16.mxu0 0
  %3513 = vmatpush1.bf16.msra.mxu0 0
  %3514 = vmatprep.subr.bf16.mxu0 0
  %3515 = vmatpush1.bf16.msra.mxu0 0
  %3516 = vmatprep.subr.bf16.mxu0 0
  %3517 = vmatpush1.bf16.msra.mxu0 0
  %3518 = vmatprep.mubr.bf16.mxu0 0
  %3519 = vmatmul.mubr.bf16.gmra.mrb[0].mxu0 %v2619
  %v3520 = vpop.f32.mrb[0].mxu0
  %v3521 = vadd.f32 0.0, %v3520
  %v3522 = vpop.f32.mrb[0].mxu0
  %v3523 = vadd.f32 0.0, %v3522
  %v3524 = vpop.f32.mrb[0].mxu0
  %v3525 = vadd.f32 0.0, %v3524
  %v3526 = vpop.f32.mrb[0].mxu0
  %v3527 = vadd.f32 0.0, %v3526
  %3528 = vmatprep.mubr.bf16.mxu0 0
  %3529 = vmatmul.mubr.bf16.gmra.mrb[0].mxu0 %v2620
  %v3530 = vpop.f32.mrb[0].mxu0
  %v3531 = vadd.f32 0.0, %v3530
  %v3532 = vpop.f32.mrb[0].mxu0
  %v3533 = vadd.f32 0.0, %v3532
  %v3534 = vpop.f32.mrb[0].mxu0
  %v3535 = vadd.f32 0.0, %v3534
  %v3536 = vpop.f32.mrb[0].mxu0
  %v3537 = vadd.f32 0.0, %v3536
  %3538 = vmatprep.mubr.bf16.mxu0 0
  %3539 = vmatmul.mubr.bf16.gmra.mrb[0].mxu0 %v2621
  %v3540 = vpop.f32.mrb[0].mxu0
  %v3541 = vadd.f32 0.0, %v3540
  %v3542 = vpop.f32.mrb[0].mxu0
  %v3543 = vadd.f32 0.0, %v3542
  %v3544 = vpop.f32.mrb[0].mxu0
  %v3545 = vadd.f32 0.0, %v3544
  %v3546 = vpop.f32.mrb[0].mxu0
  %v3547 = vadd.f32 0.0, %v3546
  %3548 = vmatprep.mubr.bf16.mxu0 0
  %3549 = vmatmul.mubr.bf16.gmra.mrb[0].mxu0 %v2986
  %v3550 = vpop.f32.mrb[0].mxu0
  %v3551 = vadd.f32 0.0, %v3550
  %v3552 = vpop.f32.mrb[0].mxu0
  %v3553 = vadd.f32 0.0, %v3552
  %v3554 = vpop.f32.mrb[0].mxu0
  %v3555 = vadd.f32 0.0, %v3554
  %v3556 = vpop.f32.mrb[0].mxu0
  %v3557 = vadd.f32 0.0, %v3556
  %3558 = vmatprep.mubr.bf16.mxu0 0
  %3559 = vmatmul.mubr.bf16.gmra.mrb[0].mxu0 %v3388
  %v3560 = vpop.f32.mrb[0].mxu0
  %v3561 = vadd.f32 0.0, %v3560
  %v3562 = vpop.f32.mrb[0].mxu0
  %v3563 = vadd.f32 0.0, %v3562
  %v3564 = vpop.f32.mrb[0].mxu0
  %v3565 = vadd.f32 0.0, %v3564
  %v3566 = vpop.f32.mrb[0].mxu0
  %v3567 = vadd.f32 0.0, %v3566
  %3568 = vdwg.mxu0
  %v3569 = vadd.f32 %v3368, %v3521
  %v3570 = vadd.f32 %v3369, %v3523
  %v3571 = vadd.f32 %v3370, %v3525
  %v3572 = vadd.f32 %v3371, %v3527
  %v3573 = vadd.f32 %v3372, %v3531
  %v3574 = vadd.f32 %v3373, %v3533
  %v3575 = vadd.f32 %v3374, %v3535
  %v3576 = vadd.f32 %v3375, %v3537
  %v3577 = vadd.f32 %v3376, %v3541
  %v3578 = vadd.f32 %v3377, %v3543
  %v3579 = vadd.f32 %v3378, %v3545
  %v3580 = vadd.f32 %v3379, %v3547
  %v3581 = vadd.f32 %v3380, %v3551
  %v3582 = vadd.f32 %v3381, %v3553
  %v3583 = vadd.f32 %v3382, %v3555
  %v3584 = vadd.f32 %v3383, %v3557
  %v3585 = vadd.f32 %v3384, %v3561
  %v3586 = vadd.f32 %v3385, %v3563
  %v3587 = vadd.f32 %v3386, %v3565
  %v3588 = vadd.f32 %v3387, %v3567
  %v3589 = vld [vmem:[%s8] sm:$0x3]
  %v3591 = vlaneseq
  %v3592 = vshrl.u32 %v3591, 7
  %v3593 = vsub.s32 0, %v3592
  %v3594 = vrot.slane %v3589, %v3593
  %v3595 = vlaneseq
  %v3596 = vshrl.u32 %v3595, 7
  %v3597 = vsub.s32 1, %v3596
  %v3598 = vrot.slane %v3589, %v3597
  %v3601 = vadd.f32 %v3569, %v3594
  %v3602 = vadd.f32 %v3570, %v3598
  %v3603 = vadd.f32 %v3571, %v3594
  %v3604 = vadd.f32 %v3572, %v3598
  %v3605 = vadd.f32 %v3573, %v3594
  %v3606 = vadd.f32 %v3574, %v3598
  %v3607 = vadd.f32 %v3575, %v3594
  %v3608 = vadd.f32 %v3576, %v3598
  %v3609 = vadd.f32 %v3577, %v3594
  %v3610 = vadd.f32 %v3578, %v3598
  %v3611 = vadd.f32 %v3579, %v3594
  %v3612 = vadd.f32 %v3580, %v3598
  %v3613 = vadd.f32 %v3581, %v3594
  %v3614 = vadd.f32 %v3582, %v3598
  %v3615 = vadd.f32 %v3583, %v3594
  %v3616 = vadd.f32 %v3584, %v3598
  %v3617 = vadd.f32 %v3585, %v3594
  %v3618 = vadd.f32 %v3586, %v3598
  %v3619 = vadd.f32 %v3587, %v3594
  %v3620 = vadd.f32 %v3588, %v3598
  %v3621 = vld [vmem:[%s9] sm:$0xff]
  %v3622 = vld [vmem:[%s9 + $0x8] sm:$0xff]
  %v3623 = vld [vmem:[%s9 + $0x10] sm:$0xff]
  %v3624 = vld [vmem:[%s9 + $0x18] sm:$0xff]
  %v3625 = vld [vmem:[%s9 + $0x20] sm:$0xff]
  %vm3626 = vcmask 654336
  %v3628 = vsel %vm3626, %v3621, 0
  %v3631 = vsel %vm3626, %v3622, 0
  %v3634 = vsel %vm3626, %v3623, 0
  %v3637 = vsel %vm3626, %v3624, 0
  %v3640 = vsel %vm3626, %v3625, 0
  %3642 = vmatprep.subr.mxu0 %v3602
  %3643 = vmatpush1.msra.mxu0 %v3601
  %3644 = vmatprep.subr.mxu0 %v3604
  %3645 = vmatpush1.msra.mxu0 %v3603
  %3646 = vmatprep.subr.mxu0 %v3606
  %3647 = vmatpush1.msra.mxu0 %v3605
  %3648 = vmatprep.subr.mxu0 %v3608
  %3649 = vmatpush1.msra.mxu0 %v3607
  %3650 = vmatprep.subr.mxu0 %v3610
  %3651 = vmatpush1.msra.mxu0 %v3609
  %3652 = vmatprep.subr.mxu0 %v3612
  %3653 = vmatpush1.msra.mxu0 %v3611
  %3654 = vmatprep.subr.mxu0 %v3614
  %3655 = vmatpush1.msra.mxu0 %v3613
  %3656 = vmatprep.subr.mxu0 %v3616
  %3657 = vmatpush1.msra.mxu0 %v3615
  %3658 = vmatprep.subr.mxu0 %v3618
  %3659 = vmatpush1.msra.mxu0 %v3617
  %3660 = vmatprep.subr.mxu0 %v3620
  %3661 = vmatpush1.msra.mxu0 %v3619
  %3662 = vmatprep.subr.mxu0 0.0
  %3663 = vmatpush1.msra.mxu0 0.0
  %3664 = vmatprep.subr.mxu0 0.0
  %3665 = vmatpush1.msra.mxu0 0.0
  %3666 = vmatprep.subr.mxu0 0.0
  %3667 = vmatpush1.msra.mxu0 0.0
  %3668 = vmatprep.subr.mxu0 0.0
  %3669 = vmatpush1.msra.mxu0 0.0
  %3670 = vmatprep.subr.mxu0 0.0
  %3671 = vmatpush1.msra.mxu0 0.0
  %3672 = vmatprep.subr.mxu0 0.0
  %3673 = vmatpush1.msra.mxu0 0.0
  %3674 = vmatprep.subr.mxu0 0.0
  %3675 = vmatpush1.msra.mxu0 0.0
  %3676 = vmatprep.subr.mxu0 0.0
  %3677 = vmatpush1.msra.mxu0 0.0
  %3678 = vmatprep.subr.mxu0 0.0
  %3679 = vmatpush1.msra.mxu0 0.0
  %3680 = vmatprep.subr.mxu0 0.0
  %3681 = vmatpush1.msra.mxu0 0.0
  %3682 = vmatprep.subr.mxu0 0.0
  %3683 = vmatpush1.msra.mxu0 0.0
  %3684 = vmatprep.subr.mxu0 0.0
  %3685 = vmatpush1.msra.mxu0 0.0
  %3686 = vmatprep.subr.mxu0 0.0
  %3687 = vmatpush1.msra.mxu0 0.0
  %3688 = vmatprep.subr.mxu0 0.0
  %3689 = vmatpush1.msra.mxu0 0.0
  %3690 = vmatprep.subr.mxu0 0.0
  %3691 = vmatpush1.msra.mxu0 0.0
  %3692 = vmatprep.subr.mxu0 0.0
  %3693 = vmatpush1.msra.mxu0 0.0
  %3694 = vmatprep.subr.mxu0 0.0
  %3695 = vmatpush1.msra.mxu0 0.0
  %3696 = vmatprep.subr.mxu0 0.0
  %3697 = vmatpush1.msra.mxu0 0.0
  %3698 = vmatprep.subr.mxu0 0.0
  %3699 = vmatpush1.msra.mxu0 0.0
  %3700 = vmatprep.subr.mxu0 0.0
  %3701 = vmatpush1.msra.mxu0 0.0
  %3702 = vmatprep.subr.mxu0 0.0
  %3703 = vmatpush1.msra.mxu0 0.0
  %3704 = vmatprep.subr.mxu0 0.0
  %3705 = vmatpush1.msra.mxu0 0.0
  %3706 = vmatprep.mubr.f32.mxu0 0.0
  %3707 = vmatmul.mubr.f32.gmra.mrb[0].mxu0 %v3628
  %v3708 = vpop.f32.mrb[0].mxu0
  %v3709 = vadd.f32 0.0, %v3708
  %v3710 = vpop.f32.mrb[0].mxu0
  %v3711 = vadd.f32 0.0, %v3710
  %3712 = vmatprep.mubr.f32.mxu0 0.0
  %3713 = vmatmul.mubr.f32.gmra.mrb[0].mxu0 %v3631
  %v3714 = vpop.f32.mrb[0].mxu0
  %v3715 = vadd.f32 0.0, %v3714
  %v3716 = vpop.f32.mrb[0].mxu0
  %v3717 = vadd.f32 0.0, %v3716
  %3718 = vmatprep.mubr.f32.mxu0 0.0
  %3719 = vmatmul.mubr.f32.gmra.mrb[0].mxu0 %v3634
  %v3720 = vpop.f32.mrb[0].mxu0
  %v3721 = vadd.f32 0.0, %v3720
  %v3722 = vpop.f32.mrb[0].mxu0
  %v3723 = vadd.f32 0.0, %v3722
  %3724 = vmatprep.mubr.f32.mxu0 0.0
  %3725 = vmatmul.mubr.f32.gmra.mrb[0].mxu0 %v3637
  %v3726 = vpop.f32.mrb[0].mxu0
  %v3727 = vadd.f32 0.0, %v3726
  %v3728 = vpop.f32.mrb[0].mxu0
  %v3729 = vadd.f32 0.0, %v3728
  %3730 = vmatprep.mubr.f32.mxu0 0.0
  %3731 = vmatmul.mubr.f32.gmra.mrb[0].mxu0 %v3640
  %v3732 = vpop.f32.mrb[0].mxu0
  %v3733 = vadd.f32 0.0, %v3732
  %v3734 = vpop.f32.mrb[0].mxu0
  %v3735 = vadd.f32 0.0, %v3734
  %3736 = vdwg.mxu0
  %v3737 = vld [vmem:[%s10] sm:$0xff]
  %v3738 = vld [vmem:[%s10 + $0x8] sm:$0xff]
  %v3739 = vld [vmem:[%s10 + $0x10] sm:$0xff]
  %v3740 = vld [vmem:[%s10 + $0x18] sm:$0xff]
  %v3741 = vld [vmem:[%s10 + $0x20] sm:$0xff]
  %v3743 = vsel %vm3626, %v3737, 0
  %v3746 = vsel %vm3626, %v3738, 0
  %v3749 = vsel %vm3626, %v3739, 0
  %v3752 = vsel %vm3626, %v3740, 0
  %v3755 = vsel %vm3626, %v3741, 0
  %3757 = vmatprep.subr.mxu0 %v3602
  %3758 = vmatpush1.msra.mxu0 %v3601
  %3759 = vmatprep.subr.mxu0 %v3604
  %3760 = vmatpush1.msra.mxu0 %v3603
  %3761 = vmatprep.subr.mxu0 %v3606
  %3762 = vmatpush1.msra.mxu0 %v3605
  %3763 = vmatprep.subr.mxu0 %v3608
  %3764 = vmatpush1.msra.mxu0 %v3607
  %3765 = vmatprep.subr.mxu0 %v3610
  %3766 = vmatpush1.msra.mxu0 %v3609
  %3767 = vmatprep.subr.mxu0 %v3612
  %3768 = vmatpush1.msra.mxu0 %v3611
  %3769 = vmatprep.subr.mxu0 %v3614
  %3770 = vmatpush1.msra.mxu0 %v3613
  %3771 = vmatprep.subr.mxu0 %v3616
  %3772 = vmatpush1.msra.mxu0 %v3615
  %3773 = vmatprep.subr.mxu0 %v3618
  %3774 = vmatpush1.msra.mxu0 %v3617
  %3775 = vmatprep.subr.mxu0 %v3620
  %3776 = vmatpush1.msra.mxu0 %v3619
  %3777 = vmatprep.subr.mxu0 0.0
  %3778 = vmatpush1.msra.mxu0 0.0
  %3779 = vmatprep.subr.mxu0 0.0
  %3780 = vmatpush1.msra.mxu0 0.0
  %3781 = vmatprep.subr.mxu0 0.0
  %3782 = vmatpush1.msra.mxu0 0.0
  %3783 = vmatprep.subr.mxu0 0.0
  %3784 = vmatpush1.msra.mxu0 0.0
  %3785 = vmatprep.subr.mxu0 0.0
  %3786 = vmatpush1.msra.mxu0 0.0
  %3787 = vmatprep.subr.mxu0 0.0
  %3788 = vmatpush1.msra.mxu0 0.0
  %3789 = vmatprep.subr.mxu0 0.0
  %3790 = vmatpush1.msra.mxu0 0.0
  %3791 = vmatprep.subr.mxu0 0.0
  %3792 = vmatpush1.msra.mxu0 0.0
  %3793 = vmatprep.subr.mxu0 0.0
  %3794 = vmatpush1.msra.mxu0 0.0
  %3795 = vmatprep.subr.mxu0 0.0
  %3796 = vmatpush1.msra.mxu0 0.0
  %3797 = vmatprep.subr.mxu0 0.0
  %3798 = vmatpush1.msra.mxu0 0.0
  %3799 = vmatprep.subr.mxu0 0.0
  %3800 = vmatpush1.msra.mxu0 0.0
  %3801 = vmatprep.subr.mxu0 0.0
  %3802 = vmatpush1.msra.mxu0 0.0
  %3803 = vmatprep.subr.mxu0 0.0
  %3804 = vmatpush1.msra.mxu0 0.0
  %3805 = vmatprep.subr.mxu0 0.0
  %3806 = vmatpush1.msra.mxu0 0.0
  %3807 = vmatprep.subr.mxu0 0.0
  %3808 = vmatpush1.msra.mxu0 0.0
  %3809 = vmatprep.subr.mxu0 0.0
  %3810 = vmatpush1.msra.mxu0 0.0
  %3811 = vmatprep.subr.mxu0 0.0
  %3812 = vmatpush1.msra.mxu0 0.0
  %3813 = vmatprep.subr.mxu0 0.0
  %3814 = vmatpush1.msra.mxu0 0.0
  %3815 = vmatprep.subr.mxu0 0.0
  %3816 = vmatpush1.msra.mxu0 0.0
  %3817 = vmatprep.subr.mxu0 0.0
  %3818 = vmatpush1.msra.mxu0 0.0
  %3819 = vmatprep.subr.mxu0 0.0
  %3820 = vmatpush1.msra.mxu0 0.0
  %3821 = vmatprep.mubr.f32.mxu0 0.0
  %3822 = vmatmul.mubr.f32.gmra.mrb[0].mxu0 %v3743
  %v3823 = vpop.f32.mrb[0].mxu0
  %v3824 = vadd.f32 0.0, %v3823
  %v3825 = vpop.f32.mrb[0].mxu0
  %v3826 = vadd.f32 0.0, %v3825
  %3827 = vmatprep.mubr.f32.mxu0 0.0
  %3828 = vmatmul.mubr.f32.gmra.mrb[0].mxu0 %v3746
  %v3829 = vpop.f32.mrb[0].mxu0
  %v3830 = vadd.f32 0.0, %v3829
  %v3831 = vpop.f32.mrb[0].mxu0
  %v3832 = vadd.f32 0.0, %v3831
  %3833 = vmatprep.mubr.f32.mxu0 0.0
  %3834 = vmatmul.mubr.f32.gmra.mrb[0].mxu0 %v3749
  %v3835 = vpop.f32.mrb[0].mxu0
  %v3836 = vadd.f32 0.0, %v3835
  %v3837 = vpop.f32.mrb[0].mxu0
  %v3838 = vadd.f32 0.0, %v3837
  %3839 = vmatprep.mubr.f32.mxu0 0.0
  %3840 = vmatmul.mubr.f32.gmra.mrb[0].mxu0 %v3752
  %v3841 = vpop.f32.mrb[0].mxu0
  %v3842 = vadd.f32 0.0, %v3841
  %v3843 = vpop.f32.mrb[0].mxu0
  %v3844 = vadd.f32 0.0, %v3843
  %3845 = vmatprep.mubr.f32.mxu0 0.0
  %3846 = vmatmul.mubr.f32.gmra.mrb[0].mxu0 %v3755
  %v3847 = vpop.f32.mrb[0].mxu0
  %v3848 = vadd.f32 0.0, %v3847
  %v3849 = vpop.f32.mrb[0].mxu0
  %v3850 = vadd.f32 0.0, %v3849
  %3851 = vdwg.mxu0
  %v3852 = vmax.f32 %v3709, %v3824
  %v3853 = vmax.f32 %v3711, %v3826
  %v3854 = vmax.f32 %v3715, %v3830
  %v3855 = vmax.f32 %v3717, %v3832
  %v3856 = vmax.f32 %v3721, %v3836
  %v3857 = vmax.f32 %v3723, %v3838
  %v3858 = vmax.f32 %v3727, %v3842
  %v3859 = vmax.f32 %v3729, %v3844
  %v3860 = vmax.f32 %v3733, %v3848
  %v3861 = vmax.f32 %v3735, %v3850
  %v3862 = vld [vmem:[%s11] sm:$0xff]
  %v3863 = vld [vmem:[%s11 + $0x8] sm:$0xff]
  %v3864 = vld [vmem:[%s11 + $0x10] sm:$0xff]
  %v3865 = vld [vmem:[%s11 + $0x18] sm:$0xff]
  %v3866 = vld [vmem:[%s11 + $0x20] sm:$0xff]
  %v3867 = vld [vmem:[%s11 + $0x28] sm:$0xff]
  %v3868 = vld [vmem:[%s11 + $0x30] sm:$0xff]
  %v3869 = vld [vmem:[%s11 + $0x38] sm:$0xff]
  %v3870 = vld [vmem:[%s11 + $0x40] sm:$0xff]
  %v3871 = vld [vmem:[%s11 + $0x48] sm:$0xff]
  %v3872 = vld [vmem:[%s11 + $0x50] sm:$0xff]
  %v3873 = vld [vmem:[%s11 + $0x58] sm:$0xff]
  %v3874 = vld [vmem:[%s11 + $0x60] sm:$0xff]
  %v3875 = vld [vmem:[%s11 + $0x68] sm:$0xff]
  %v3876 = vld [vmem:[%s11 + $0x70] sm:$0xff]
  %v3877 = vld [vmem:[%s11 + $0x78] sm:$0xff]
  %v3878 = vld [vmem:[%s11 + $0x80] sm:$0xff]
  %v3879 = vld [vmem:[%s11 + $0x88] sm:$0xff]
  %v3880 = vld [vmem:[%s11 + $0x90] sm:$0xff]
  %v3881 = vld [vmem:[%s11 + $0x98] sm:$0xff]
  %v3883 = vsel %vm152, %v3853, 0
  %v3886 = vsel %vm152, %v3855, 0
  %v3889 = vsel %vm152, %v3857, 0
  %v3892 = vsel %vm152, %v3859, 0
  %v3895 = vsel %vm152, %v3861, 0
  %3897 = vmatprep.subr.mxu0 0.0
  %3898 = vmatpush1.msra.mxu0 %v3862
  %3899 = vmatprep.subr.mxu0 0.0
  %3900 = vmatpush1.msra.mxu0 %v3863
  %3901 = vmatprep.subr.mxu0 0.0
  %3902 = vmatpush1.msra.mxu0 %v3864
  %3903 = vmatprep.subr.mxu0 0.0
  %3904 = vmatpush1.msra.mxu0 %v3865
  %3905 = vmatprep.subr.mxu0 0.0
  %3906 = vmatpush1.msra.mxu0 %v3866
  %3907 = vmatprep.subr.mxu0 0.0
  %3908 = vmatpush1.msra.mxu0 %v3867
  %3909 = vmatprep.subr.mxu0 0.0
  %3910 = vmatpush1.msra.mxu0 %v3868
  %3911 = vmatprep.subr.mxu0 0.0
  %3912 = vmatpush1.msra.mxu0 %v3869
  %3913 = vmatprep.subr.mxu0 0.0
  %3914 = vmatpush1.msra.mxu0 %v3870
  %3915 = vmatprep.subr.mxu0 0.0
  %3916 = vmatpush1.msra.mxu0 %v3871
  %3917 = vmatprep.subr.mxu0 0.0
  %3918 = vmatpush1.msra.mxu0 %v3872
  %3919 = vmatprep.subr.mxu0 0.0
  %3920 = vmatpush1.msra.mxu0 %v3873
  %3921 = vmatprep.subr.mxu0 0.0
  %3922 = vmatpush1.msra.mxu0 %v3874
  %3923 = vmatprep.subr.mxu0 0.0
  %3924 = vmatpush1.msra.mxu0 %v3875
  %3925 = vmatprep.subr.mxu0 0.0
  %3926 = vmatpush1.msra.mxu0 %v3876
  %3927 = vmatprep.subr.mxu0 0.0
  %3928 = vmatpush1.msra.mxu0 %v3877
  %3929 = vmatprep.subr.mxu0 0.0
  %3930 = vmatpush1.msra.mxu0 %v3878
  %3931 = vmatprep.subr.mxu0 0.0
  %3932 = vmatpush1.msra.mxu0 %v3879
  %3933 = vmatprep.subr.mxu0 0.0
  %3934 = vmatpush1.msra.mxu0 %v3880
  %3935 = vmatprep.subr.mxu0 0.0
  %3936 = vmatpush1.msra.mxu0 %v3881
  %3937 = vmatprep.subr.mxu0 0.0
  %3938 = vmatpush1.msra.mxu0 0.0
  %3939 = vmatprep.subr.mxu0 0.0
  %3940 = vmatpush1.msra.mxu0 0.0
  %3941 = vmatprep.subr.mxu0 0.0
  %3942 = vmatpush1.msra.mxu0 0.0
  %3943 = vmatprep.subr.mxu0 0.0
  %3944 = vmatpush1.msra.mxu0 0.0
  %3945 = vmatprep.subr.mxu0 0.0
  %3946 = vmatpush1.msra.mxu0 0.0
  %3947 = vmatprep.subr.mxu0 0.0
  %3948 = vmatpush1.msra.mxu0 0.0
  %3949 = vmatprep.subr.mxu0 0.0
  %3950 = vmatpush1.msra.mxu0 0.0
  %3951 = vmatprep.subr.mxu0 0.0
  %3952 = vmatpush1.msra.mxu0 0.0
  %3953 = vmatprep.subr.mxu0 0.0
  %3954 = vmatpush1.msra.mxu0 0.0
  %3955 = vmatprep.subr.mxu0 0.0
  %3956 = vmatpush1.msra.mxu0 0.0
  %3957 = vmatprep.subr.mxu0 0.0
  %3958 = vmatpush1.msra.mxu0 0.0
  %3959 = vmatprep.subr.mxu0 0.0
  %3960 = vmatpush1.msra.mxu0 0.0
  %3961 = vmatprep.mubr.f32.mxu0 %v3883
  %3962 = vmatmul.mubr.f32.gmra.mrb[0].mxu0 %v3852
  %v3963 = vpop.f32.mrb[0].mxu0
  %v3964 = vadd.f32 0.0, %v3963
  %v3965 = vpop.f32.mrb[0].mxu0
  %3966 = vmatprep.mubr.f32.mxu0 %v3886
  %3967 = vmatmul.mubr.f32.gmra.mrb[0].mxu0 %v3854
  %v3968 = vpop.f32.mrb[0].mxu0
  %v3969 = vadd.f32 0.0, %v3968
  %v3970 = vpop.f32.mrb[0].mxu0
  %3971 = vmatprep.mubr.f32.mxu0 %v3889
  %3972 = vmatmul.mubr.f32.gmra.mrb[0].mxu0 %v3856
  %v3973 = vpop.f32.mrb[0].mxu0
  %v3974 = vadd.f32 0.0, %v3973
  %v3975 = vpop.f32.mrb[0].mxu0
  %3976 = vmatprep.mubr.f32.mxu0 %v3892
  %3977 = vmatmul.mubr.f32.gmra.mrb[0].mxu0 %v3858
  %v3978 = vpop.f32.mrb[0].mxu0
  %v3979 = vadd.f32 0.0, %v3978
  %v3980 = vpop.f32.mrb[0].mxu0
  %3981 = vmatprep.mubr.f32.mxu0 %v3895
  %3982 = vmatmul.mubr.f32.gmra.mrb[0].mxu0 %v3860
  %v3983 = vpop.f32.mrb[0].mxu0
  %v3984 = vadd.f32 0.0, %v3983
  %v3985 = vpop.f32.mrb[0].mxu0
  %3986 = vdwg.mxu0
  %v3987 = vld [vmem:[%s12] sm:$0xff]
  %v3988 = vld [vmem:[%s12 + $0x8] sm:$0xff]
  %v3989 = vld [vmem:[%s12 + $0x10] sm:$0xff]
  %v3990 = vld [vmem:[%s12 + $0x18] sm:$0xff]
  %v3991 = vld [vmem:[%s12 + $0x20] sm:$0xff]
  %v3992 = vld [vmem:[%s12 + $0x28] sm:$0xff]
  %v3993 = vld [vmem:[%s12 + $0x30] sm:$0xff]
  %v3994 = vld [vmem:[%s12 + $0x38] sm:$0xff]
  %v3995 = vld [vmem:[%s12 + $0x40] sm:$0xff]
  %v3996 = vld [vmem:[%s12 + $0x48] sm:$0xff]
  %v3997 = vld [vmem:[%s12 + $0x50] sm:$0xff]
  %v3998 = vld [vmem:[%s12 + $0x58] sm:$0xff]
  %v3999 = vld [vmem:[%s12 + $0x60] sm:$0xff]
  %v4000 = vld [vmem:[%s12 + $0x68] sm:$0xff]
  %v4001 = vld [vmem:[%s12 + $0x70] sm:$0xff]
  %v4002 = vld [vmem:[%s12 + $0x78] sm:$0xff]
  %v4003 = vld [vmem:[%s12 + $0x80] sm:$0xff]
  %v4004 = vld [vmem:[%s12 + $0x88] sm:$0xff]
  %v4005 = vld [vmem:[%s12 + $0x90] sm:$0xff]
  %v4006 = vld [vmem:[%s12 + $0x98] sm:$0xff]
  %4007 = vmatprep.subr.mxu0 0.0
  %4008 = vmatpush1.msra.mxu0 %v3987
  %4009 = vmatprep.subr.mxu0 0.0
  %4010 = vmatpush1.msra.mxu0 %v3988
  %4011 = vmatprep.subr.mxu0 0.0
  %4012 = vmatpush1.msra.mxu0 %v3989
  %4013 = vmatprep.subr.mxu0 0.0
  %4014 = vmatpush1.msra.mxu0 %v3990
  %4015 = vmatprep.subr.mxu0 0.0
  %4016 = vmatpush1.msra.mxu0 %v3991
  %4017 = vmatprep.subr.mxu0 0.0
  %4018 = vmatpush1.msra.mxu0 %v3992
  %4019 = vmatprep.subr.mxu0 0.0
  %4020 = vmatpush1.msra.mxu0 %v3993
  %4021 = vmatprep.subr.mxu0 0.0
  %4022 = vmatpush1.msra.mxu0 %v3994
  %4023 = vmatprep.subr.mxu0 0.0
  %4024 = vmatpush1.msra.mxu0 %v3995
  %4025 = vmatprep.subr.mxu0 0.0
  %4026 = vmatpush1.msra.mxu0 %v3996
  %4027 = vmatprep.subr.mxu0 0.0
  %4028 = vmatpush1.msra.mxu0 %v3997
  %4029 = vmatprep.subr.mxu0 0.0
  %4030 = vmatpush1.msra.mxu0 %v3998
  %4031 = vmatprep.subr.mxu0 0.0
  %4032 = vmatpush1.msra.mxu0 %v3999
  %4033 = vmatprep.subr.mxu0 0.0
  %4034 = vmatpush1.msra.mxu0 %v4000
  %4035 = vmatprep.subr.mxu0 0.0
  %4036 = vmatpush1.msra.mxu0 %v4001
  %4037 = vmatprep.subr.mxu0 0.0
  %4038 = vmatpush1.msra.mxu0 %v4002
  %4039 = vmatprep.subr.mxu0 0.0
  %4040 = vmatpush1.msra.mxu0 %v4003
  %4041 = vmatprep.subr.mxu0 0.0
  %4042 = vmatpush1.msra.mxu0 %v4004
  %4043 = vmatprep.subr.mxu0 0.0
  %4044 = vmatpush1.msra.mxu0 %v4005
  %4045 = vmatprep.subr.mxu0 0.0
  %4046 = vmatpush1.msra.mxu0 %v4006
  %4047 = vmatprep.subr.mxu0 0.0
  %4048 = vmatpush1.msra.mxu0 0.0
  %4049 = vmatprep.subr.mxu0 0.0
  %4050 = vmatpush1.msra.mxu0 0.0
  %4051 = vmatprep.subr.mxu0 0.0
  %4052 = vmatpush1.msra.mxu0 0.0
  %4053 = vmatprep.subr.mxu0 0.0
  %4054 = vmatpush1.msra.mxu0 0.0
  %4055 = vmatprep.subr.mxu0 0.0
  %4056 = vmatpush1.msra.mxu0 0.0
  %4057 = vmatprep.subr.mxu0 0.0
  %4058 = vmatpush1.msra.mxu0 0.0
  %4059 = vmatprep.subr.mxu0 0.0
  %4060 = vmatpush1.msra.mxu0 0.0
  %4061 = vmatprep.subr.mxu0 0.0
  %4062 = vmatpush1.msra.mxu0 0.0
  %4063 = vmatprep.subr.mxu0 0.0
  %4064 = vmatpush1.msra.mxu0 0.0
  %4065 = vmatprep.subr.mxu0 0.0
  %4066 = vmatpush1.msra.mxu0 0.0
  %4067 = vmatprep.subr.mxu0 0.0
  %4068 = vmatpush1.msra.mxu0 0.0
  %4069 = vmatprep.subr.mxu0 0.0
  %4070 = vmatpush1.msra.mxu0 0.0
  %4071 = vmatprep.mubr.f32.mxu0 %v3883
  %4072 = vmatmul.mubr.f32.gmra.mrb[0].mxu0 %v3852
  %v4073 = vpop.f32.mrb[0].mxu0
  %v4074 = vadd.f32 0.0, %v4073
  %v4075 = vpop.f32.mrb[0].mxu0
  %4076 = vmatprep.mubr.f32.mxu0 %v3886
  %4077 = vmatmul.mubr.f32.gmra.mrb[0].mxu0 %v3854
  %v4078 = vpop.f32.mrb[0].mxu0
  %v4079 = vadd.f32 0.0, %v4078
  %v4080 = vpop.f32.mrb[0].mxu0
  %4081 = vmatprep.mubr.f32.mxu0 %v3889
  %4082 = vmatmul.mubr.f32.gmra.mrb[0].mxu0 %v3856
  %v4083 = vpop.f32.mrb[0].mxu0
  %v4084 = vadd.f32 0.0, %v4083
  %v4085 = vpop.f32.mrb[0].mxu0
  %4086 = vmatprep.mubr.f32.mxu0 %v3892
  %4087 = vmatmul.mubr.f32.gmra.mrb[0].mxu0 %v3858
  %v4088 = vpop.f32.mrb[0].mxu0
  %v4089 = vadd.f32 0.0, %v4088
  %v4090 = vpop.f32.mrb[0].mxu0
  %4091 = vmatprep.mubr.f32.mxu0 %v3895
  %4092 = vmatmul.mubr.f32.gmra.mrb[0].mxu0 %v3860
  %v4093 = vpop.f32.mrb[0].mxu0
  %v4094 = vadd.f32 0.0, %v4093
  %v4095 = vpop.f32.mrb[0].mxu0
  %4096 = vdwg.mxu0
  %v4097 = vmax.f32 %v3964, %v4074
  %v4098 = vmax.f32 %v3969, %v4079
  %v4099 = vmax.f32 %v3974, %v4084
  %v4100 = vmax.f32 %v3979, %v4089
  %v4101 = vmax.f32 %v3984, %v4094
  %v4102 = vld [vmem:[%s13] sm:$0xf]
  %v4103 = vld [vmem:[%s13 + $0x4] sm:$0xf]
  %v4104 = vld [vmem:[%s13 + $0x8] sm:$0xf]
  %v4105 = vld [vmem:[%s13 + $0xc] sm:$0xf]
  %v4106 = vld [vmem:[%s13 + $0x10] sm:$0xf]
  %v4107 = vld [vmem:[%s13 + $0x14] sm:$0xf]
  %v4108 = vld [vmem:[%s13 + $0x18] sm:$0xf]
  %v4109 = vld [vmem:[%s13 + $0x1c] sm:$0xf]
  %v4110 = vld [vmem:[%s13 + $0x20] sm:$0xf]
  %v4111 = vld [vmem:[%s13 + $0x24] sm:$0xf]
  %v4112 = vld [vmem:[%s13 + $0x28] sm:$0xf]
  %v4113 = vld [vmem:[%s13 + $0x2c] sm:$0xf]
  %v4114 = vld [vmem:[%s13 + $0x30] sm:$0xf]
  %v4115 = vld [vmem:[%s13 + $0x34] sm:$0xf]
  %v4116 = vld [vmem:[%s13 + $0x38] sm:$0xf]
  %v4117 = vld [vmem:[%s13 + $0x3c] sm:$0xf]
  %v4118 = vld [vmem:[%s13 + $0x40] sm:$0xf]
  %v4119 = vld [vmem:[%s13 + $0x44] sm:$0xf]
  %v4120 = vld [vmem:[%s13 + $0x48] sm:$0xf]
  %v4121 = vld [vmem:[%s13 + $0x4c] sm:$0xf]
  %v4122 = vld [vmem:[%s13 + $0x50] sm:$0xf]
  %v4123 = vld [vmem:[%s13 + $0x54] sm:$0xf]
  %v4124 = vld [vmem:[%s13 + $0x58] sm:$0xf]
  %v4125 = vld [vmem:[%s13 + $0x5c] sm:$0xf]
  %v4126 = vld [vmem:[%s13 + $0x60] sm:$0xf]
  %v4127 = vld [vmem:[%s13 + $0x64] sm:$0xf]
  %v4128 = vld [vmem:[%s13 + $0x68] sm:$0xf]
  %v4129 = vld [vmem:[%s13 + $0x6c] sm:$0xf]
  %v4130 = vld [vmem:[%s13 + $0x70] sm:$0xf]
  %v4131 = vld [vmem:[%s13 + $0x74] sm:$0xf]
  %v4132 = vld [vmem:[%s13 + $0x78] sm:$0xf]
  %v4133 = vld [vmem:[%s13 + $0x7c] sm:$0xf]
  %v4134 = vld [vmem:[%s13 + $0x80] sm:$0xf]
  %v4135 = vld [vmem:[%s13 + $0x84] sm:$0xf]
  %v4136 = vld [vmem:[%s13 + $0x88] sm:$0xf]
  %v4137 = vld [vmem:[%s13 + $0x8c] sm:$0xf]
  %v4138 = vld [vmem:[%s13 + $0x90] sm:$0xf]
  %v4139 = vld [vmem:[%s13 + $0x94] sm:$0xf]
  %v4140 = vld [vmem:[%s13 + $0x98] sm:$0xf]
  %v4141 = vld [vmem:[%s13 + $0x9c] sm:$0xf]
  %v4142 = vld [vmem:[%s13 + $0xa0] sm:$0xf]
  %v4143 = vld [vmem:[%s13 + $0xa4] sm:$0xf]
  %v4144 = vld [vmem:[%s13 + $0xa8] sm:$0xf]
  %v4145 = vld [vmem:[%s13 + $0xac] sm:$0xf]
  %v4146 = vld [vmem:[%s13 + $0xb0] sm:$0xf]
  %v4147 = vld [vmem:[%s13 + $0xb4] sm:$0xf]
  %v4148 = vld [vmem:[%s13 + $0xb8] sm:$0xf]
  %v4149 = vld [vmem:[%s13 + $0xbc] sm:$0xf]
  %v4150 = vld [vmem:[%s13 + $0xc0] sm:$0xf]
  %v4151 = vld [vmem:[%s13 + $0xc4] sm:$0xf]
  %v4152 = vpack.c.bf16 %v4097, %v4097
  %v4153 = vpack.c.bf16 %v4098, %v4098
  %v4164 = vunpack.c.l.b16 %v4112
  %v4165 = vunpack.c.l.b16 %v4113
  %v4166 = vunpack.c.l.b16 %v4114
  %v4167 = vunpack.c.l.b16 %v4115
  %v4168 = vunpack.c.l.b16 %v4116
  %v4169 = vunpack.c.l.b16 %v4117
  %v4170 = vunpack.c.l.b16 %v4118
  %v4171 = vunpack.c.l.b16 %v4119
  %v4172 = vunpack.c.l.b16 %v4120
  %v4173 = vunpack.c.l.b16 %v4121
  %v4174 = vpack.c.b16 %v4165, %v4164
  %v4175 = vpack.c.b16 %v4167, %v4166
  %v4176 = vpack.c.b16 %v4169, %v4168
  %v4177 = vpack.c.b16 %v4171, %v4170
  %v4178 = vpack.c.b16 %v4173, %v4172
  %v4185 = vsel %vm3626, %v4153, 0
  %4187 = vmatprep.subr.bf16.mxu0 0
  %4188 = vmatpush1.bf16.msra.mxu0 %v4174
  %4189 = vmatprep.subr.bf16.mxu0 0
  %4190 = vmatpush1.bf16.msra.mxu0 %v4175
  %4191 = vmatprep.subr.bf16.mxu0 0
  %4192 = vmatpush1.bf16.msra.mxu0 %v4176
  %4193 = vmatprep.subr.bf16.mxu0 0
  %4194 = vmatpush1.bf16.msra.mxu0 %v4177
  %4195 = vmatprep.subr.bf16.mxu0 0
  %4196 = vmatpush1.bf16.msra.mxu0 %v4178
  %4197 = vmatprep.subr.bf16.mxu0 0
  %4198 = vmatpush1.bf16.msra.mxu0 0
  %4199 = vmatprep.subr.bf16.mxu0 0
  %4200 = vmatpush1.bf16.msra.mxu0 0
  %4201 = vmatprep.subr.bf16.mxu0 0
  %4202 = vmatpush1.bf16.msra.mxu0 0
  %4203 = vmatprep.subr.bf16.mxu0 0
  %4204 = vmatpush1.bf16.msra.mxu0 0
  %4205 = vmatprep.subr.bf16.mxu0 0
  %4206 = vmatpush1.bf16.msra.mxu0 0
  %4207 = vmatprep.subr.bf16.mxu0 0
  %4208 = vmatpush1.bf16.msra.mxu0 0
  %4209 = vmatprep.subr.bf16.mxu0 0
  %4210 = vmatpush1.bf16.msra.mxu0 0
  %4211 = vmatprep.subr.bf16.mxu0 0
  %4212 = vmatpush1.bf16.msra.mxu0 0
  %4213 = vmatprep.subr.bf16.mxu0 0
  %4214 = vmatpush1.bf16.msra.mxu0 0
  %4215 = vmatprep.subr.bf16.mxu0 0
  %4216 = vmatpush1.bf16.msra.mxu0 0
  %4217 = vmatprep.subr.bf16.mxu0 0
  %4218 = vmatpush1.bf16.msra.mxu0 0
  %4219 = vmatprep.mubr.bf16.mxu0 0
  %4220 = vmatmul.mubr.bf16.gmra.mrb[0].mxu0 %v4185
  %v4221 = vpop.f32.mrb[0].mxu0
  %v4222 = vadd.f32 0.0, %v4221
  %v4223 = vpop.f32.mrb[0].mxu0
  %v4224 = vpop.f32.mrb[0].mxu0
  %v4225 = vpop.f32.mrb[0].mxu0
  %4226 = vdwg.mxu0
  %v4237 = vunpack.c.l.b16 %v4102
  %v4238 = vunpack.c.l.b16 %v4103
  %v4239 = vunpack.c.l.b16 %v4104
  %v4240 = vunpack.c.l.b16 %v4105
  %v4241 = vunpack.c.l.b16 %v4106
  %v4242 = vunpack.c.l.b16 %v4107
  %v4243 = vunpack.c.l.b16 %v4108
  %v4244 = vunpack.c.l.b16 %v4109
  %v4245 = vunpack.c.l.b16 %v4110
  %v4246 = vunpack.c.l.b16 %v4111
  %v4247 = vpack.c.b16 %v4238, %v4237
  %v4248 = vpack.c.b16 %v4240, %v4239
  %v4249 = vpack.c.b16 %v4242, %v4241
  %v4250 = vpack.c.b16 %v4244, %v4243
  %v4251 = vpack.c.b16 %v4246, %v4245
  %v4258 = vsel %vm3626, %v4152, 0
  %4260 = vmatprep.subr.bf16.mxu0 0
  %4261 = vmatpush1.bf16.msra.mxu0 %v4247
  %4262 = vmatprep.subr.bf16.mxu0 0
  %4263 = vmatpush1.bf16.msra.mxu0 %v4248
  %4264 = vmatprep.subr.bf16.mxu0 0
  %4265 = vmatpush1.bf16.msra.mxu0 %v4249
  %4266 = vmatprep.subr.bf16.mxu0 0
  %4267 = vmatpush1.bf16.msra.mxu0 %v4250
  %4268 = vmatprep.subr.bf16.mxu0 0
  %4269 = vmatpush1.bf16.msra.mxu0 %v4251
  %4270 = vmatprep.subr.bf16.mxu0 0
  %4271 = vmatpush1.bf16.msra.mxu0 0
  %4272 = vmatprep.subr.bf16.mxu0 0
  %4273 = vmatpush1.bf16.msra.mxu0 0
  %4274 = vmatprep.subr.bf16.mxu0 0
  %4275 = vmatpush1.bf16.msra.mxu0 0
  %4276 = vmatprep.subr.bf16.mxu0 0
  %4277 = vmatpush1.bf16.msra.mxu0 0
  %4278 = vmatprep.subr.bf16.mxu0 0
  %4279 = vmatpush1.bf16.msra.mxu0 0
  %4280 = vmatprep.subr.bf16.mxu0 0
  %4281 = vmatpush1.bf16.msra.mxu0 0
  %4282 = vmatprep.subr.bf16.mxu0 0
  %4283 = vmatpush1.bf16.msra.mxu0 0
  %4284 = vmatprep.subr.bf16.mxu0 0
  %4285 = vmatpush1.bf16.msra.mxu0 0
  %4286 = vmatprep.subr.bf16.mxu0 0
  %4287 = vmatpush1.bf16.msra.mxu0 0
  %4288 = vmatprep.subr.bf16.mxu0 0
  %4289 = vmatpush1.bf16.msra.mxu0 0
  %4290 = vmatprep.subr.bf16.mxu0 0
  %4291 = vmatpush1.bf16.msra.mxu0 0
  %4292 = vmatprep.mubr.bf16.mxu0 0
  %4293 = vmatmul.mubr.bf16.gmra.mrb[0].mxu0 %v4258
  %v4294 = vpop.f32.mrb[0].mxu0
  %v4295 = vadd.f32 %v4222, %v4294
  %v4296 = vpop.f32.mrb[0].mxu0
  %v4297 = vpop.f32.mrb[0].mxu0
  %v4298 = vpop.f32.mrb[0].mxu0
  %4299 = vdwg.mxu0
  %v4300 = vpack.c.bf16 %v4099, %v4099
  %v4311 = vunpack.c.l.b16 %v4122
  %v4312 = vunpack.c.l.b16 %v4123
  %v4313 = vunpack.c.l.b16 %v4124
  %v4314 = vunpack.c.l.b16 %v4125
  %v4315 = vunpack.c.l.b16 %v4126
  %v4316 = vunpack.c.l.b16 %v4127
  %v4317 = vunpack.c.l.b16 %v4128
  %v4318 = vunpack.c.l.b16 %v4129
  %v4319 = vunpack.c.l.b16 %v4130
  %v4320 = vunpack.c.l.b16 %v4131
  %v4321 = vpack.c.b16 %v4312, %v4311
  %v4322 = vpack.c.b16 %v4314, %v4313
  %v4323 = vpack.c.b16 %v4316, %v4315
  %v4324 = vpack.c.b16 %v4318, %v4317
  %v4325 = vpack.c.b16 %v4320, %v4319
  %v4332 = vsel %vm3626, %v4300, 0
  %4334 = vmatprep.subr.bf16.mxu0 0
  %4335 = vmatpush1.bf16.msra.mxu0 %v4321
  %4336 = vmatprep.subr.bf16.mxu0 0
  %4337 = vmatpush1.bf16.msra.mxu0 %v4322
  %4338 = vmatprep.subr.bf16.mxu0 0
  %4339 = vmatpush1.bf16.msra.mxu0 %v4323
  %4340 = vmatprep.subr.bf16.mxu0 0
  %4341 = vmatpush1.bf16.msra.mxu0 %v4324
  %4342 = vmatprep.subr.bf16.mxu0 0
  %4343 = vmatpush1.bf16.msra.mxu0 %v4325
  %4344 = vmatprep.subr.bf16.mxu0 0
  %4345 = vmatpush1.bf16.msra.mxu0 0
  %4346 = vmatprep.subr.bf16.mxu0 0
  %4347 = vmatpush1.bf16.msra.mxu0 0
  %4348 = vmatprep.subr.bf16.mxu0 0
  %4349 = vmatpush1.bf16.msra.mxu0 0
  %4350 = vmatprep.subr.bf16.mxu0 0
  %4351 = vmatpush1.bf16.msra.mxu0 0
  %4352 = vmatprep.subr.bf16.mxu0 0
  %4353 = vmatpush1.bf16.msra.mxu0 0
  %4354 = vmatprep.subr.bf16.mxu0 0
  %4355 = vmatpush1.bf16.msra.mxu0 0
  %4356 = vmatprep.subr.bf16.mxu0 0
  %4357 = vmatpush1.bf16.msra.mxu0 0
  %4358 = vmatprep.subr.bf16.mxu0 0
  %4359 = vmatpush1.bf16.msra.mxu0 0
  %4360 = vmatprep.subr.bf16.mxu0 0
  %4361 = vmatpush1.bf16.msra.mxu0 0
  %4362 = vmatprep.subr.bf16.mxu0 0
  %4363 = vmatpush1.bf16.msra.mxu0 0
  %4364 = vmatprep.subr.bf16.mxu0 0
  %4365 = vmatpush1.bf16.msra.mxu0 0
  %4366 = vmatprep.mubr.bf16.mxu0 0
  %4367 = vmatmul.mubr.bf16.gmra.mrb[0].mxu0 %v4332
  %v4368 = vpop.f32.mrb[0].mxu0
  %v4369 = vadd.f32 0.0, %v4368
  %v4370 = vpop.f32.mrb[0].mxu0
  %v4371 = vpop.f32.mrb[0].mxu0
  %v4372 = vpop.f32.mrb[0].mxu0
  %4373 = vdwg.mxu0
  %v4374 = vadd.f32 %v4295, %v4369
  %v4375 = vpack.c.bf16 %v4100, %v4100
  %v4386 = vunpack.c.l.b16 %v4132
  %v4387 = vunpack.c.l.b16 %v4133
  %v4388 = vunpack.c.l.b16 %v4134
  %v4389 = vunpack.c.l.b16 %v4135
  %v4390 = vunpack.c.l.b16 %v4136
  %v4391 = vunpack.c.l.b16 %v4137
  %v4392 = vunpack.c.l.b16 %v4138
  %v4393 = vunpack.c.l.b16 %v4139
  %v4394 = vunpack.c.l.b16 %v4140
  %v4395 = vunpack.c.l.b16 %v4141
  %v4396 = vpack.c.b16 %v4387, %v4386
  %v4397 = vpack.c.b16 %v4389, %v4388
  %v4398 = vpack.c.b16 %v4391, %v4390
  %v4399 = vpack.c.b16 %v4393, %v4392
  %v4400 = vpack.c.b16 %v4395, %v4394
  %v4407 = vsel %vm3626, %v4375, 0
  %4409 = vmatprep.subr.bf16.mxu0 0
  %4410 = vmatpush1.bf16.msra.mxu0 %v4396
  %4411 = vmatprep.subr.bf16.mxu0 0
  %4412 = vmatpush1.bf16.msra.mxu0 %v4397
  %4413 = vmatprep.subr.bf16.mxu0 0
  %4414 = vmatpush1.bf16.msra.mxu0 %v4398
  %4415 = vmatprep.subr.bf16.mxu0 0
  %4416 = vmatpush1.bf16.msra.mxu0 %v4399
  %4417 = vmatprep.subr.bf16.mxu0 0
  %4418 = vmatpush1.bf16.msra.mxu0 %v4400
  %4419 = vmatprep.subr.bf16.mxu0 0
  %4420 = vmatpush1.bf16.msra.mxu0 0
  %4421 = vmatprep.subr.bf16.mxu0 0
  %4422 = vmatpush1.bf16.msra.mxu0 0
  %4423 = vmatprep.subr.bf16.mxu0 0
  %4424 = vmatpush1.bf16.msra.mxu0 0
  %4425 = vmatprep.subr.bf16.mxu0 0
  %4426 = vmatpush1.bf16.msra.mxu0 0
  %4427 = vmatprep.subr.bf16.mxu0 0
  %4428 = vmatpush1.bf16.msra.mxu0 0
  %4429 = vmatprep.subr.bf16.mxu0 0
  %4430 = vmatpush1.bf16.msra.mxu0 0
  %4431 = vmatprep.subr.bf16.mxu0 0
  %4432 = vmatpush1.bf16.msra.mxu0 0
  %4433 = vmatprep.subr.bf16.mxu0 0
  %4434 = vmatpush1.bf16.msra.mxu0 0
  %4435 = vmatprep.subr.bf16.mxu0 0
  %4436 = vmatpush1.bf16.msra.mxu0 0
  %4437 = vmatprep.subr.bf16.mxu0 0
  %4438 = vmatpush1.bf16.msra.mxu0 0
  %4439 = vmatprep.subr.bf16.mxu0 0
  %4440 = vmatpush1.bf16.msra.mxu0 0
  %4441 = vmatprep.mubr.bf16.mxu0 0
  %4442 = vmatmul.mubr.bf16.gmra.mrb[0].mxu0 %v4407
  %v4443 = vpop.f32.mrb[0].mxu0
  %v4444 = vadd.f32 0.0, %v4443
  %v4445 = vpop.f32.mrb[0].mxu0
  %v4446 = vpop.f32.mrb[0].mxu0
  %v4447 = vpop.f32.mrb[0].mxu0
  %4448 = vdwg.mxu0
  %v4449 = vadd.f32 %v4374, %v4444
  %v4450 = vpack.c.bf16 %v4101, %v4101
  %v4461 = vunpack.c.l.b16 %v4142
  %v4462 = vunpack.c.l.b16 %v4143
  %v4463 = vunpack.c.l.b16 %v4144
  %v4464 = vunpack.c.l.b16 %v4145
  %v4465 = vunpack.c.l.b16 %v4146
  %v4466 = vunpack.c.l.b16 %v4147
  %v4467 = vunpack.c.l.b16 %v4148
  %v4468 = vunpack.c.l.b16 %v4149
  %v4469 = vunpack.c.l.b16 %v4150
  %v4470 = vunpack.c.l.b16 %v4151
  %v4471 = vpack.c.b16 %v4462, %v4461
  %v4472 = vpack.c.b16 %v4464, %v4463
  %v4473 = vpack.c.b16 %v4466, %v4465
  %v4474 = vpack.c.b16 %v4468, %v4467
  %v4475 = vpack.c.b16 %v4470, %v4469
  %v4482 = vsel %vm3626, %v4450, 0
  %4484 = vmatprep.subr.bf16.mxu0 0
  %4485 = vmatpush1.bf16.msra.mxu0 %v4471
  %4486 = vmatprep.subr.bf16.mxu0 0
  %4487 = vmatpush1.bf16.msra.mxu0 %v4472
  %4488 = vmatprep.subr.bf16.mxu0 0
  %4489 = vmatpush1.bf16.msra.mxu0 %v4473
  %4490 = vmatprep.subr.bf16.mxu0 0
  %4491 = vmatpush1.bf16.msra.mxu0 %v4474
  %4492 = vmatprep.subr.bf16.mxu0 0
  %4493 = vmatpush1.bf16.msra.mxu0 %v4475
  %4494 = vmatprep.subr.bf16.mxu0 0
  %4495 = vmatpush1.bf16.msra.mxu0 0
  %4496 = vmatprep.subr.bf16.mxu0 0
  %4497 = vmatpush1.bf16.msra.mxu0 0
  %4498 = vmatprep.subr.bf16.mxu0 0
  %4499 = vmatpush1.bf16.msra.mxu0 0
  %4500 = vmatprep.subr.bf16.mxu0 0
  %4501 = vmatpush1.bf16.msra.mxu0 0
  %4502 = vmatprep.subr.bf16.mxu0 0
  %4503 = vmatpush1.bf16.msra.mxu0 0
  %4504 = vmatprep.subr.bf16.mxu0 0
  %4505 = vmatpush1.bf16.msra.mxu0 0
  %4506 = vmatprep.subr.bf16.mxu0 0
  %4507 = vmatpush1.bf16.msra.mxu0 0
  %4508 = vmatprep.subr.bf16.mxu0 0
  %4509 = vmatpush1.bf16.msra.mxu0 0
  %4510 = vmatprep.subr.bf16.mxu0 0
  %4511 = vmatpush1.bf16.msra.mxu0 0
  %4512 = vmatprep.subr.bf16.mxu0 0
  %4513 = vmatpush1.bf16.msra.mxu0 0
  %4514 = vmatprep.subr.bf16.mxu0 0
  %4515 = vmatpush1.bf16.msra.mxu0 0
  %4516 = vmatprep.mubr.bf16.mxu0 0
  %4517 = vmatmul.mubr.bf16.gmra.mrb[0].mxu0 %v4482
  %v4518 = vpop.f32.mrb[0].mxu0
  %v4519 = vadd.f32 0.0, %v4518
  %v4520 = vpop.f32.mrb[0].mxu0
  %v4521 = vpop.f32.mrb[0].mxu0
  %v4522 = vpop.f32.mrb[0].mxu0
  %4523 = vdwg.mxu0
  %v4524 = vadd.f32 %v4449, %v4519
  %v4525 = vld [vmem:[%s14] sm:$0x1]
  %v4527 = vlaneseq
  %v4528 = vshrl.u32 %v4527, 7
  %v4529 = vsub.s32 0, %v4528
  %v4530 = vrot.slane %v4525, %v4529
  %v4532 = vadd.f32 %v4524, %v4530
  %v4533 = vmax.f32 %v4532, 0.0
  %v4534 = vpack.c.bf16 %v4533, %v4533
  %v4535 = vld [vmem:[%s15] sm:$0xf]
  %v4536 = vld [vmem:[%s15 + $0x4] sm:$0xf]
  %v4537 = vld [vmem:[%s15 + $0x8] sm:$0xf]
  %v4538 = vld [vmem:[%s15 + $0xc] sm:$0xf]
  %v4539 = vld [vmem:[%s15 + $0x10] sm:$0xf]
  %v4540 = vld [vmem:[%s15 + $0x14] sm:$0xf]
  %v4541 = vld [vmem:[%s15 + $0x18] sm:$0xf]
  %v4542 = vld [vmem:[%s15 + $0x1c] sm:$0xf]
  %v4543 = vld [vmem:[%s15 + $0x20] sm:$0xf]
  %v4544 = vld [vmem:[%s15 + $0x24] sm:$0xf]
  %v4545 = vld [vmem:[%s15 + $0x28] sm:$0xf]
  %v4546 = vld [vmem:[%s15 + $0x2c] sm:$0xf]
  %v4547 = vld [vmem:[%s15 + $0x30] sm:$0xf]
  %v4548 = vld [vmem:[%s15 + $0x34] sm:$0xf]
  %v4549 = vld [vmem:[%s15 + $0x38] sm:$0xf]
  %v4550 = vld [vmem:[%s16] sm:$0x1]
  %v4552 = vlaneseq
  %v4553 = vshrl.u32 %v4552, 7
  %v4554 = vsub.s32 0, %v4553
  %v4555 = vrot.slane %v4550, %v4554
  %v4572 = vunpack.c.l.b16 %v4535
  %v4573 = vunpack.c.l.b16 %v4536
  %v4574 = vunpack.c.l.b16 %v4537
  %v4575 = vunpack.c.l.b16 %v4538
  %v4576 = vunpack.c.l.b16 %v4539
  %v4577 = vunpack.c.l.b16 %v4540
  %v4578 = vunpack.c.l.b16 %v4541
  %v4579 = vunpack.c.l.b16 %v4542
  %v4580 = vunpack.c.l.b16 %v4543
  %v4581 = vunpack.c.l.b16 %v4544
  %v4582 = vunpack.c.l.b16 %v4545
  %v4583 = vunpack.c.l.b16 %v4546
  %v4584 = vunpack.c.l.b16 %v4547
  %v4585 = vunpack.c.l.b16 %v4548
  %v4586 = vunpack.c.l.b16 %v4549
  %v4587 = vpack.c.b16 %v4573, %v4572
  %v4588 = vpack.c.b16 %v4575, %v4574
  %v4589 = vpack.c.b16 %v4577, %v4576
  %v4590 = vpack.c.b16 %v4579, %v4578
  %v4591 = vpack.c.b16 %v4581, %v4580
  %v4592 = vpack.c.b16 %v4583, %v4582
  %v4593 = vpack.c.b16 %v4585, %v4584
  %v4594 = vpack.c.b16 %v4586, %v4586
  %vm4602 = vcmask 982016
  %v4604 = vsel %vm4602, %v4534, 0
  %vm4606 = vcmask 1043456
  %v4608 = vsel %vm4606, %v4594, 0
  %4610 = vmatprep.subr.bf16.mxu0 0
  %4611 = vmatpush1.bf16.msra.mxu0 %v4587
  %4612 = vmatprep.subr.bf16.mxu0 0
  %4613 = vmatpush1.bf16.msra.mxu0 %v4588
  %4614 = vmatprep.subr.bf16.mxu0 0
  %4615 = vmatpush1.bf16.msra.mxu0 %v4589
  %4616 = vmatprep.subr.bf16.mxu0 0
  %4617 = vmatpush1.bf16.msra.mxu0 %v4590
  %4618 = vmatprep.subr.bf16.mxu0 0
  %4619 = vmatpush1.bf16.msra.mxu0 %v4591
  %4620 = vmatprep.subr.bf16.mxu0 0
  %4621 = vmatpush1.bf16.msra.mxu0 %v4592
  %4622 = vmatprep.subr.bf16.mxu0 0
  %4623 = vmatpush1.bf16.msra.mxu0 %v4593
  %4624 = vmatprep.subr.bf16.mxu0 0
  %4625 = vmatpush1.bf16.msra.mxu0 %v4608
  %4626 = vmatprep.subr.bf16.mxu0 0
  %4627 = vmatpush1.bf16.msra.mxu0 0
  %4628 = vmatprep.subr.bf16.mxu0 0
  %4629 = vmatpush1.bf16.msra.mxu0 0
  %4630 = vmatprep.subr.bf16.mxu0 0
  %4631 = vmatpush1.bf16.msra.mxu0 0
  %4632 = vmatprep.subr.bf16.mxu0 0
  %4633 = vmatpush1.bf16.msra.mxu0 0
  %4634 = vmatprep.subr.bf16.mxu0 0
  %4635 = vmatpush1.bf16.msra.mxu0 0
  %4636 = vmatprep.subr.bf16.mxu0 0
  %4637 = vmatpush1.bf16.msra.mxu0 0
  %4638 = vmatprep.subr.bf16.mxu0 0
  %4639 = vmatpush1.bf16.msra.mxu0 0
  %4640 = vmatprep.subr.bf16.mxu0 0
  %4641 = vmatpush1.bf16.msra.mxu0 0
  %4642 = vmatprep.mubr.bf16.mxu0 0
  %4643 = vmatmul.mubr.bf16.gmra.mrb[0].mxu0 %v4604
  %v4644 = vpop.f32.mrb[0].mxu0
  %v4645 = vadd.f32 %v4555, %v4644
  %v4646 = vpop.f32.mrb[0].mxu0
  %v4647 = vpop.f32.mrb[0].mxu0
  %v4648 = vpop.f32.mrb[0].mxu0
  %4649 = vdwg.mxu0
  %v4650 = vxor.u32 %v4645, 2147483648
  %v4651 = vmul.f32 %v4650, 1.442695
  %v4652 = vpow.pop %v4651
  %v4653 = vadd.f32 %v4652, 1.0
  %v4654 = vrcp.pop %v4653
  %v4655 = vmul.f32 1.0, %v4654
  %v4656 = vpack.c.bf16 %v4655, %v4655
  %v4657 = vld [vmem:[%s17] sm:$0xf]
  %v4658 = vld [vmem:[%s17 + $0x4] sm:$0xf]
  %v4659 = vld [vmem:[%s17 + $0x8] sm:$0xf]
  %v4660 = vld [vmem:[%s17 + $0xc] sm:$0xf]
  %v4661 = vld [vmem:[%s17 + $0x10] sm:$0xf]
  %v4662 = vld [vmem:[%s17 + $0x14] sm:$0xf]
  %v4663 = vld [vmem:[%s17 + $0x18] sm:$0xf]
  %v4664 = vld [vmem:[%s17 + $0x1c] sm:$0xf]
  %v4665 = vld [vmem:[%s17 + $0x20] sm:$0xf]
  %v4666 = vld [vmem:[%s17 + $0x24] sm:$0xf]
  %v4667 = vld [vmem:[%s17 + $0x28] sm:$0x3]
  %v4668 = vld [vmem:[%s18] sm:$0x1]
  %v4670 = vlaneseq
  %v4671 = vshrl.u32 %v4670, 7
  %v4672 = vsub.s32 0, %v4671
  %v4673 = vrot.slane %v4668, %v4672
  %v4686 = vunpack.c.l.b16 %v4657
  %v4687 = vunpack.c.l.b16 %v4658
  %v4688 = vunpack.c.l.b16 %v4659
  %v4689 = vunpack.c.l.b16 %v4660
  %v4690 = vunpack.c.l.b16 %v4661
  %v4691 = vunpack.c.l.b16 %v4662
  %v4692 = vunpack.c.l.b16 %v4663
  %v4693 = vunpack.c.l.b16 %v4664
  %v4694 = vunpack.c.l.b16 %v4665
  %v4695 = vunpack.c.l.b16 %v4666
  %v4696 = vunpack.c.l.b16 %v4667
  %v4697 = vpack.c.b16 %v4687, %v4686
  %v4698 = vpack.c.b16 %v4689, %v4688
  %v4699 = vpack.c.b16 %v4691, %v4690
  %v4700 = vpack.c.b16 %v4693, %v4692
  %v4701 = vpack.c.b16 %v4695, %v4694
  %v4702 = vpack.c.b16 %v4696, %v4696
  %vm4708 = vcmask 687104
  %v4710 = vsel %vm4708, %v4656, 0
  %vm4712 = vcmask 1041408
  %v4714 = vsel %vm4712, %v4702, 0
  %4716 = vmatprep.subr.bf16.mxu0 0
  %4717 = vmatpush1.bf16.msra.mxu0 %v4697
  %4718 = vmatprep.subr.bf16.mxu0 0
  %4719 = vmatpush1.bf16.msra.mxu0 %v4698
  %4720 = vmatprep.subr.bf16.mxu0 0
  %4721 = vmatpush1.bf16.msra.mxu0 %v4699
  %4722 = vmatprep.subr.bf16.mxu0 0
  %4723 = vmatpush1.bf16.msra.mxu0 %v4700
  %4724 = vmatprep.subr.bf16.mxu0 0
  %4725 = vmatpush1.bf16.msra.mxu0 %v4701
  %4726 = vmatprep.subr.bf16.mxu0 0
  %4727 = vmatpush1.bf16.msra.mxu0 %v4714
  %4728 = vmatprep.subr.bf16.mxu0 0
  %4729 = vmatpush1.bf16.msra.mxu0 0
  %4730 = vmatprep.subr.bf16.mxu0 0
  %4731 = vmatpush1.bf16.msra.mxu0 0
  %4732 = vmatprep.subr.bf16.mxu0 0
  %4733 = vmatpush1.bf16.msra.mxu0 0
  %4734 = vmatprep.subr.bf16.mxu0 0
  %4735 = vmatpush1.bf16.msra.mxu0 0
  %4736 = vmatprep.subr.bf16.mxu0 0
  %4737 = vmatpush1.bf16.msra.mxu0 0
  %4738 = vmatprep.subr.bf16.mxu0 0
  %4739 = vmatpush1.bf16.msra.mxu0 0
  %4740 = vmatprep.subr.bf16.mxu0 0
  %4741 = vmatpush1.bf16.msra.mxu0 0
  %4742 = vmatprep.subr.bf16.mxu0 0
  %4743 = vmatpush1.bf16.msra.mxu0 0
  %4744 = vmatprep.subr.bf16.mxu0 0
  %4745 = vmatpush1.bf16.msra.mxu0 0
  %4746 = vmatprep.subr.bf16.mxu0 0
  %4747 = vmatpush1.bf16.msra.mxu0 0
  %4748 = vmatprep.mubr.bf16.mxu0 0
  %4749 = vmatmul.mubr.bf16.gmra.mrb[0].mxu0 %v4710
  %v4750 = vpop.f32.mrb[0].mxu0
  %v4751 = vadd.f32 %v4673, %v4750
  %v4752 = vpop.f32.mrb[0].mxu0
  %v4753 = vpop.f32.mrb[0].mxu0
  %v4754 = vpop.f32.mrb[0].mxu0
  %4755 = vdwg.mxu0
  %4756 = vst [vmem:[%s19] sm:$0xff] %v4751
  // Predicated region
  $region78: #{lenet_forward.1} parent=0 // pred_check
    _
  $region79: #{lenet_forward.1} parent=0 // pred_check_branch
    %4758 = sbr.rel (0) target = $region81
  $region80: #{lenet_forward.1} parent=0 // pred_region
    _
  $region81: #{lenet_forward.1} parent=0 // pred_fallthru
    _
  // Predicated region
  $region82: #{lenet_forward.1} parent=0 // pred_check
    _
  $region83: #{lenet_forward.1} parent=0 // pred_check_branch
    %4760 = sbr.rel (0) target = $region85
  $region84: #{lenet_forward.1} parent=0 // pred_region
    _
  $region85: #{lenet_forward.1} parent=0 // pred_fallthru
    _

</llo_original>
